<compile_context>
chip_gen: v5e
topology: v5e:2x2
jax: 0.10.0
libtpu: 0.0.40
codegen_flags: <defaults>
</compile_context>

<pallas_src>
import functools
import math

import jax
import jax.numpy as jnp
from jax.experimental import pallas as pl
from jax.experimental.pallas import tpu as pltpu

LN_EPS = 1e-5
_NEG_INF = -1e9

# Row layout of the packed per-stream vector parameters (shape (_NUM_VEC_ROWS, D)).
_VEC_BQ, _VEC_BK, _VEC_BV, _VEC_BO = 0, 1, 2, 3
_VEC_LN1G, _VEC_LN1B = 4, 5
_VEC_B2 = 6
_VEC_LN2G, _VEC_LN2B = 7, 8
_NUM_VEC_ROWS = 16  # padded to a sublane multiple of 8


def _layer_norm(y, gamma, beta):
    mu = jnp.mean(y, axis=-1, keepdims=True)
    var = jnp.mean(jnp.square(y - mu), axis=-1, keepdims=True)
    return (y - mu) * jax.lax.rsqrt(var + LN_EPS) * gamma + beta


# ---------------------------------------------------------------------------
# Fused Pallas kernel: MHA + Add&Norm + FFN + Add&Norm for one stream
# ---------------------------------------------------------------------------
def _fused_stream_kernel(xq_ref, xkv_ref, mask_ref,
                         wq_ref, wk_ref, wv_ref, wo_ref, w1_ref, w2_ref,
                         vecs_ref, b1_ref,
                         out_ref, ctx_ref, *, num_heads):
    """y = LN(x_q + MHA(x_q, x_kv, x_kv)); out = LN(y + FFN(y))."""
    Bt, Lq, D = xq_ref.shape
    Lk = xkv_ref.shape[1]
    H = num_heads
    Dh = D // H

    # Hoisted casts: one bf16 copy of each operand, reused by all projections.
    x_in = xq_ref[...]                                       # (Bt, Lq, D)
    xq_f = x_in.astype(jnp.float32).reshape(Bt * Lq, D)      # f32 residual
    xq_bf = x_in.reshape(Bt * Lq, D).astype(jnp.bfloat16)
    xkv_bf = xkv_ref[...].reshape(Bt * Lk, D).astype(jnp.bfloat16)
    neg = mask_ref[...].astype(jnp.float32) * _NEG_INF       # (Bt, 1, Lk) additive mask

    vecs = vecs_ref[...]                                     # (16, D) f32, packed
    bq, bk, bv, bo = (vecs[_VEC_BQ:_VEC_BQ + 1], vecs[_VEC_BK:_VEC_BK + 1],
                      vecs[_VEC_BV:_VEC_BV + 1], vecs[_VEC_BO:_VEC_BO + 1])
    g1, be1 = vecs[_VEC_LN1G:_VEC_LN1G + 1], vecs[_VEC_LN1B:_VEC_LN1B + 1]
    b2 = vecs[_VEC_B2:_VEC_B2 + 1]
    g2, be2 = vecs[_VEC_LN2G:_VEC_LN2G + 1], vecs[_VEC_LN2B:_VEC_LN2B + 1]

    # Full-width Q/K/V projections with M = Bt*Lq rows (batch folded into M).
    # bf16 MXU matmuls, f32 accumulation.  1/sqrt(Dh) is folded into wq at init.
    q = jnp.dot(xq_bf, wq_ref[...], preferred_element_type=jnp.float32) + bq
    k = jnp.dot(xkv_bf, wk_ref[...], preferred_element_type=jnp.float32) + bk
    v = jnp.dot(xkv_bf, wv_ref[...], preferred_element_type=jnp.float32) + bv

    q3 = q.reshape(Bt, Lq, D)
    k3 = k.reshape(Bt, Lk, D)
    v3 = v.reshape(Bt, Lk, D)

    # Attention: heads are 128-lane-aligned column slabs (free views, no
    # transpose relayout); batched einsums over the batch dim; per-head
    # context written straight into the matching column slab of the VMEM
    # scratch (no concatenate).
    for h in range(H):                                       # static, H is small
        lo = h * Dh
        qh = q3[:, :, lo:lo + Dh].astype(jnp.bfloat16)       # (Bt, Lq, Dh)
        kh = k3[:, :, lo:lo + Dh].astype(jnp.bfloat16)       # (Bt, Lk, Dh)
        vh = v3[:, :, lo:lo + Dh].astype(jnp.bfloat16)       # (Bt, Lk, Dh)

        s = jnp.einsum('bqd,bkd->bqk', qh, kh,
                       preferred_element_type=jnp.float32)   # (Bt, Lq, Lk) f32
        s = s + neg                                          # broadcast over q rows
        s = s - jnp.max(s, axis=-1, keepdims=True)
        p = jnp.exp(s)
        p = p * pl.reciprocal(jnp.sum(p, axis=-1, keepdims=True), approx=True)

        ch = jnp.einsum('bqk,bkd->bqd', p.astype(jnp.bfloat16), vh,
                        preferred_element_type=jnp.float32)  # (Bt, Lq, Dh)
        ctx_ref[:, :, lo:lo + Dh] = ch

    ctx = ctx_ref[...].reshape(Bt * Lq, D).astype(jnp.bfloat16)

    # Single full-width output projection.
    o = jnp.dot(ctx, wo_ref[...], preferred_element_type=jnp.float32) + bo

    # Add & Norm 1 (f32 statistics).
    y = _layer_norm(xq_f + o, g1, be1)

    # FFN + Add & Norm 2, fused (no HBM round-trip).
    h1 = jnp.dot(y.astype(jnp.bfloat16), w1_ref[...],
                 preferred_element_type=jnp.float32) + b1_ref[...]
    h1 = jnp.maximum(h1, 0.0)
    o2 = jnp.dot(h1.astype(jnp.bfloat16), w2_ref[...],
                 preferred_element_type=jnp.float32) + b2
    z = _layer_norm(y + o2, g2, be2)

    out_ref[...] = z.reshape(Bt, Lq, D).astype(out_ref.dtype)


# ---------------------------------------------------------------------------
# Sizing helpers
# ---------------------------------------------------------------------------
def _pick_batch_block(B, Lq, max_rows=512):
    """Largest divisor of B whose Bt*Lq row count targets a full MXU tile
    (~256 rows), preferring >= 2 grid steps so v7x's two TCs both get work."""
    divisors = [d for d in range(1, B + 1) if B % d == 0 and d * Lq <= max_rows]
    if not divisors:
        return 1
    multi = [d for d in divisors if B // d >= 2]
    pool = multi if multi else divisors
    return max(pool, key=lambda d: min(d * Lq, 256))


def _vmem_limit_bytes(Bt, Lq, Lk, D, F):
    """Derive a VMEM budget from the actual resident bytes (weights single-
    buffered via Buffered(1), I/O double-buffered) + 2x headroom, clamped to a
    range that is safe on every generation (v7x has 64 MiB physical per TC)."""
    bf, f4 = 2, 4
    weights = (4 * D * D + 2 * D * F) * bf                 # single-buffered
    vecs = _NUM_VEC_ROWS * D * f4 + F * f4
    io = 2 * f4 * (Bt * Lq * D + Bt * Lk * D + Bt * Lk) + 2 * bf * Bt * Lq * D
    scratch = Bt * Lq * D * f4                             # ctx scratch
    work = f4 * (3 * Bt * max(Lq, Lk) * D + Bt * Lq * F + 4 * Bt * Lq * D)
    est = weights + vecs + io + scratch + work
    return int(min(max(2 * est, 24 * 1024 * 1024), 56 * 1024 * 1024))


# ---------------------------------------------------------------------------
# pallas_call wrapper (one stream, one layer, attention + FFN fused)
# ---------------------------------------------------------------------------
def dual_stream_sublayer(xq, xkv, mask3, p, *, batch_block=None):
    B, Lq, D = xq.shape
    Lk = xkv.shape[1]
    F = p["w1"].shape[1]
    Bt = batch_block if batch_block is not None else _pick_batch_block(B, Lq)
    assert B % Bt == 0

    kernel = functools.partial(_fused_stream_kernel, num_heads=p["num_heads"])
    args = (xq, xkv, mask3,
            p["wq"], p["wk"], p["wv"], p["wo"], p["w1"], p["w2"],
            p["vecs"], p["b1"])

    def build(single_buffer_weights):
        def const2(shape):
            if single_buffer_weights:
                return pl.BlockSpec(shape, lambda b: (0, 0),
                                    pipeline_mode=pl.Buffered(1))
            return pl.BlockSpec(shape, lambda b: (0, 0))

        return pl.pallas_call(
            kernel,
            out_shape=jax.ShapeDtypeStruct((B, Lq, D), jnp.bfloat16),
            grid=(B // Bt,),
            in_specs=[
                pl.BlockSpec((Bt, Lq, D), lambda b: (b, 0, 0)),   # x_q
                pl.BlockSpec((Bt, Lk, D), lambda b: (b, 0, 0)),   # x_kv
                pl.BlockSpec((Bt, 1, Lk), lambda b: (b, 0, 0)),   # key padding mask
                const2((D, D)),                                   # Wq
                const2((D, D)),                                   # Wk
                const2((D, D)),                                   # Wv
                const2((D, D)),                                   # Wo
                const2((D, F)),                                   # W1
                const2((F, D)),                                   # W2
                const2((_NUM_VEC_ROWS, D)),                       # packed bias/LN vectors
                const2((1, F)),                                   # FFN bias 1
            ],
            out_specs=pl.BlockSpec((Bt, Lq, D), lambda b: (b, 0, 0)),
            scratch_shapes=[pltpu.VMEM((Bt, Lq, D), jnp.float32)],  # ctx
            compiler_params=pltpu.CompilerParams(
                dimension_semantics=("parallel",),
                vmem_limit_bytes=_vmem_limit_bytes(Bt, Lq, Lk, D, F)),
        )

    try:
        return build(True)(*args)
    except Exception:
        # TODO(synk): pl.Buffered(1) single-buffering rejected by this
        # JAX/Mosaic build; fall back to default double-buffered weight blocks.
        return build(False)(*args)


# ---------------------------------------------------------------------------
# Parameter construction (deterministic). Weights stored (in, out), bf16.
# ---------------------------------------------------------------------------
def init_stream_params(key, D, H, F):
    assert D % H == 0, "embed_dim must be divisible by num_heads"
    Dh = D // H
    # Keep head_dim lane-dense; for Dh=64 configs pack two heads per slab.
    assert Dh % 128 == 0, "head_dim must be a multiple of 128 (lane width)"
    ks = jax.random.split(key, 6)
    scale = 1.0 / math.sqrt(Dh)

    def w(k, din, dout, s=1.0):
        return (0.02 * s * jax.random.normal(k, (din, dout), jnp.float32)
                ).astype(jnp.bfloat16)

    # Packed (16, D) vector params: biases zero, LN gammas one.
    vecs = jnp.zeros((_NUM_VEC_ROWS, D), jnp.float32)
    vecs = vecs.at[_VEC_LN1G].set(1.0).at[_VEC_LN2G].set(1.0)

    return dict(
        num_heads=H,
        wq=w(ks[0], D, D, scale),            # 1/sqrt(Dh) folded into Q proj
        wk=w(ks[1], D, D),
        wv=w(ks[2], D, D),
        wo=w(ks[3], D, D),
        w1=w(ks[4], D, F),
        w2=w(ks[5], F, D),
        vecs=vecs,
        b1=jnp.zeros((1, F), jnp.float32),
    )


def init_dual_layer(key, kind, D, H, F):
    k1, k2 = jax.random.split(key)
    return dict(type=kind,
                s1=init_stream_params(k1, D, H, F),
                s2=init_stream_params(k2, D, H, F))


# ---------------------------------------------------------------------------
# DualTransformer forward (mirrors the PyTorch container)
# ---------------------------------------------------------------------------
def dual_transformer_forward(layers, seqs1, seqs2, padding_mask1, padding_mask2,
                             *, batch_block=None):
    B, L1, _ = seqs1.shape
    L2 = seqs2.shape[1]
    m1 = padding_mask1.astype(jnp.float32).reshape(B, 1, L1)   # 1.0 -> padded key
    m2 = padding_mask2.astype(jnp.float32).reshape(B, 1, L2)

    out1, out2 = seqs1, seqs2
    for layer in layers:
        if layer["type"] == "pdte":          # per-stream self-attention
            y1 = dual_stream_sublayer(out1, out1, m1, layer["s1"], batch_block=batch_block)
            y2 = dual_stream_sublayer(out2, out2, m2, layer["s2"], batch_block=batch_block)
        else:                                # "cdte": cross-stream attention
            y1 = dual_stream_sublayer(out1, out2, m2, layer["s1"], batch_block=batch_block)
            y2 = dual_stream_sublayer(out2, out1, m1, layer["s2"], batch_block=batch_block)
        out1, out2 = y1, y2                  # bf16 inter-layer activations
    return out1, out2


# ---------------------------------------------------------------------------
# Pure-JAX reference (same params / math, f32 everywhere)
# ---------------------------------------------------------------------------
def _ref_stream(xq, xkv, mask3, p):
    f32 = lambda a: a.astype(jnp.float32)
    H = p["num_heads"]
    B, Lq, D = xq.shape
    Lk = xkv.shape[1]
    Dh = D // H
    vecs = p["vecs"]
    bq, bk, bv, bo = vecs[_VEC_BQ], vecs[_VEC_BK], vecs[_VEC_BV], vecs[_VEC_BO]
    g1, be1 = vecs[_VEC_LN1G], vecs[_VEC_LN1B]
    b2 = vecs[_VEC_B2]
    g2, be2 = vecs[_VEC_LN2G], vecs[_VEC_LN2B]

    q = xq @ f32(p["wq"]) + bq
    k = xkv @ f32(p["wk"]) + bk
    v = xkv @ f32(p["wv"]) + bv
    qh = q.reshape(B, Lq, H, Dh).transpose(0, 2, 1, 3)
    kh = k.reshape(B, Lk, H, Dh).transpose(0, 2, 1, 3)
    vh = v.reshape(B, Lk, H, Dh).transpose(0, 2, 1, 3)
    s = jnp.einsum('bhqd,bhkd->bhqk', qh, kh) + _NEG_INF * mask3[:, :, None, :]
    a = jax.nn.softmax(s, axis=-1)
    ctx = jnp.einsum('bhqk,bhkd->bhqd', a, vh).transpose(0, 2, 1, 3).reshape(B, Lq, D)
    y = _layer_norm(xq + ctx @ f32(p["wo"]) + bo, g1, be1)
    h = jnp.maximum(y @ f32(p["w1"]) + p["b1"], 0.0)
    return _layer_norm(y + h @ f32(p["w2"]) + b2, g2, be2)


def dual_transformer_reference(layers, seqs1, seqs2, padding_mask1, padding_mask2):
    B, L1, _ = seqs1.shape
    L2 = seqs2.shape[1]
    m1 = padding_mask1.astype(jnp.float32).reshape(B, 1, L1)
    m2 = padding_mask2.astype(jnp.float32).reshape(B, 1, L2)
    out1, out2 = seqs1, seqs2
    for layer in layers:
        if layer["type"] == "pdte":
            y1 = _ref_stream(out1, out1, m1, layer["s1"])
            y2 = _ref_stream(out2, out2, m2, layer["s2"])
        else:
            y1 = _ref_stream(out1, out2, m2, layer["s1"])
            y2 = _ref_stream(out2, out1, m1, layer["s2"])
        out1, out2 = y1, y2
    return out1, out2


# ---------------------------------------------------------------------------
# Demo
# ---------------------------------------------------------------------------
if __name__ == "__main__":
    # Small but lane-dense config: D multiple of 128, Dh = 128.
    B, L1, L2, D, H, F = 2, 8, 16, 256, 2, 512

    key = jax.random.PRNGKey(0)
    k_s1, k_s2, k_layers = jax.random.split(key, 3)

    seqs1 = jax.random.normal(k_s1, (B, L1, D), dtype=jnp.float32)
    seqs2 = jax.random.normal(k_s2, (B, L2, D), dtype=jnp.float32)

    # key_padding_mask convention: True/1.0 -> padding position (ignored).
    padding_mask1 = jnp.zeros((B, L1), jnp.bool_).at[1, L1 - 2:].set(True)
    padding_mask2 = jnp.zeros((B, L2), jnp.bool_).at[1, L2 - 4:].set(True)

    # Layer stack from the class docstring example: [PDTE, CDTE, PDTE, CDTE].
    lk = jax.random.split(k_layers, 4)
    layers = [
        init_dual_layer(lk[0], "pdte", D, H, F),
        init_dual_layer(lk[1], "cdte", D, H, F),
        init_dual_layer(lk[2], "pdte", D, H, F),
        init_dual_layer(lk[3], "cdte", D, H, F),
    ]

    out1, out2 = dual_transformer_forward(layers, seqs1, seqs2,
                                          padding_mask1, padding_mask2)
    jax.block_until_ready((out1, out2))

    assert out1.shape == (B, L1, D) and out2.shape == (B, L2, D)
    assert bool(jnp.all(jnp.isfinite(out1))) and bool(jnp.all(jnp.isfinite(out2)))

    # Loose-tolerance check vs. pure-JAX f32 reference: the kernel uses bf16
    # MXU matmuls with f32 accumulation, an approx softmax reciprocal, and
    # bf16 inter-layer activations.
    ref1, ref2 = dual_transformer_reference(layers, seqs1, seqs2,
                                            padding_mask1, padding_mask2)
    err = max(float(jnp.max(jnp.abs(out1.astype(jnp.float32) - ref1))),
              float(jnp.max(jnp.abs(out2.astype(jnp.float32) - ref2))))
    assert err < 0.2, f"max abs error vs reference too large: {err}"

    print("KERNEL_OK")
</pallas_src>

<mosaic_0001>
module attributes {stable_mosaic.version = 11 : i64} {
  func.func @_fused_stream_kernel(%arg0: i32, %arg1: memref<1x8x256xf32, #tpu.memory_space<vmem>>, %arg2: memref<1x8x256xf32, #tpu.memory_space<vmem>>, %arg3: memref<1x1x8xf32, #tpu.memory_space<vmem>>, %arg4: memref<256x256xbf16, #tpu.memory_space<vmem>>, %arg5: memref<256x256xbf16, #tpu.memory_space<vmem>>, %arg6: memref<256x256xbf16, #tpu.memory_space<vmem>>, %arg7: memref<256x256xbf16, #tpu.memory_space<vmem>>, %arg8: memref<256x512xbf16, #tpu.memory_space<vmem>>, %arg9: memref<512x256xbf16, #tpu.memory_space<vmem>>, %arg10: memref<16x256xf32, #tpu.memory_space<vmem>>, %arg11: memref<1x512xf32, #tpu.memory_space<vmem>>, %arg12: memref<1x8x256xbf16, #tpu.memory_space<vmem>>, %arg13: memref<1x8x256xf32, #tpu.memory_space<vmem>>) attributes {dimension_semantics = [#tpu.dimension_semantics<parallel>], iteration_bounds = array<i64: 2>, scalar_prefetch = 0 : i64, scratch_operands = 1 : i64, tpu.core_type = #tpu.core_type<tc>, window_params = [{transform_indices = @transform_0, window_bounds = array<i64: 1, 8, 256>}, {transform_indices = @transform_1, window_bounds = array<i64: 1, 8, 256>}, {transform_indices = @transform_2, window_bounds = array<i64: 1, 1, 8>}, {pipeline_mode = #tpu.pipeline_mode<synchronous>, transform_indices = @transform_3, window_bounds = array<i64: 256, 256>}, {pipeline_mode = #tpu.pipeline_mode<synchronous>, transform_indices = @transform_4, window_bounds = array<i64: 256, 256>}, {pipeline_mode = #tpu.pipeline_mode<synchronous>, transform_indices = @transform_5, window_bounds = array<i64: 256, 256>}, {pipeline_mode = #tpu.pipeline_mode<synchronous>, transform_indices = @transform_6, window_bounds = array<i64: 256, 256>}, {pipeline_mode = #tpu.pipeline_mode<synchronous>, transform_indices = @transform_7, window_bounds = array<i64: 256, 512>}, {pipeline_mode = #tpu.pipeline_mode<synchronous>, transform_indices = @transform_8, window_bounds = array<i64: 512, 256>}, {pipeline_mode = #tpu.pipeline_mode<synchronous>, transform_indices = @transform_9, window_bounds = array<i64: 16, 256>}, {pipeline_mode = #tpu.pipeline_mode<synchronous>, transform_indices = @transform_10, window_bounds = array<i64: 1, 512>}, {transform_indices = @transform_11, window_bounds = array<i64: 1, 8, 256>}]} {
    %c0 = arith.constant 0 : index
    %c0_0 = arith.constant 0 : index
    %c0_1 = arith.constant 0 : index
    %0 = vector.load %arg1[%c0, %c0_0, %c0_1] : memref<1x8x256xf32, #tpu.memory_space<vmem>>, vector<1x8x256xf32>
    %1 = vector.shape_cast %0 : vector<1x8x256xf32> to vector<8x256xf32>
    %2 = vector.shape_cast %0 : vector<1x8x256xf32> to vector<8x256xf32>
    %3 = arith.truncf %2 : vector<8x256xf32> to vector<8x256xbf16>
    %c0_2 = arith.constant 0 : index
    %c0_3 = arith.constant 0 : index
    %c0_4 = arith.constant 0 : index
    %4 = vector.load %arg2[%c0_2, %c0_3, %c0_4] : memref<1x8x256xf32, #tpu.memory_space<vmem>>, vector<1x8x256xf32>
    %5 = vector.shape_cast %4 : vector<1x8x256xf32> to vector<8x256xf32>
    %6 = arith.truncf %5 : vector<8x256xf32> to vector<8x256xbf16>
    %c0_5 = arith.constant 0 : index
    %c0_6 = arith.constant 0 : index
    %c0_7 = arith.constant 0 : index
    %7 = vector.load %arg3[%c0_5, %c0_6, %c0_7] : memref<1x1x8xf32, #tpu.memory_space<vmem>>, vector<1x1x8xf32>
    %cst = arith.constant -1.000000e+09 : f32
    %8 = vector.broadcast %cst : f32 to vector<1x1x8xf32>
    %9 = arith.mulf %7, %8 : vector<1x1x8xf32>
    %c0_8 = arith.constant 0 : index
    %c0_9 = arith.constant 0 : index
    %10 = vector.load %arg10[%c0_8, %c0_9] : memref<16x256xf32, #tpu.memory_space<vmem>>, vector<16x256xf32>
    %11 = vector.extract_strided_slice %10 {offsets = [0, 0], sizes = [1, 256], strides = [1, 1]} : vector<16x256xf32> to vector<1x256xf32>
    %12 = vector.extract_strided_slice %10 {offsets = [1, 0], sizes = [1, 256], strides = [1, 1]} : vector<16x256xf32> to vector<1x256xf32>
    %13 = vector.extract_strided_slice %10 {offsets = [2, 0], sizes = [1, 256], strides = [1, 1]} : vector<16x256xf32> to vector<1x256xf32>
    %14 = vector.extract_strided_slice %10 {offsets = [3, 0], sizes = [1, 256], strides = [1, 1]} : vector<16x256xf32> to vector<1x256xf32>
    %15 = vector.extract_strided_slice %10 {offsets = [4, 0], sizes = [1, 256], strides = [1, 1]} : vector<16x256xf32> to vector<1x256xf32>
    %16 = vector.extract_strided_slice %10 {offsets = [5, 0], sizes = [1, 256], strides = [1, 1]} : vector<16x256xf32> to vector<1x256xf32>
    %17 = vector.extract_strided_slice %10 {offsets = [6, 0], sizes = [1, 256], strides = [1, 1]} : vector<16x256xf32> to vector<1x256xf32>
    %18 = vector.extract_strided_slice %10 {offsets = [7, 0], sizes = [1, 256], strides = [1, 1]} : vector<16x256xf32> to vector<1x256xf32>
    %19 = vector.extract_strided_slice %10 {offsets = [8, 0], sizes = [1, 256], strides = [1, 1]} : vector<16x256xf32> to vector<1x256xf32>
    %c0_10 = arith.constant 0 : index
    %c0_11 = arith.constant 0 : index
    %20 = vector.load %arg4[%c0_10, %c0_11] : memref<256x256xbf16, #tpu.memory_space<vmem>>, vector<256x256xbf16>
    %cst_12 = arith.constant dense<0.000000e+00> : vector<8x256xf32>
    %21 = tpu.matmul %3, %20, %cst_12 {dimension_numbers = #tpu.dot_dimension_numbers<[1], [0], [0], [1], [0, 0, 1, 1], [], []>} : vector<8x256xbf16>, vector<256x256xbf16>, vector<8x256xf32> -> vector<8x256xf32>
    %22 = vector.broadcast %11 : vector<1x256xf32> to vector<8x256xf32>
    %23 = arith.addf %21, %22 : vector<8x256xf32>
    %c0_13 = arith.constant 0 : index
    %c0_14 = arith.constant 0 : index
    %24 = vector.load %arg5[%c0_13, %c0_14] : memref<256x256xbf16, #tpu.memory_space<vmem>>, vector<256x256xbf16>
    %cst_15 = arith.constant dense<0.000000e+00> : vector<8x256xf32>
    %25 = tpu.matmul %6, %24, %cst_15 {dimension_numbers = #tpu.dot_dimension_numbers<[1], [0], [0], [1], [0, 0, 1, 1], [], []>} : vector<8x256xbf16>, vector<256x256xbf16>, vector<8x256xf32> -> vector<8x256xf32>
    %26 = vector.broadcast %12 : vector<1x256xf32> to vector<8x256xf32>
    %27 = arith.addf %25, %26 : vector<8x256xf32>
    %c0_16 = arith.constant 0 : index
    %c0_17 = arith.constant 0 : index
    %28 = vector.load %arg6[%c0_16, %c0_17] : memref<256x256xbf16, #tpu.memory_space<vmem>>, vector<256x256xbf16>
    %cst_18 = arith.constant dense<0.000000e+00> : vector<8x256xf32>
    %29 = tpu.matmul %6, %28, %cst_18 {dimension_numbers = #tpu.dot_dimension_numbers<[1], [0], [0], [1], [0, 0, 1, 1], [], []>} : vector<8x256xbf16>, vector<256x256xbf16>, vector<8x256xf32> -> vector<8x256xf32>
    %30 = vector.broadcast %13 : vector<1x256xf32> to vector<8x256xf32>
    %31 = arith.addf %29, %30 : vector<8x256xf32>
    %32 = vector.shape_cast %23 : vector<8x256xf32> to vector<1x8x256xf32>
    %33 = vector.shape_cast %27 : vector<8x256xf32> to vector<1x8x256xf32>
    %34 = vector.shape_cast %31 : vector<8x256xf32> to vector<1x8x256xf32>
    %35 = vector.extract_strided_slice %32 {offsets = [0, 0, 0], sizes = [1, 8, 128], strides = [1, 1, 1]} : vector<1x8x256xf32> to vector<1x8x128xf32>
    %36 = arith.truncf %35 : vector<1x8x128xf32> to vector<1x8x128xbf16>
    %37 = vector.extract_strided_slice %33 {offsets = [0, 0, 0], sizes = [1, 8, 128], strides = [1, 1, 1]} : vector<1x8x256xf32> to vector<1x8x128xf32>
    %38 = arith.truncf %37 : vector<1x8x128xf32> to vector<1x8x128xbf16>
    %39 = vector.extract_strided_slice %34 {offsets = [0, 0, 0], sizes = [1, 8, 128], strides = [1, 1, 1]} : vector<1x8x256xf32> to vector<1x8x128xf32>
    %40 = arith.truncf %39 : vector<1x8x128xf32> to vector<1x8x128xbf16>
    "tpu.trace_start"() <{level = 10 : i32, message = "bqd,bkd->bqk"}> : () -> ()
    %cst_19 = arith.constant dense<0.000000e+00> : vector<1x8x8xf32>
    %41 = tpu.matmul %36, %38, %cst_19 {dimension_numbers = #tpu.dot_dimension_numbers<[2], [2], [1], [1], [0, 0, 0, 1, 1, 1], [0], [0]>} : vector<1x8x128xbf16>, vector<1x8x128xbf16>, vector<1x8x8xf32> -> vector<1x8x8xf32>
    "tpu.trace_stop"() : () -> ()
    %42 = vector.broadcast %9 : vector<1x1x8xf32> to vector<1x8x8xf32>
    %43 = arith.addf %41, %42 : vector<1x8x8xf32>
    %cst_20 = arith.constant dense<0xFF800000> : vector<1x8xf32>
    %44 = vector.multi_reduction <maximumf>, %43, %cst_20 [2] : vector<1x8x8xf32> to vector<1x8xf32>
    %45 = vector.shape_cast %44 : vector<1x8xf32> to vector<1x8x1xf32>
    %46 = vector.broadcast %45 : vector<1x8x1xf32> to vector<1x8x8xf32>
    %47 = arith.subf %43, %46 : vector<1x8x8xf32>
    %48 = math.exp %47 : vector<1x8x8xf32>
    %cst_21 = arith.constant dense<0.000000e+00> : vector<1x8xf32>
    %49 = vector.multi_reduction <add>, %48, %cst_21 [2] : vector<1x8x8xf32> to vector<1x8xf32>
    %50 = vector.shape_cast %49 : vector<1x8xf32> to vector<1x8x1xf32>
    %51 = tpu.reciprocal %50 {approx = true} : vector<1x8x1xf32> -> vector<1x8x1xf32>
    %52 = vector.broadcast %51 : vector<1x8x1xf32> to vector<1x8x8xf32>
    %53 = arith.mulf %48, %52 : vector<1x8x8xf32>
    %54 = arith.truncf %53 : vector<1x8x8xf32> to vector<1x8x8xbf16>
    "tpu.trace_start"() <{level = 10 : i32, message = "bqk,bkd->bqd"}> : () -> ()
    %cst_22 = arith.constant dense<0.000000e+00> : vector<1x8x128xf32>
    %55 = tpu.matmul %54, %40, %cst_22 {dimension_numbers = #tpu.dot_dimension_numbers<[2], [1], [1], [2], [0, 0, 0, 1, 1, 2], [0], [0]>} : vector<1x8x8xbf16>, vector<1x8x128xbf16>, vector<1x8x128xf32> -> vector<1x8x128xf32>
    "tpu.trace_stop"() : () -> ()
    %c0_23 = arith.constant 0 : index
    %c0_24 = arith.constant 0 : index
    %c0_25 = arith.constant 0 : index
    %56 = vector.load %arg13[%c0_23, %c0_24, %c0_25] : memref<1x8x256xf32, #tpu.memory_space<vmem>>, vector<1x8x128xf32>
    tpu.vector_store %arg13[%c0_23, %c0_24, %c0_25], %55 {strides = array<i32>} : memref<1x8x256xf32, #tpu.memory_space<vmem>>, vector<1x8x128xf32>,
    %57 = vector.extract_strided_slice %32 {offsets = [0, 0, 128], sizes = [1, 8, 128], strides = [1, 1, 1]} : vector<1x8x256xf32> to vector<1x8x128xf32>
    %58 = arith.truncf %57 : vector<1x8x128xf32> to vector<1x8x128xbf16>
    %59 = vector.extract_strided_slice %33 {offsets = [0, 0, 128], sizes = [1, 8, 128], strides = [1, 1, 1]} : vector<1x8x256xf32> to vector<1x8x128xf32>
    %60 = arith.truncf %59 : vector<1x8x128xf32> to vector<1x8x128xbf16>
    %61 = vector.extract_strided_slice %34 {offsets = [0, 0, 128], sizes = [1, 8, 128], strides = [1, 1, 1]} : vector<1x8x256xf32> to vector<1x8x128xf32>
    %62 = arith.truncf %61 : vector<1x8x128xf32> to vector<1x8x128xbf16>
    "tpu.trace_start"() <{level = 10 : i32, message = "bqd,bkd->bqk"}> : () -> ()
    %cst_26 = arith.constant dense<0.000000e+00> : vector<1x8x8xf32>
    %63 = tpu.matmul %58, %60, %cst_26 {dimension_numbers = #tpu.dot_dimension_numbers<[2], [2], [1], [1], [0, 0, 0, 1, 1, 1], [0], [0]>} : vector<1x8x128xbf16>, vector<1x8x128xbf16>, vector<1x8x8xf32> -> vector<1x8x8xf32>
    "tpu.trace_stop"() : () -> ()
    %64 = vector.broadcast %9 : vector<1x1x8xf32> to vector<1x8x8xf32>
    %65 = arith.addf %63, %64 : vector<1x8x8xf32>
    %cst_27 = arith.constant dense<0xFF800000> : vector<1x8xf32>
    %66 = vector.multi_reduction <maximumf>, %65, %cst_27 [2] : vector<1x8x8xf32> to vector<1x8xf32>
    %67 = vector.shape_cast %66 : vector<1x8xf32> to vector<1x8x1xf32>
    %68 = vector.broadcast %67 : vector<1x8x1xf32> to vector<1x8x8xf32>
    %69 = arith.subf %65, %68 : vector<1x8x8xf32>
    %70 = math.exp %69 : vector<1x8x8xf32>
    %cst_28 = arith.constant dense<0.000000e+00> : vector<1x8xf32>
    %71 = vector.multi_reduction <add>, %70, %cst_28 [2] : vector<1x8x8xf32> to vector<1x8xf32>
    %72 = vector.shape_cast %71 : vector<1x8xf32> to vector<1x8x1xf32>
    %73 = tpu.reciprocal %72 {approx = true} : vector<1x8x1xf32> -> vector<1x8x1xf32>
    %74 = vector.broadcast %73 : vector<1x8x1xf32> to vector<1x8x8xf32>
    %75 = arith.mulf %70, %74 : vector<1x8x8xf32>
    %76 = arith.truncf %75 : vector<1x8x8xf32> to vector<1x8x8xbf16>
    "tpu.trace_start"() <{level = 10 : i32, message = "bqk,bkd->bqd"}> : () -> ()
    %cst_29 = arith.constant dense<0.000000e+00> : vector<1x8x128xf32>
    %77 = tpu.matmul %76, %62, %cst_29 {dimension_numbers = #tpu.dot_dimension_numbers<[2], [1], [1], [2], [0, 0, 0, 1, 1, 2], [0], [0]>} : vector<1x8x8xbf16>, vector<1x8x128xbf16>, vector<1x8x128xf32> -> vector<1x8x128xf32>
    "tpu.trace_stop"() : () -> ()
    %c0_30 = arith.constant 0 : index
    %c0_31 = arith.constant 0 : index
    %c128 = arith.constant 128 : index
    %78 = vector.load %arg13[%c0_30, %c0_31, %c128] : memref<1x8x256xf32, #tpu.memory_space<vmem>>, vector<1x8x128xf32>
    tpu.vector_store %arg13[%c0_30, %c0_31, %c128], %77 {strides = array<i32>} : memref<1x8x256xf32, #tpu.memory_space<vmem>>, vector<1x8x128xf32>,
    %c0_32 = arith.constant 0 : index
    %c0_33 = arith.constant 0 : index
    %c0_34 = arith.constant 0 : index
    %79 = vector.load %arg13[%c0_32, %c0_33, %c0_34] : memref<1x8x256xf32, #tpu.memory_space<vmem>>, vector<1x8x256xf32>
    %80 = vector.shape_cast %79 : vector<1x8x256xf32> to vector<8x256xf32>
    %81 = arith.truncf %80 : vector<8x256xf32> to vector<8x256xbf16>
    %c0_35 = arith.constant 0 : index
    %c0_36 = arith.constant 0 : index
    %82 = vector.load %arg7[%c0_35, %c0_36] : memref<256x256xbf16, #tpu.memory_space<vmem>>, vector<256x256xbf16>
    %cst_37 = arith.constant dense<0.000000e+00> : vector<8x256xf32>
    %83 = tpu.matmul %81, %82, %cst_37 {dimension_numbers = #tpu.dot_dimension_numbers<[1], [0], [0], [1], [0, 0, 1, 1], [], []>} : vector<8x256xbf16>, vector<256x256xbf16>, vector<8x256xf32> -> vector<8x256xf32>
    %84 = vector.broadcast %14 : vector<1x256xf32> to vector<8x256xf32>
    %85 = arith.addf %83, %84 : vector<8x256xf32>
    %86 = arith.addf %1, %85 : vector<8x256xf32>
    %cst_38 = arith.constant dense<0.000000e+00> : vector<8xf32>
    %87 = vector.multi_reduction <add>, %86, %cst_38 [1] : vector<8x256xf32> to vector<8xf32>
    %88 = vector.shape_cast %87 : vector<8xf32> to vector<8x1xf32>
    %cst_39 = arith.constant 2.560000e+02 : f32
    %89 = vector.broadcast %cst_39 : f32 to vector<8x1xf32>
    %90 = arith.divf %88, %89 : vector<8x1xf32>
    %91 = vector.broadcast %90 : vector<8x1xf32> to vector<8x256xf32>
    %92 = arith.subf %86, %91 : vector<8x256xf32>
    %93 = arith.mulf %92, %92 : vector<8x256xf32>
    %cst_40 = arith.constant dense<0.000000e+00> : vector<8xf32>
    %94 = vector.multi_reduction <add>, %93, %cst_40 [1] : vector<8x256xf32> to vector<8xf32>
    %95 = vector.shape_cast %94 : vector<8xf32> to vector<8x1xf32>
    %cst_41 = arith.constant 2.560000e+02 : f32
    %96 = vector.broadcast %cst_41 : f32 to vector<8x1xf32>
    %97 = arith.divf %95, %96 : vector<8x1xf32>
    %98 = vector.broadcast %90 : vector<8x1xf32> to vector<8x256xf32>
    %99 = arith.subf %86, %98 : vector<8x256xf32>
    %cst_42 = arith.constant 9.99999974E-6 : f32
    %100 = vector.broadcast %cst_42 : f32 to vector<8x1xf32>
    %101 = arith.addf %97, %100 : vector<8x1xf32>
    %102 = math.rsqrt %101 : vector<8x1xf32>
    %103 = vector.broadcast %102 : vector<8x1xf32> to vector<8x256xf32>
    %104 = arith.mulf %99, %103 : vector<8x256xf32>
    %105 = vector.broadcast %15 : vector<1x256xf32> to vector<8x256xf32>
    %106 = arith.mulf %104, %105 : vector<8x256xf32>
    %107 = vector.broadcast %16 : vector<1x256xf32> to vector<8x256xf32>
    %108 = arith.addf %106, %107 : vector<8x256xf32>
    %109 = arith.truncf %108 : vector<8x256xf32> to vector<8x256xbf16>
    %c0_43 = arith.constant 0 : index
    %c0_44 = arith.constant 0 : index
    %110 = vector.load %arg8[%c0_43, %c0_44] : memref<256x512xbf16, #tpu.memory_space<vmem>>, vector<256x512xbf16>
    %cst_45 = arith.constant dense<0.000000e+00> : vector<8x512xf32>
    %111 = tpu.matmul %109, %110, %cst_45 {dimension_numbers = #tpu.dot_dimension_numbers<[1], [0], [0], [1], [0, 0, 1, 1], [], []>} : vector<8x256xbf16>, vector<256x512xbf16>, vector<8x512xf32> -> vector<8x512xf32>
    %c0_46 = arith.constant 0 : index
    %c0_47 = arith.constant 0 : index
    %112 = vector.load %arg11[%c0_46, %c0_47] : memref<1x512xf32, #tpu.memory_space<vmem>>, vector<1x512xf32>
    %113 = vector.broadcast %112 : vector<1x512xf32> to vector<8x512xf32>
    %114 = arith.addf %111, %113 : vector<8x512xf32>
    %cst_48 = arith.constant 0.000000e+00 : f32
    %115 = vector.broadcast %cst_48 : f32 to vector<8x512xf32>
    %116 = arith.maximumf %114, %115 : vector<8x512xf32>
    %117 = arith.truncf %116 : vector<8x512xf32> to vector<8x512xbf16>
    %c0_49 = arith.constant 0 : index
    %c0_50 = arith.constant 0 : index
    %118 = vector.load %arg9[%c0_49, %c0_50] : memref<512x256xbf16, #tpu.memory_space<vmem>>, vector<512x256xbf16>
    %cst_51 = arith.constant dense<0.000000e+00> : vector<8x256xf32>
    %119 = tpu.matmul %117, %118, %cst_51 {dimension_numbers = #tpu.dot_dimension_numbers<[1], [0], [0], [1], [0, 0, 1, 1], [], []>} : vector<8x512xbf16>, vector<512x256xbf16>, vector<8x256xf32> -> vector<8x256xf32>
    %120 = vector.broadcast %17 : vector<1x256xf32> to vector<8x256xf32>
    %121 = arith.addf %119, %120 : vector<8x256xf32>
    %122 = arith.addf %108, %121 : vector<8x256xf32>
    %cst_52 = arith.constant dense<0.000000e+00> : vector<8xf32>
    %123 = vector.multi_reduction <add>, %122, %cst_52 [1] : vector<8x256xf32> to vector<8xf32>
    %124 = vector.shape_cast %123 : vector<8xf32> to vector<8x1xf32>
    %cst_53 = arith.constant 2.560000e+02 : f32
    %125 = vector.broadcast %cst_53 : f32 to vector<8x1xf32>
    %126 = arith.divf %124, %125 : vector<8x1xf32>
    %127 = vector.broadcast %126 : vector<8x1xf32> to vector<8x256xf32>
    %128 = arith.subf %122, %127 : vector<8x256xf32>
    %129 = arith.mulf %128, %128 : vector<8x256xf32>
    %cst_54 = arith.constant dense<0.000000e+00> : vector<8xf32>
    %130 = vector.multi_reduction <add>, %129, %cst_54 [1] : vector<8x256xf32> to vector<8xf32>
    %131 = vector.shape_cast %130 : vector<8xf32> to vector<8x1xf32>
    %cst_55 = arith.constant 2.560000e+02 : f32
    %132 = vector.broadcast %cst_55 : f32 to vector<8x1xf32>
    %133 = arith.divf %131, %132 : vector<8x1xf32>
    %134 = vector.broadcast %126 : vector<8x1xf32> to vector<8x256xf32>
    %135 = arith.subf %122, %134 : vector<8x256xf32>
    %cst_56 = arith.constant 9.99999974E-6 : f32
    %136 = vector.broadcast %cst_56 : f32 to vector<8x1xf32>
    %137 = arith.addf %133, %136 : vector<8x1xf32>
    %138 = math.rsqrt %137 : vector<8x1xf32>
    %139 = vector.broadcast %138 : vector<8x1xf32> to vector<8x256xf32>
    %140 = arith.mulf %135, %139 : vector<8x256xf32>
    %141 = vector.broadcast %18 : vector<1x256xf32> to vector<8x256xf32>
    %142 = arith.mulf %140, %141 : vector<8x256xf32>
    %143 = vector.broadcast %19 : vector<1x256xf32> to vector<8x256xf32>
    %144 = arith.addf %142, %143 : vector<8x256xf32>
    %145 = vector.shape_cast %144 : vector<8x256xf32> to vector<1x8x256xf32>
    %146 = arith.truncf %145 : vector<1x8x256xf32> to vector<1x8x256xbf16>
    %c0_57 = arith.constant 0 : index
    %c0_58 = arith.constant 0 : index
    %c0_59 = arith.constant 0 : index
    %147 = vector.load %arg12[%c0_57, %c0_58, %c0_59] : memref<1x8x256xbf16, #tpu.memory_space<vmem>>, vector<1x8x256xbf16>
    tpu.vector_store %arg12[%c0_57, %c0_58, %c0_59], %146 {strides = array<i32>} : memref<1x8x256xbf16, #tpu.memory_space<vmem>>, vector<1x8x256xbf16>,
    return
  }
  func.func @transform_0(%arg0: i32) -> (i32, i32, i32) {
    %c0_i32 = arith.constant 0 : i32
    %c0_i32_0 = arith.constant 0 : i32
    %c0_i32_1 = arith.constant 0 : i32
    return %arg0, %c0_i32, %c0_i32_0 : i32, i32, i32
  }
  func.func @transform_1(%arg0: i32) -> (i32, i32, i32) {
    %c0_i32 = arith.constant 0 : i32
    %c0_i32_0 = arith.constant 0 : i32
    %c0_i32_1 = arith.constant 0 : i32
    return %arg0, %c0_i32, %c0_i32_0 : i32, i32, i32
  }
  func.func @transform_2(%arg0: i32) -> (i32, i32, i32) {
    %c0_i32 = arith.constant 0 : i32
    %c0_i32_0 = arith.constant 0 : i32
    %c0_i32_1 = arith.constant 0 : i32
    return %arg0, %c0_i32, %c0_i32_0 : i32, i32, i32
  }
  func.func @transform_3(%arg0: i32) -> (i32, i32) {
    %c0_i32 = arith.constant 0 : i32
    %c0_i32_0 = arith.constant 0 : i32
    %c0_i32_1 = arith.constant 0 : i32
    return %c0_i32, %c0_i32_0 : i32, i32
  }
  func.func @transform_4(%arg0: i32) -> (i32, i32) {
    %c0_i32 = arith.constant 0 : i32
    %c0_i32_0 = arith.constant 0 : i32
    %c0_i32_1 = arith.constant 0 : i32
    return %c0_i32, %c0_i32_0 : i32, i32
  }
  func.func @transform_5(%arg0: i32) -> (i32, i32) {
    %c0_i32 = arith.constant 0 : i32
    %c0_i32_0 = arith.constant 0 : i32
    %c0_i32_1 = arith.constant 0 : i32
    return %c0_i32, %c0_i32_0 : i32, i32
  }
  func.func @transform_6(%arg0: i32) -> (i32, i32) {
    %c0_i32 = arith.constant 0 : i32
    %c0_i32_0 = arith.constant 0 : i32
    %c0_i32_1 = arith.constant 0 : i32
    return %c0_i32, %c0_i32_0 : i32, i32
  }
  func.func @transform_7(%arg0: i32) -> (i32, i32) {
    %c0_i32 = arith.constant 0 : i32
    %c0_i32_0 = arith.constant 0 : i32
    %c0_i32_1 = arith.constant 0 : i32
    return %c0_i32, %c0_i32_0 : i32, i32
  }
  func.func @transform_8(%arg0: i32) -> (i32, i32) {
    %c0_i32 = arith.constant 0 : i32
    %c0_i32_0 = arith.constant 0 : i32
    %c0_i32_1 = arith.constant 0 : i32
    return %c0_i32, %c0_i32_0 : i32, i32
  }
  func.func @transform_9(%arg0: i32) -> (i32, i32) {
    %c0_i32 = arith.constant 0 : i32
    %c0_i32_0 = arith.constant 0 : i32
    %c0_i32_1 = arith.constant 0 : i32
    return %c0_i32, %c0_i32_0 : i32, i32
  }
  func.func @transform_10(%arg0: i32) -> (i32, i32) {
    %c0_i32 = arith.constant 0 : i32
    %c0_i32_0 = arith.constant 0 : i32
    %c0_i32_1 = arith.constant 0 : i32
    return %c0_i32, %c0_i32_0 : i32, i32
  }
  func.func @transform_11(%arg0: i32) -> (i32, i32, i32) {
    %c0_i32 = arith.constant 0 : i32
    %c0_i32_0 = arith.constant 0 : i32
    %c0_i32_1 = arith.constant 0 : i32
    return %arg0, %c0_i32, %c0_i32_0 : i32, i32, i32
  }
}

module attributes {stable_mosaic.version = 11 : i64} {
  func.func @_fused_stream_kernel(%arg0: i32, %arg1: memref<1x8x256xf32, #tpu.memory_space<vmem>>, %arg2: memref<1x8x256xf32, #tpu.memory_space<vmem>>, %arg3: memref<1x1x8xf32, #tpu.memory_space<vmem>>, %arg4: memref<256x256xbf16, #tpu.memory_space<vmem>>, %arg5: memref<256x256xbf16, #tpu.memory_space<vmem>>, %arg6: memref<256x256xbf16, #tpu.memory_space<vmem>>, %arg7: memref<256x256xbf16, #tpu.memory_space<vmem>>, %arg8: memref<256x512xbf16, #tpu.memory_space<vmem>>, %arg9: memref<512x256xbf16, #tpu.memory_space<vmem>>, %arg10: memref<16x256xf32, #tpu.memory_space<vmem>>, %arg11: memref<1x512xf32, #tpu.memory_space<vmem>>, %arg12: memref<1x8x256xbf16, #tpu.memory_space<vmem>>, %arg13: memref<1x8x256xf32, #tpu.memory_space<vmem>>) attributes {dimension_semantics = [#tpu.dimension_semantics<parallel>], iteration_bounds = array<i64: 2>, scalar_prefetch = 0 : i64, scratch_operands = 1 : i64, tpu.core_type = #tpu.core_type<tc>, window_params = [{transform_indices = @transform_0, window_bounds = array<i64: 1, 8, 256>}, {transform_indices = @transform_1, window_bounds = array<i64: 1, 8, 256>}, {transform_indices = @transform_2, window_bounds = array<i64: 1, 1, 8>}, {pipeline_mode = #tpu.pipeline_mode<synchronous>, transform_indices = @transform_3, window_bounds = array<i64: 256, 256>}, {pipeline_mode = #tpu.pipeline_mode<synchronous>, transform_indices = @transform_4, window_bounds = array<i64: 256, 256>}, {pipeline_mode = #tpu.pipeline_mode<synchronous>, transform_indices = @transform_5, window_bounds = array<i64: 256, 256>}, {pipeline_mode = #tpu.pipeline_mode<synchronous>, transform_indices = @transform_6, window_bounds = array<i64: 256, 256>}, {pipeline_mode = #tpu.pipeline_mode<synchronous>, transform_indices = @transform_7, window_bounds = array<i64: 256, 512>}, {pipeline_mode = #tpu.pipeline_mode<synchronous>, transform_indices = @transform_8, window_bounds = array<i64: 512, 256>}, {pipeline_mode = #tpu.pipeline_mode<synchronous>, transform_indices = @transform_9, window_bounds = array<i64: 16, 256>}, {pipeline_mode = #tpu.pipeline_mode<synchronous>, transform_indices = @transform_10, window_bounds = array<i64: 1, 512>}, {transform_indices = @transform_11, window_bounds = array<i64: 1, 8, 256>}]} {
    %c0 = arith.constant 0 : index
    %c0_0 = arith.constant 0 : index
    %c0_1 = arith.constant 0 : index
    %0 = vector.load %arg1[%c0, %c0_0, %c0_1] : memref<1x8x256xf32, #tpu.memory_space<vmem>>, vector<1x8x256xf32>
    %1 = vector.shape_cast %0 : vector<1x8x256xf32> to vector<8x256xf32>
    %2 = vector.shape_cast %0 : vector<1x8x256xf32> to vector<8x256xf32>
    %3 = arith.truncf %2 : vector<8x256xf32> to vector<8x256xbf16>
    %c0_2 = arith.constant 0 : index
    %c0_3 = arith.constant 0 : index
    %c0_4 = arith.constant 0 : index
    %4 = vector.load %arg2[%c0_2, %c0_3, %c0_4] : memref<1x8x256xf32, #tpu.memory_space<vmem>>, vector<1x8x256xf32>
    %5 = vector.shape_cast %4 : vector<1x8x256xf32> to vector<8x256xf32>
    %6 = arith.truncf %5 : vector<8x256xf32> to vector<8x256xbf16>
    %c0_5 = arith.constant 0 : index
    %c0_6 = arith.constant 0 : index
    %c0_7 = arith.constant 0 : index
    %7 = vector.load %arg3[%c0_5, %c0_6, %c0_7] : memref<1x1x8xf32, #tpu.memory_space<vmem>>, vector<1x1x8xf32>
    %cst = arith.constant -1.000000e+09 : f32
    %8 = vector.broadcast %cst : f32 to vector<1x1x8xf32>
    %9 = arith.mulf %7, %8 : vector<1x1x8xf32>
    %c0_8 = arith.constant 0 : index
    %c0_9 = arith.constant 0 : index
    %10 = vector.load %arg10[%c0_8, %c0_9] : memref<16x256xf32, #tpu.memory_space<vmem>>, vector<16x256xf32>
    %11 = vector.extract_strided_slice %10 {offsets = [0, 0], sizes = [1, 256], strides = [1, 1]} : vector<16x256xf32> to vector<1x256xf32>
    %12 = vector.extract_strided_slice %10 {offsets = [1, 0], sizes = [1, 256], strides = [1, 1]} : vector<16x256xf32> to vector<1x256xf32>
    %13 = vector.extract_strided_slice %10 {offsets = [2, 0], sizes = [1, 256], strides = [1, 1]} : vector<16x256xf32> to vector<1x256xf32>
    %14 = vector.extract_strided_slice %10 {offsets = [3, 0], sizes = [1, 256], strides = [1, 1]} : vector<16x256xf32> to vector<1x256xf32>
    %15 = vector.extract_strided_slice %10 {offsets = [4, 0], sizes = [1, 256], strides = [1, 1]} : vector<16x256xf32> to vector<1x256xf32>
    %16 = vector.extract_strided_slice %10 {offsets = [5, 0], sizes = [1, 256], strides = [1, 1]} : vector<16x256xf32> to vector<1x256xf32>
    %17 = vector.extract_strided_slice %10 {offsets = [6, 0], sizes = [1, 256], strides = [1, 1]} : vector<16x256xf32> to vector<1x256xf32>
    %18 = vector.extract_strided_slice %10 {offsets = [7, 0], sizes = [1, 256], strides = [1, 1]} : vector<16x256xf32> to vector<1x256xf32>
    %19 = vector.extract_strided_slice %10 {offsets = [8, 0], sizes = [1, 256], strides = [1, 1]} : vector<16x256xf32> to vector<1x256xf32>
    %c0_10 = arith.constant 0 : index
    %c0_11 = arith.constant 0 : index
    %20 = vector.load %arg4[%c0_10, %c0_11] : memref<256x256xbf16, #tpu.memory_space<vmem>>, vector<256x256xbf16>
    %cst_12 = arith.constant dense<0.000000e+00> : vector<8x256xf32>
    %21 = tpu.matmul %3, %20, %cst_12 {dimension_numbers = #tpu.dot_dimension_numbers<[1], [0], [0], [1], [0, 0, 1, 1], [], []>} : vector<8x256xbf16>, vector<256x256xbf16>, vector<8x256xf32> -> vector<8x256xf32>
    %22 = vector.broadcast %11 : vector<1x256xf32> to vector<8x256xf32>
    %23 = arith.addf %21, %22 : vector<8x256xf32>
    %c0_13 = arith.constant 0 : index
    %c0_14 = arith.constant 0 : index
    %24 = vector.load %arg5[%c0_13, %c0_14] : memref<256x256xbf16, #tpu.memory_space<vmem>>, vector<256x256xbf16>
    %cst_15 = arith.constant dense<0.000000e+00> : vector<8x256xf32>
    %25 = tpu.matmul %6, %24, %cst_15 {dimension_numbers = #tpu.dot_dimension_numbers<[1], [0], [0], [1], [0, 0, 1, 1], [], []>} : vector<8x256xbf16>, vector<256x256xbf16>, vector<8x256xf32> -> vector<8x256xf32>
    %26 = vector.broadcast %12 : vector<1x256xf32> to vector<8x256xf32>
    %27 = arith.addf %25, %26 : vector<8x256xf32>
    %c0_16 = arith.constant 0 : index
    %c0_17 = arith.constant 0 : index
    %28 = vector.load %arg6[%c0_16, %c0_17] : memref<256x256xbf16, #tpu.memory_space<vmem>>, vector<256x256xbf16>
    %cst_18 = arith.constant dense<0.000000e+00> : vector<8x256xf32>
    %29 = tpu.matmul %6, %28, %cst_18 {dimension_numbers = #tpu.dot_dimension_numbers<[1], [0], [0], [1], [0, 0, 1, 1], [], []>} : vector<8x256xbf16>, vector<256x256xbf16>, vector<8x256xf32> -> vector<8x256xf32>
    %30 = vector.broadcast %13 : vector<1x256xf32> to vector<8x256xf32>
    %31 = arith.addf %29, %30 : vector<8x256xf32>
    %32 = vector.shape_cast %23 : vector<8x256xf32> to vector<1x8x256xf32>
    %33 = vector.shape_cast %27 : vector<8x256xf32> to vector<1x8x256xf32>
    %34 = vector.shape_cast %31 : vector<8x256xf32> to vector<1x8x256xf32>
    %35 = vector.extract_strided_slice %32 {offsets = [0, 0, 0], sizes = [1, 8, 128], strides = [1, 1, 1]} : vector<1x8x256xf32> to vector<1x8x128xf32>
    %36 = arith.truncf %35 : vector<1x8x128xf32> to vector<1x8x128xbf16>
    %37 = vector.extract_strided_slice %33 {offsets = [0, 0, 0], sizes = [1, 8, 128], strides = [1, 1, 1]} : vector<1x8x256xf32> to vector<1x8x128xf32>
    %38 = arith.truncf %37 : vector<1x8x128xf32> to vector<1x8x128xbf16>
    %39 = vector.extract_strided_slice %34 {offsets = [0, 0, 0], sizes = [1, 8, 128], strides = [1, 1, 1]} : vector<1x8x256xf32> to vector<1x8x128xf32>
    %40 = arith.truncf %39 : vector<1x8x128xf32> to vector<1x8x128xbf16>
    "tpu.trace_start"() <{level = 10 : i32, message = "bqd,bkd->bqk"}> : () -> ()
    %cst_19 = arith.constant dense<0.000000e+00> : vector<1x8x8xf32>
    %41 = tpu.matmul %36, %38, %cst_19 {dimension_numbers = #tpu.dot_dimension_numbers<[2], [2], [1], [1], [0, 0, 0, 1, 1, 1], [0], [0]>} : vector<1x8x128xbf16>, vector<1x8x128xbf16>, vector<1x8x8xf32> -> vector<1x8x8xf32>
    "tpu.trace_stop"() : () -> ()
    %42 = vector.broadcast %9 : vector<1x1x8xf32> to vector<1x8x8xf32>
    %43 = arith.addf %41, %42 : vector<1x8x8xf32>
    %cst_20 = arith.constant dense<0xFF800000> : vector<1x8xf32>
    %44 = vector.multi_reduction <maximumf>, %43, %cst_20 [2] : vector<1x8x8xf32> to vector<1x8xf32>
    %45 = vector.shape_cast %44 : vector<1x8xf32> to vector<1x8x1xf32>
    %46 = vector.broadcast %45 : vector<1x8x1xf32> to vector<1x8x8xf32>
    %47 = arith.subf %43, %46 : vector<1x8x8xf32>
    %48 = math.exp %47 : vector<1x8x8xf32>
    %cst_21 = arith.constant dense<0.000000e+00> : vector<1x8xf32>
    %49 = vector.multi_reduction <add>, %48, %cst_21 [2] : vector<1x8x8xf32> to vector<1x8xf32>
    %50 = vector.shape_cast %49 : vector<1x8xf32> to vector<1x8x1xf32>
    %51 = tpu.reciprocal %50 {approx = true} : vector<1x8x1xf32> -> vector<1x8x1xf32>
    %52 = vector.broadcast %51 : vector<1x8x1xf32> to vector<1x8x8xf32>
    %53 = arith.mulf %48, %52 : vector<1x8x8xf32>
    %54 = arith.truncf %53 : vector<1x8x8xf32> to vector<1x8x8xbf16>
    "tpu.trace_start"() <{level = 10 : i32, message = "bqk,bkd->bqd"}> : () -> ()
    %cst_22 = arith.constant dense<0.000000e+00> : vector<1x8x128xf32>
    %55 = tpu.matmul %54, %40, %cst_22 {dimension_numbers = #tpu.dot_dimension_numbers<[2], [1], [1], [2], [0, 0, 0, 1, 1, 2], [0], [0]>} : vector<1x8x8xbf16>, vector<1x8x128xbf16>, vector<1x8x128xf32> -> vector<1x8x128xf32>
    "tpu.trace_stop"() : () -> ()
    %c0_23 = arith.constant 0 : index
    %c0_24 = arith.constant 0 : index
    %c0_25 = arith.constant 0 : index
    %56 = vector.load %arg13[%c0_23, %c0_24, %c0_25] : memref<1x8x256xf32, #tpu.memory_space<vmem>>, vector<1x8x128xf32>
    tpu.vector_store %arg13[%c0_23, %c0_24, %c0_25], %55 {strides = array<i32>} : memref<1x8x256xf32, #tpu.memory_space<vmem>>, vector<1x8x128xf32>,
    %57 = vector.extract_strided_slice %32 {offsets = [0, 0, 128], sizes = [1, 8, 128], strides = [1, 1, 1]} : vector<1x8x256xf32> to vector<1x8x128xf32>
    %58 = arith.truncf %57 : vector<1x8x128xf32> to vector<1x8x128xbf16>
    %59 = vector.extract_strided_slice %33 {offsets = [0, 0, 128], sizes = [1, 8, 128], strides = [1, 1, 1]} : vector<1x8x256xf32> to vector<1x8x128xf32>
    %60 = arith.truncf %59 : vector<1x8x128xf32> to vector<1x8x128xbf16>
    %61 = vector.extract_strided_slice %34 {offsets = [0, 0, 128], sizes = [1, 8, 128], strides = [1, 1, 1]} : vector<1x8x256xf32> to vector<1x8x128xf32>
    %62 = arith.truncf %61 : vector<1x8x128xf32> to vector<1x8x128xbf16>
    "tpu.trace_start"() <{level = 10 : i32, message = "bqd,bkd->bqk"}> : () -> ()
    %cst_26 = arith.constant dense<0.000000e+00> : vector<1x8x8xf32>
    %63 = tpu.matmul %58, %60, %cst_26 {dimension_numbers = #tpu.dot_dimension_numbers<[2], [2], [1], [1], [0, 0, 0, 1, 1, 1], [0], [0]>} : vector<1x8x128xbf16>, vector<1x8x128xbf16>, vector<1x8x8xf32> -> vector<1x8x8xf32>
    "tpu.trace_stop"() : () -> ()
    %64 = vector.broadcast %9 : vector<1x1x8xf32> to vector<1x8x8xf32>
    %65 = arith.addf %63, %64 : vector<1x8x8xf32>
    %cst_27 = arith.constant dense<0xFF800000> : vector<1x8xf32>
    %66 = vector.multi_reduction <maximumf>, %65, %cst_27 [2] : vector<1x8x8xf32> to vector<1x8xf32>
    %67 = vector.shape_cast %66 : vector<1x8xf32> to vector<1x8x1xf32>
    %68 = vector.broadcast %67 : vector<1x8x1xf32> to vector<1x8x8xf32>
    %69 = arith.subf %65, %68 : vector<1x8x8xf32>
    %70 = math.exp %69 : vector<1x8x8xf32>
    %cst_28 = arith.constant dense<0.000000e+00> : vector<1x8xf32>
    %71 = vector.multi_reduction <add>, %70, %cst_28 [2] : vector<1x8x8xf32> to vector<1x8xf32>
    %72 = vector.shape_cast %71 : vector<1x8xf32> to vector<1x8x1xf32>
    %73 = tpu.reciprocal %72 {approx = true} : vector<1x8x1xf32> -> vector<1x8x1xf32>
    %74 = vector.broadcast %73 : vector<1x8x1xf32> to vector<1x8x8xf32>
    %75 = arith.mulf %70, %74 : vector<1x8x8xf32>
    %76 = arith.truncf %75 : vector<1x8x8xf32> to vector<1x8x8xbf16>
    "tpu.trace_start"() <{level = 10 : i32, message = "bqk,bkd->bqd"}> : () -> ()
    %cst_29 = arith.constant dense<0.000000e+00> : vector<1x8x128xf32>
    %77 = tpu.matmul %76, %62, %cst_29 {dimension_numbers = #tpu.dot_dimension_numbers<[2], [1], [1], [2], [0, 0, 0, 1, 1, 2], [0], [0]>} : vector<1x8x8xbf16>, vector<1x8x128xbf16>, vector<1x8x128xf32> -> vector<1x8x128xf32>
    "tpu.trace_stop"() : () -> ()
    %c0_30 = arith.constant 0 : index
    %c0_31 = arith.constant 0 : index
    %c128 = arith.constant 128 : index
    %78 = vector.load %arg13[%c0_30, %c0_31, %c128] : memref<1x8x256xf32, #tpu.memory_space<vmem>>, vector<1x8x128xf32>
    tpu.vector_store %arg13[%c0_30, %c0_31, %c128], %77 {strides = array<i32>} : memref<1x8x256xf32, #tpu.memory_space<vmem>>, vector<1x8x128xf32>,
    %c0_32 = arith.constant 0 : index
    %c0_33 = arith.constant 0 : index
    %c0_34 = arith.constant 0 : index
    %79 = vector.load %arg13[%c0_32, %c0_33, %c0_34] : memref<1x8x256xf32, #tpu.memory_space<vmem>>, vector<1x8x256xf32>
    %80 = vector.shape_cast %79 : vector<1x8x256xf32> to vector<8x256xf32>
    %81 = arith.truncf %80 : vector<8x256xf32> to vector<8x256xbf16>
    %c0_35 = arith.constant 0 : index
    %c0_36 = arith.constant 0 : index
    %82 = vector.load %arg7[%c0_35, %c0_36] : memref<256x256xbf16, #tpu.memory_space<vmem>>, vector<256x256xbf16>
    %cst_37 = arith.constant dense<0.000000e+00> : vector<8x256xf32>
    %83 = tpu.matmul %81, %82, %cst_37 {dimension_numbers = #tpu.dot_dimension_numbers<[1], [0], [0], [1], [0, 0, 1, 1], [], []>} : vector<8x256xbf16>, vector<256x256xbf16>, vector<8x256xf32> -> vector<8x256xf32>
    %84 = vector.broadcast %14 : vector<1x256xf32> to vector<8x256xf32>
    %85 = arith.addf %83, %84 : vector<8x256xf32>
    %86 = arith.addf %1, %85 : vector<8x256xf32>
    %cst_38 = arith.constant dense<0.000000e+00> : vector<8xf32>
    %87 = vector.multi_reduction <add>, %86, %cst_38 [1] : vector<8x256xf32> to vector<8xf32>
    %88 = vector.shape_cast %87 : vector<8xf32> to vector<8x1xf32>
    %cst_39 = arith.constant 2.560000e+02 : f32
    %89 = vector.broadcast %cst_39 : f32 to vector<8x1xf32>
    %90 = arith.divf %88, %89 : vector<8x1xf32>
    %91 = vector.broadcast %90 : vector<8x1xf32> to vector<8x256xf32>
    %92 = arith.subf %86, %91 : vector<8x256xf32>
    %93 = arith.mulf %92, %92 : vector<8x256xf32>
    %cst_40 = arith.constant dense<0.000000e+00> : vector<8xf32>
    %94 = vector.multi_reduction <add>, %93, %cst_40 [1] : vector<8x256xf32> to vector<8xf32>
    %95 = vector.shape_cast %94 : vector<8xf32> to vector<8x1xf32>
    %cst_41 = arith.constant 2.560000e+02 : f32
    %96 = vector.broadcast %cst_41 : f32 to vector<8x1xf32>
    %97 = arith.divf %95, %96 : vector<8x1xf32>
    %98 = vector.broadcast %90 : vector<8x1xf32> to vector<8x256xf32>
    %99 = arith.subf %86, %98 : vector<8x256xf32>
    %cst_42 = arith.constant 9.99999974E-6 : f32
    %100 = vector.broadcast %cst_42 : f32 to vector<8x1xf32>
    %101 = arith.addf %97, %100 : vector<8x1xf32>
    %102 = math.rsqrt %101 : vector<8x1xf32>
    %103 = vector.broadcast %102 : vector<8x1xf32> to vector<8x256xf32>
    %104 = arith.mulf %99, %103 : vector<8x256xf32>
    %105 = vector.broadcast %15 : vector<1x256xf32> to vector<8x256xf32>
    %106 = arith.mulf %104, %105 : vector<8x256xf32>
    %107 = vector.broadcast %16 : vector<1x256xf32> to vector<8x256xf32>
    %108 = arith.addf %106, %107 : vector<8x256xf32>
    %109 = arith.truncf %108 : vector<8x256xf32> to vector<8x256xbf16>
    %c0_43 = arith.constant 0 : index
    %c0_44 = arith.constant 0 : index
    %110 = vector.load %arg8[%c0_43, %c0_44] : memref<256x512xbf16, #tpu.memory_space<vmem>>, vector<256x512xbf16>
    %cst_45 = arith.constant dense<0.000000e+00> : vector<8x512xf32>
    %111 = tpu.matmul %109, %110, %cst_45 {dimension_numbers = #tpu.dot_dimension_numbers<[1], [0], [0], [1], [0, 0, 1, 1], [], []>} : vector<8x256xbf16>, vector<256x512xbf16>, vector<8x512xf32> -> vector<8x512xf32>
    %c0_46 = arith.constant 0 : index
    %c0_47 = arith.constant 0 : index
    %112 = vector.load %arg11[%c0_46, %c0_47] : memref<1x512xf32, #tpu.memory_space<vmem>>, vector<1x512xf32>
    %113 = vector.broadcast %112 : vector<1x512xf32> to vector<8x512xf32>
    %114 = arith.addf %111, %113 : vector<8x512xf32>
    %cst_48 = arith.constant 0.000000e+00 : f32
    %115 = vector.broadcast %cst_48 : f32 to vector<8x512xf32>
    %116 = arith.maximumf %114, %115 : vector<8x512xf32>
    %117 = arith.truncf %116 : vector<8x512xf32> to vector<8x512xbf16>
    %c0_49 = arith.constant 0 : index
    %c0_50 = arith.constant 0 : index
    %118 = vector.load %arg9[%c0_49, %c0_50] : memref<512x256xbf16, #tpu.memory_space<vmem>>, vector<512x256xbf16>
    %cst_51 = arith.constant dense<0.000000e+00> : vector<8x256xf32>
    %119 = tpu.matmul %117, %118, %cst_51 {dimension_numbers = #tpu.dot_dimension_numbers<[1], [0], [0], [1], [0, 0, 1, 1], [], []>} : vector<8x512xbf16>, vector<512x256xbf16>, vector<8x256xf32> -> vector<8x256xf32>
    %120 = vector.broadcast %17 : vector<1x256xf32> to vector<8x256xf32>
    %121 = arith.addf %119, %120 : vector<8x256xf32>
    %122 = arith.addf %108, %121 : vector<8x256xf32>
    %cst_52 = arith.constant dense<0.000000e+00> : vector<8xf32>
    %123 = vector.multi_reduction <add>, %122, %cst_52 [1] : vector<8x256xf32> to vector<8xf32>
    %124 = vector.shape_cast %123 : vector<8xf32> to vector<8x1xf32>
    %cst_53 = arith.constant 2.560000e+02 : f32
    %125 = vector.broadcast %cst_53 : f32 to vector<8x1xf32>
    %126 = arith.divf %124, %125 : vector<8x1xf32>
    %127 = vector.broadcast %126 : vector<8x1xf32> to vector<8x256xf32>
    %128 = arith.subf %122, %127 : vector<8x256xf32>
    %129 = arith.mulf %128, %128 : vector<8x256xf32>
    %cst_54 = arith.constant dense<0.000000e+00> : vector<8xf32>
    %130 = vector.multi_reduction <add>, %129, %cst_54 [1] : vector<8x256xf32> to vector<8xf32>
    %131 = vector.shape_cast %130 : vector<8xf32> to vector<8x1xf32>
    %cst_55 = arith.constant 2.560000e+02 : f32
    %132 = vector.broadcast %cst_55 : f32 to vector<8x1xf32>
    %133 = arith.divf %131, %132 : vector<8x1xf32>
    %134 = vector.broadcast %126 : vector<8x1xf32> to vector<8x256xf32>
    %135 = arith.subf %122, %134 : vector<8x256xf32>
    %cst_56 = arith.constant 9.99999974E-6 : f32
    %136 = vector.broadcast %cst_56 : f32 to vector<8x1xf32>
    %137 = arith.addf %133, %136 : vector<8x1xf32>
    %138 = math.rsqrt %137 : vector<8x1xf32>
    %139 = vector.broadcast %138 : vector<8x1xf32> to vector<8x256xf32>
    %140 = arith.mulf %135, %139 : vector<8x256xf32>
    %141 = vector.broadcast %18 : vector<1x256xf32> to vector<8x256xf32>
    %142 = arith.mulf %140, %141 : vector<8x256xf32>
    %143 = vector.broadcast %19 : vector<1x256xf32> to vector<8x256xf32>
    %144 = arith.addf %142, %143 : vector<8x256xf32>
    %145 = vector.shape_cast %144 : vector<8x256xf32> to vector<1x8x256xf32>
    %146 = arith.truncf %145 : vector<1x8x256xf32> to vector<1x8x256xbf16>
    %c0_57 = arith.constant 0 : index
    %c0_58 = arith.constant 0 : index
    %c0_59 = arith.constant 0 : index
    %147 = vector.load %arg12[%c0_57, %c0_58, %c0_59] : memref<1x8x256xbf16, #tpu.memory_space<vmem>>, vector<1x8x256xbf16>
    tpu.vector_store %arg12[%c0_57, %c0_58, %c0_59], %146 {strides = array<i32>} : memref<1x8x256xbf16, #tpu.memory_space<vmem>>, vector<1x8x256xbf16>,
    return
  }
  func.func @transform_0(%arg0: i32) -> (i32, i32, i32) {
    %c0_i32 = arith.constant 0 : i32
    %c0_i32_0 = arith.constant 0 : i32
    %c0_i32_1 = arith.constant 0 : i32
    return %arg0, %c0_i32, %c0_i32_0 : i32, i32, i32
  }
  func.func @transform_1(%arg0: i32) -> (i32, i32, i32) {
    %c0_i32 = arith.constant 0 : i32
    %c0_i32_0 = arith.constant 0 : i32
    %c0_i32_1 = arith.constant 0 : i32
    return %arg0, %c0_i32, %c0_i32_0 : i32, i32, i32
  }
  func.func @transform_2(%arg0: i32) -> (i32, i32, i32) {
    %c0_i32 = arith.constant 0 : i32
    %c0_i32_0 = arith.constant 0 : i32
    %c0_i32_1 = arith.constant 0 : i32
    return %arg0, %c0_i32, %c0_i32_0 : i32, i32, i32
  }
  func.func @transform_3(%arg0: i32) -> (i32, i32) {
    %c0_i32 = arith.constant 0 : i32
    %c0_i32_0 = arith.constant 0 : i32
    %c0_i32_1 = arith.constant 0 : i32
    return %c0_i32, %c0_i32_0 : i32, i32
  }
  func.func @transform_4(%arg0: i32) -> (i32, i32) {
    %c0_i32 = arith.constant 0 : i32
    %c0_i32_0 = arith.constant 0 : i32
    %c0_i32_1 = arith.constant 0 : i32
    return %c0_i32, %c0_i32_0 : i32, i32
  }
  func.func @transform_5(%arg0: i32) -> (i32, i32) {
    %c0_i32 = arith.constant 0 : i32
    %c0_i32_0 = arith.constant 0 : i32
    %c0_i32_1 = arith.constant 0 : i32
    return %c0_i32, %c0_i32_0 : i32, i32
  }
  func.func @transform_6(%arg0: i32) -> (i32, i32) {
    %c0_i32 = arith.constant 0 : i32
    %c0_i32_0 = arith.constant 0 : i32
    %c0_i32_1 = arith.constant 0 : i32
    return %c0_i32, %c0_i32_0 : i32, i32
  }
  func.func @transform_7(%arg0: i32) -> (i32, i32) {
    %c0_i32 = arith.constant 0 : i32
    %c0_i32_0 = arith.constant 0 : i32
    %c0_i32_1 = arith.constant 0 : i32
    return %c0_i32, %c0_i32_0 : i32, i32
  }
  func.func @transform_8(%arg0: i32) -> (i32, i32) {
    %c0_i32 = arith.constant 0 : i32
    %c0_i32_0 = arith.constant 0 : i32
    %c0_i32_1 = arith.constant 0 : i32
    return %c0_i32, %c0_i32_0 : i32, i32
  }
  func.func @transform_9(%arg0: i32) -> (i32, i32) {
    %c0_i32 = arith.constant 0 : i32
    %c0_i32_0 = arith.constant 0 : i32
    %c0_i32_1 = arith.constant 0 : i32
    return %c0_i32, %c0_i32_0 : i32, i32
  }
  func.func @transform_10(%arg0: i32) -> (i32, i32) {
    %c0_i32 = arith.constant 0 : i32
    %c0_i32_0 = arith.constant 0 : i32
    %c0_i32_1 = arith.constant 0 : i32
    return %c0_i32, %c0_i32_0 : i32, i32
  }
  func.func @transform_11(%arg0: i32) -> (i32, i32, i32) {
    %c0_i32 = arith.constant 0 : i32
    %c0_i32_0 = arith.constant 0 : i32
    %c0_i32_1 = arith.constant 0 : i32
    return %arg0, %c0_i32, %c0_i32_0 : i32, i32, i32
  }
}

</mosaic_0001>

<llo_original>
// kernel: tpu_custom_call.1
$region0: #{tpu_custom_call.1}
  #allocation0 [shape = 'u32[]', space=smem, size = 0x4, offset = 0x4, fixed_abs, tag = 'smem constant byte address 0x4 - core index']
  #allocation1 [shape = 'u32[72,128]{1,0:T(1,128)}', space=vmem, size = 0x9000, scoped, tag = 'internal scratch']
  #allocation2 [shape = 'f32[1,8,256]{2,1,0:T(8,128)}', space=vmem, size = 0x2000, scoped, tag = 'scratch operand']
  %s0 = inlined_call_operand.hbm [shape: f32[2,8,256], index: 0, kind: input, shape index: {}]
  %s1 = inlined_call_operand.hbm [shape: f32[2,8,256], index: 1, kind: input, shape index: {}]
  %s2 = inlined_call_operand.hbm [shape: f32[2,1,8], index: 2, kind: input, shape index: {}]
  %s3 = inlined_call_operand.hbm [shape: bf16[256,256], index: 3, kind: input, shape index: {}]
  %s4 = inlined_call_operand.hbm [shape: bf16[256,256], index: 4, kind: input, shape index: {}]
  %s5 = inlined_call_operand.hbm [shape: bf16[256,256], index: 5, kind: input, shape index: {}]
  %s6 = inlined_call_operand.hbm [shape: bf16[256,256], index: 6, kind: input, shape index: {}]
  %s7 = inlined_call_operand.hbm [shape: bf16[256,512], index: 7, kind: input, shape index: {}]
  %s8 = inlined_call_operand.hbm [shape: bf16[512,256], index: 8, kind: input, shape index: {}]
  %s9 = inlined_call_operand.hbm [shape: f32[16,256], index: 9, kind: input, shape index: {}]
  %s10 = inlined_call_operand.vmem [shape: f32[1,512], index: 10, kind: input, shape index: {}]
  %s11 = inlined_call_operand.hbm [shape: bf16[2,8,256], index: 11, kind: output, shape index: {}]
  %s12 = sld [smem:[#allocation0]]
  $region117: #{tpu_custom_call.1} parent=0
    _
  %s14 = ssub.s32 1, %s12
  %s15 = scalar_select 0, %s14, %s12
  $region1: #{tpu_custom_call.1} parent=0
    #allocation3 [shape = 'u8[16384]{0}', space=vmem, size = 0x4000, scoped, tag = 'input window, operand 0']
    #allocation4 [shape = 's32[2]{0}', space=sflag, size = 0x8, scoped, tag = 'scoped memory for tpu_custom_call.1']
    #allocation5 [shape = 's32[2]{0}', space=sflag, size = 0x8, scoped, tag = 'scoped memory for tpu_custom_call.1']
    #allocation6 [shape = 'u8[16384]{0}', space=vmem, size = 0x4000, scoped, tag = 'input window, operand 1']
    #allocation7 [shape = 's32[2]{0}', space=sflag, size = 0x8, scoped, tag = 'scoped memory for tpu_custom_call.1']
    #allocation8 [shape = 'u8[1024]{0}', space=vmem, size = 0x400, scoped, tag = 'input window, operand 2']
    #allocation9 [shape = 'u8[131072]{0}', space=vmem, size = 0x20000, scoped, tag = 'input window, operand 3, single buffered']
    #allocation10 [shape = 's32[1]{0}', space=sflag, size = 0x4, scoped, tag = 'scoped memory for tpu_custom_call.1']
    #allocation11 [shape = 'u8[131072]{0}', space=vmem, size = 0x20000, scoped, tag = 'input window, operand 4, single buffered']
    #allocation12 [shape = 'u8[131072]{0}', space=vmem, size = 0x20000, scoped, tag = 'input window, operand 5, single buffered']
    #allocation13 [shape = 's32[1]{0}', space=sflag, size = 0x4, scoped, tag = 'scoped memory for tpu_custom_call.1']
    #allocation14 [shape = 'u8[131072]{0}', space=vmem, size = 0x20000, scoped, tag = 'input window, operand 6, single buffered']
    #allocation15 [shape = 'u8[262144]{0}', space=vmem, size = 0x40000, scoped, tag = 'input window, operand 7, single buffered']
    #allocation16 [shape = 's32[1]{0}', space=sflag, size = 0x4, scoped, tag = 'scoped memory for tpu_custom_call.1']
    #allocation17 [shape = 'u8[262144]{0}', space=vmem, size = 0x40000, scoped, tag = 'input window, operand 8, single buffered']
    #allocation18 [shape = 'u8[16384]{0}', space=vmem, size = 0x4000, scoped, tag = 'input window, operand 9, single buffered']
    #allocation19 [shape = 's32[1]{0}', space=sflag, size = 0x4, scoped, tag = 'scoped memory for tpu_custom_call.1']
    #allocation20 [shape = 'u8[8192]{0}', space=vmem, size = 0x2000, scoped, tag = 'output window, operand 0']
    %16 = vsyncpa [#allocation4], 0
    %s17 = scalar_lea.sflag [#allocation4], 1
    %18 = vsyncpa %s17, 0
    %19 = vsyncpa [#allocation7], 0
    %s20 = scalar_lea.sflag [#allocation7], 1
    %21 = vsyncpa %s20, 0
    %22 = vsyncpa [#allocation10], 0
    %23 = vsyncpa [#allocation13], 0
    %24 = vsyncpa [#allocation16], 0
    %25 = vsyncpa [#allocation19], 0
    %26 = vsyncpa [#allocation5], 0
    %s27 = scalar_lea.sflag [#allocation5], 1
    %28 = vsyncpa %s27, 0
    loop: start=0, step=1, limit=4
    $region2: #{tpu_custom_call.1} parent=1 // loop_pre_header
      _
    $region3: #{tpu_custom_call.1} parent=1 // loop_header
      %s30 = sphi 0, %s34
      %p31 = scmp.ge.s32.totalorder %s30, 4
      %s40 = sphi 0, %s42
      %s43 = sphi 0, %s40
      %s44 = sphi 0, %s43
      %s60 = sphi 0, %s44
      %s66 = sphi 0, %s68
      %s69 = sphi 0, %s66
      %s70 = sphi 0, %s69
      %s86 = sphi 0, %s70
      %s92 = sphi 0, %s94
      %s95 = sphi 0, %s92
      %s96 = sphi 0, %s95
      %s112 = sphi 0, %s96
      %s116 = sphi 0, %s116
      %s118 = sphi 0, %s116
      %s119 = sphi 0, %s118
      %s133 = sphi 0, %s119
      %s137 = sphi 0, %s137
      %s139 = sphi 0, %s137
      %s140 = sphi 0, %s139
      %s154 = sphi 0, %s140
      %s158 = sphi 0, %s158
      %s160 = sphi 0, %s158
      %s161 = sphi 0, %s160
      %s175 = sphi 0, %s161
      %s179 = sphi 0, %s179
      %s181 = sphi 0, %s179
      %s182 = sphi 0, %s181
      %s196 = sphi 0, %s182
      %s200 = sphi 0, %s200
      %s202 = sphi 0, %s200
      %s203 = sphi 0, %s202
      %s217 = sphi 0, %s203
      %s221 = sphi 0, %s221
      %s223 = sphi 0, %s221
      %s224 = sphi 0, %s223
      %s238 = sphi 0, %s224
      %s242 = sphi 0, %s242
      %s244 = sphi 0, %s242
      %s245 = sphi 0, %s244
      %s259 = sphi 0, %s245
      %s263 = sphi 0, %s263
      %s265 = sphi 0, %s263
      %s266 = sphi 0, %s265
      %s280 = sphi 0, %s266
      %s286 = sphi 0, %s288
      %s289 = sphi 0, %s286
      %s290 = sphi 0, %s289
      %s306 = sphi 0, %s290
    $region4: #{tpu_custom_call.1} parent=1 // loop_header_branch
      %33 = sbr.rel (%p31) target = $region8
    $region5: #{tpu_custom_call.1} parent=1 // loop_body
      %s35 = ssub.s32 %s30, 1
      %s36 = ssub.s32 %s30, 2
      %s37 = sadd.s32 %s30, 1
      %s38 = ssub.s32 %s30, %s37
      %p39 = scmp.eq.s32.totalorder %s38, 0
      %s41 = sadd.s32 %s40, 1
      %s42 = scalar_select %p39, %s40, %s41
      %p45 = pneg %p39
      %p46 = scmp.eq.s32.totalorder %s30, 1
      %p47 = por %p45, %p46
      %p48 = scmp.ne.s32.totalorder %s40, %s43
      %p49 = scmp.eq.s32.totalorder %s30, 0
      %p50 = por %p48, %p49
      %p51 = scmp.ne.s32.totalorder %s40, %s43
      %p52 = scmp.eq.s32.totalorder %s35, 1
      %p53 = por %p51, %p52
      %p54 = scmp.ne.s32.totalorder %s43, %s44
      %p55 = scmp.eq.s32.totalorder %s35, 0
      %p56 = por %p54, %p55
      %p57 = scmp.ne.s32.totalorder %s43, %s44
      %p58 = scmp.eq.s32.totalorder %s36, 1
      %p59 = por %p57, %p58
      %p61 = scmp.ne.s32.totalorder %s44, %s60
      %p62 = scmp.eq.s32.totalorder %s36, 0
      %p63 = por %p61, %p62
      %s64 = ssub.s32 %s30, %s37
      %p65 = scmp.eq.s32.totalorder %s64, 0
      %s67 = sadd.s32 %s66, 1
      %s68 = scalar_select %p65, %s66, %s67
      %p71 = pneg %p65
      %p72 = scmp.eq.s32.totalorder %s30, 1
      %p73 = por %p71, %p72
      %p74 = scmp.ne.s32.totalorder %s66, %s69
      %p75 = scmp.eq.s32.totalorder %s30, 0
      %p76 = por %p74, %p75
      %p77 = scmp.ne.s32.totalorder %s66, %s69
      %p78 = scmp.eq.s32.totalorder %s35, 1
      %p79 = por %p77, %p78
      %p80 = scmp.ne.s32.totalorder %s69, %s70
      %p81 = scmp.eq.s32.totalorder %s35, 0
      %p82 = por %p80, %p81
      %p83 = scmp.ne.s32.totalorder %s69, %s70
      %p84 = scmp.eq.s32.totalorder %s36, 1
      %p85 = por %p83, %p84
      %p87 = scmp.ne.s32.totalorder %s70, %s86
      %p88 = scmp.eq.s32.totalorder %s36, 0
      %p89 = por %p87, %p88
      %s90 = ssub.s32 %s30, %s37
      %p91 = scmp.eq.s32.totalorder %s90, 0
      %s93 = sadd.s32 %s92, 1
      %s94 = scalar_select %p91, %s92, %s93
      %p97 = pneg %p91
      %p98 = scmp.eq.s32.totalorder %s30, 1
      %p99 = por %p97, %p98
      %p100 = scmp.ne.s32.totalorder %s92, %s95
      %p101 = scmp.eq.s32.totalorder %s30, 0
      %p102 = por %p100, %p101
      %p103 = scmp.ne.s32.totalorder %s92, %s95
      %p104 = scmp.eq.s32.totalorder %s35, 1
      %p105 = por %p103, %p104
      %p106 = scmp.ne.s32.totalorder %s95, %s96
      %p107 = scmp.eq.s32.totalorder %s35, 0
      %p108 = por %p106, %p107
      %p109 = scmp.ne.s32.totalorder %s95, %s96
      %p110 = scmp.eq.s32.totalorder %s36, 1
      %p111 = por %p109, %p110
      %p113 = scmp.ne.s32.totalorder %s96, %s112
      %p114 = scmp.eq.s32.totalorder %s36, 0
      %p115 = por %p113, %p114
      %s117 = sadd.s32 %s116, 1
      %p120 = scmp.eq.s32.totalorder %s30, 1
      %p121 = scmp.ne.s32.totalorder %s116, %s118
      %p122 = scmp.eq.s32.totalorder %s30, 0
      %p123 = por %p121, %p122
      %p124 = scmp.ne.s32.totalorder %s116, %s118
      %p125 = scmp.eq.s32.totalorder %s35, 1
      %p126 = por %p124, %p125
      %p127 = scmp.ne.s32.totalorder %s118, %s119
      %p128 = scmp.eq.s32.totalorder %s35, 0
      %p129 = por %p127, %p128
      %p130 = scmp.ne.s32.totalorder %s118, %s119
      %p131 = scmp.eq.s32.totalorder %s36, 1
      %p132 = por %p130, %p131
      %p134 = scmp.ne.s32.totalorder %s119, %s133
      %p135 = scmp.eq.s32.totalorder %s36, 0
      %p136 = por %p134, %p135
      %s138 = sadd.s32 %s137, 1
      %p141 = scmp.eq.s32.totalorder %s30, 1
      %p142 = scmp.ne.s32.totalorder %s137, %s139
      %p143 = scmp.eq.s32.totalorder %s30, 0
      %p144 = por %p142, %p143
      %p145 = scmp.ne.s32.totalorder %s137, %s139
      %p146 = scmp.eq.s32.totalorder %s35, 1
      %p147 = por %p145, %p146
      %p148 = scmp.ne.s32.totalorder %s139, %s140
      %p149 = scmp.eq.s32.totalorder %s35, 0
      %p150 = por %p148, %p149
      %p151 = scmp.ne.s32.totalorder %s139, %s140
      %p152 = scmp.eq.s32.totalorder %s36, 1
      %p153 = por %p151, %p152
      %p155 = scmp.ne.s32.totalorder %s140, %s154
      %p156 = scmp.eq.s32.totalorder %s36, 0
      %p157 = por %p155, %p156
      %s159 = sadd.s32 %s158, 1
      %p162 = scmp.eq.s32.totalorder %s30, 1
      %p163 = scmp.ne.s32.totalorder %s158, %s160
      %p164 = scmp.eq.s32.totalorder %s30, 0
      %p165 = por %p163, %p164
      %p166 = scmp.ne.s32.totalorder %s158, %s160
      %p167 = scmp.eq.s32.totalorder %s35, 1
      %p168 = por %p166, %p167
      %p169 = scmp.ne.s32.totalorder %s160, %s161
      %p170 = scmp.eq.s32.totalorder %s35, 0
      %p171 = por %p169, %p170
      %p172 = scmp.ne.s32.totalorder %s160, %s161
      %p173 = scmp.eq.s32.totalorder %s36, 1
      %p174 = por %p172, %p173
      %p176 = scmp.ne.s32.totalorder %s161, %s175
      %p177 = scmp.eq.s32.totalorder %s36, 0
      %p178 = por %p176, %p177
      %s180 = sadd.s32 %s179, 1
      %p183 = scmp.eq.s32.totalorder %s30, 1
      %p184 = scmp.ne.s32.totalorder %s179, %s181
      %p185 = scmp.eq.s32.totalorder %s30, 0
      %p186 = por %p184, %p185
      %p187 = scmp.ne.s32.totalorder %s179, %s181
      %p188 = scmp.eq.s32.totalorder %s35, 1
      %p189 = por %p187, %p188
      %p190 = scmp.ne.s32.totalorder %s181, %s182
      %p191 = scmp.eq.s32.totalorder %s35, 0
      %p192 = por %p190, %p191
      %p193 = scmp.ne.s32.totalorder %s181, %s182
      %p194 = scmp.eq.s32.totalorder %s36, 1
      %p195 = por %p193, %p194
      %p197 = scmp.ne.s32.totalorder %s182, %s196
      %p198 = scmp.eq.s32.totalorder %s36, 0
      %p199 = por %p197, %p198
      %s201 = sadd.s32 %s200, 1
      %p204 = scmp.eq.s32.totalorder %s30, 1
      %p205 = scmp.ne.s32.totalorder %s200, %s202
      %p206 = scmp.eq.s32.totalorder %s30, 0
      %p207 = por %p205, %p206
      %p208 = scmp.ne.s32.totalorder %s200, %s202
      %p209 = scmp.eq.s32.totalorder %s35, 1
      %p210 = por %p208, %p209
      %p211 = scmp.ne.s32.totalorder %s202, %s203
      %p212 = scmp.eq.s32.totalorder %s35, 0
      %p213 = por %p211, %p212
      %p214 = scmp.ne.s32.totalorder %s202, %s203
      %p215 = scmp.eq.s32.totalorder %s36, 1
      %p216 = por %p214, %p215
      %p218 = scmp.ne.s32.totalorder %s203, %s217
      %p219 = scmp.eq.s32.totalorder %s36, 0
      %p220 = por %p218, %p219
      %s222 = sadd.s32 %s221, 1
      %p225 = scmp.eq.s32.totalorder %s30, 1
      %p226 = scmp.ne.s32.totalorder %s221, %s223
      %p227 = scmp.eq.s32.totalorder %s30, 0
      %p228 = por %p226, %p227
      %p229 = scmp.ne.s32.totalorder %s221, %s223
      %p230 = scmp.eq.s32.totalorder %s35, 1
      %p231 = por %p229, %p230
      %p232 = scmp.ne.s32.totalorder %s223, %s224
      %p233 = scmp.eq.s32.totalorder %s35, 0
      %p234 = por %p232, %p233
      %p235 = scmp.ne.s32.totalorder %s223, %s224
      %p236 = scmp.eq.s32.totalorder %s36, 1
      %p237 = por %p235, %p236
      %p239 = scmp.ne.s32.totalorder %s224, %s238
      %p240 = scmp.eq.s32.totalorder %s36, 0
      %p241 = por %p239, %p240
      %s243 = sadd.s32 %s242, 1
      %p246 = scmp.eq.s32.totalorder %s30, 1
      %p247 = scmp.ne.s32.totalorder %s242, %s244
      %p248 = scmp.eq.s32.totalorder %s30, 0
      %p249 = por %p247, %p248
      %p250 = scmp.ne.s32.totalorder %s242, %s244
      %p251 = scmp.eq.s32.totalorder %s35, 1
      %p252 = por %p250, %p251
      %p253 = scmp.ne.s32.totalorder %s244, %s245
      %p254 = scmp.eq.s32.totalorder %s35, 0
      %p255 = por %p253, %p254
      %p256 = scmp.ne.s32.totalorder %s244, %s245
      %p257 = scmp.eq.s32.totalorder %s36, 1
      %p258 = por %p256, %p257
      %p260 = scmp.ne.s32.totalorder %s245, %s259
      %p261 = scmp.eq.s32.totalorder %s36, 0
      %p262 = por %p260, %p261
      %s264 = sadd.s32 %s263, 1
      %p267 = scmp.eq.s32.totalorder %s30, 1
      %p268 = scmp.ne.s32.totalorder %s263, %s265
      %p269 = scmp.eq.s32.totalorder %s30, 0
      %p270 = por %p268, %p269
      %p271 = scmp.ne.s32.totalorder %s263, %s265
      %p272 = scmp.eq.s32.totalorder %s35, 1
      %p273 = por %p271, %p272
      %p274 = scmp.ne.s32.totalorder %s265, %s266
      %p275 = scmp.eq.s32.totalorder %s35, 0
      %p276 = por %p274, %p275
      %p277 = scmp.ne.s32.totalorder %s265, %s266
      %p278 = scmp.eq.s32.totalorder %s36, 1
      %p279 = por %p277, %p278
      %p281 = scmp.ne.s32.totalorder %s266, %s280
      %p282 = scmp.eq.s32.totalorder %s36, 0
      %p283 = por %p281, %p282
      %s284 = ssub.s32 %s30, %s37
      %p285 = scmp.eq.s32.totalorder %s284, 0
      %s287 = sadd.s32 %s286, 1
      %s288 = scalar_select %p285, %s286, %s287
      %p291 = pneg %p285
      %p292 = scmp.eq.s32.totalorder %s30, 1
      %p293 = por %p291, %p292
      %p294 = scmp.ne.s32.totalorder %s286, %s289
      %p295 = scmp.eq.s32.totalorder %s30, 0
      %p296 = por %p294, %p295
      %p297 = scmp.ne.s32.totalorder %s286, %s289
      %p298 = scmp.eq.s32.totalorder %s35, 1
      %p299 = por %p297, %p298
      %p300 = scmp.ne.s32.totalorder %s289, %s290
      %p301 = scmp.eq.s32.totalorder %s35, 0
      %p302 = por %p300, %p301
      %p303 = scmp.ne.s32.totalorder %s289, %s290
      %p304 = scmp.eq.s32.totalorder %s36, 1
      %p305 = por %p303, %p304
      %p307 = scmp.ne.s32.totalorder %s290, %s306
      %p308 = scmp.eq.s32.totalorder %s36, 0
      %p309 = por %p307, %p308
      %p310 = scmp.le.s32.totalorder 1, %s30
      %p311 = scmp.lt.s32.totalorder %s30, 3
      %p312 = pnand %p310, %p311
      %p313 = pneg %p312
      // Predicated region
      $region9: #{tpu_custom_call.1} parent=5 // pred_check
        _
      $region10: #{tpu_custom_call.1} parent=5 // pred_check_branch
        %315 = sbr.rel (%p312) target = $region12
      $region11: #{tpu_custom_call.1} parent=5 // pred_region
        %s316 = ssub.s32 %s30, 1
        // Predicated region
        $region13: #{tpu_custom_call.1} parent=11 // pred_check
          %p317 = pneg %p129
        $region14: #{tpu_custom_call.1} parent=11 // pred_check_branch
          %319 = sbr.rel (%p317) target = $region16
        $region15: #{tpu_custom_call.1} parent=11 // pred_region
          %321 = vsyncadd [#allocation10], 0
          %s322 = sshll.u32 %s3, 4
          %s323 = int_to_ptr.hbm [resolvable:$true] %s322
          %s324 = sshll.u32 [#allocation9], 4
          %s325 = int_to_ptr.vmem [resolvable:$true] %s324
          %330 = dma.hbm_to_vmem [thread:$0]  %s323, 4096, %s325, [#allocation10], 128, 128, 8
        $region16: #{tpu_custom_call.1} parent=11 // pred_fallthru
          _
        // Predicated region
        $region17: #{tpu_custom_call.1} parent=11 // pred_check
          %p331 = pneg %p150
        $region18: #{tpu_custom_call.1} parent=11 // pred_check_branch
          %333 = sbr.rel (%p331) target = $region20
        $region19: #{tpu_custom_call.1} parent=11 // pred_region
          %335 = vsyncadd [#allocation10], 0
          %s336 = sshll.u32 %s4, 4
          %s337 = int_to_ptr.hbm [resolvable:$true] %s336
          %s338 = sshll.u32 [#allocation11], 4
          %s339 = int_to_ptr.vmem [resolvable:$true] %s338
          %344 = dma.hbm_to_vmem [thread:$0]  %s337, 4096, %s339, [#allocation10], 128, 128, 8
        $region20: #{tpu_custom_call.1} parent=11 // pred_fallthru
          _
        // Predicated region
        $region21: #{tpu_custom_call.1} parent=11 // pred_check
          %p345 = pneg %p171
        $region22: #{tpu_custom_call.1} parent=11 // pred_check_branch
          %347 = sbr.rel (%p345) target = $region24
        $region23: #{tpu_custom_call.1} parent=11 // pred_region
          %349 = vsyncadd [#allocation13], 0
          %s350 = sshll.u32 %s5, 4
          %s351 = int_to_ptr.hbm [resolvable:$true] %s350
          %s352 = sshll.u32 [#allocation12], 4
          %s353 = int_to_ptr.vmem [resolvable:$true] %s352
          %358 = dma.hbm_to_vmem [thread:$0]  %s351, 4096, %s353, [#allocation13], 128, 128, 8
        $region24: #{tpu_custom_call.1} parent=11 // pred_fallthru
          _
        // Predicated region
        $region25: #{tpu_custom_call.1} parent=11 // pred_check
          %p359 = pneg %p192
        $region26: #{tpu_custom_call.1} parent=11 // pred_check_branch
          %361 = sbr.rel (%p359) target = $region28
        $region27: #{tpu_custom_call.1} parent=11 // pred_region
          %363 = vsyncadd [#allocation13], 0
          %s364 = sshll.u32 %s6, 4
          %s365 = int_to_ptr.hbm [resolvable:$true] %s364
          %s366 = sshll.u32 [#allocation14], 4
          %s367 = int_to_ptr.vmem [resolvable:$true] %s366
          %372 = dma.hbm_to_vmem [thread:$0]  %s365, 4096, %s367, [#allocation13], 128, 128, 8
        $region28: #{tpu_custom_call.1} parent=11 // pred_fallthru
          _
        // Predicated region
        $region29: #{tpu_custom_call.1} parent=11 // pred_check
          %p373 = pneg %p213
        $region30: #{tpu_custom_call.1} parent=11 // pred_check_branch
          %375 = sbr.rel (%p373) target = $region32
        $region31: #{tpu_custom_call.1} parent=11 // pred_region
          %377 = vsyncadd [#allocation16], 0
          %s378 = sshll.u32 %s7, 4
          %s379 = int_to_ptr.hbm [resolvable:$true] %s378
          %s380 = sshll.u32 [#allocation15], 4
          %s381 = int_to_ptr.vmem [resolvable:$true] %s380
          %386 = dma.hbm_to_vmem [thread:$0]  %s379, 8192, %s381, [#allocation16], 256, 256, 16
        $region32: #{tpu_custom_call.1} parent=11 // pred_fallthru
          _
        // Predicated region
        $region33: #{tpu_custom_call.1} parent=11 // pred_check
          %p387 = pneg %p234
        $region34: #{tpu_custom_call.1} parent=11 // pred_check_branch
          %389 = sbr.rel (%p387) target = $region36
        $region35: #{tpu_custom_call.1} parent=11 // pred_region
          %391 = vsyncadd [#allocation16], 0
          %s392 = sshll.u32 %s8, 4
          %s393 = int_to_ptr.hbm [resolvable:$true] %s392
          %s394 = sshll.u32 [#allocation17], 4
          %s395 = int_to_ptr.vmem [resolvable:$true] %s394
          %400 = dma.hbm_to_vmem [thread:$0]  %s393, 8192, %s395, [#allocation16], 128, 128, 8
        $region36: #{tpu_custom_call.1} parent=11 // pred_fallthru
          _
        // Predicated region
        $region37: #{tpu_custom_call.1} parent=11 // pred_check
          %p401 = pneg %p255
        $region38: #{tpu_custom_call.1} parent=11 // pred_check_branch
          %403 = sbr.rel (%p401) target = $region40
        $region39: #{tpu_custom_call.1} parent=11 // pred_region
          %405 = vsyncadd [#allocation19], 0
          %s406 = sshll.u32 %s9, 4
          %s407 = int_to_ptr.hbm [resolvable:$true] %s406
          %s408 = sshll.u32 [#allocation18], 4
          %s409 = int_to_ptr.vmem [resolvable:$true] %s408
          %414 = dma.hbm_to_vmem [thread:$0]  %s407, 512, %s409, [#allocation19], 256, 256, 16
        $region40: #{tpu_custom_call.1} parent=11 // pred_fallthru
          _
        // Predicated region
        $region41: #{tpu_custom_call.1} parent=11 // pred_check
          %p415 = pneg %p276
        $region42: #{tpu_custom_call.1} parent=11 // pred_check_branch
          %417 = sbr.rel (%p415) target = $region44
        $region43: #{tpu_custom_call.1} parent=11 // pred_region
          _
        $region44: #{tpu_custom_call.1} parent=11 // pred_fallthru
          _
      $region12: #{tpu_custom_call.1} parent=5 // pred_fallthru
        _
      %p418 = scmp.lt.s32.totalorder %s30, 2
      // Predicated region
      $region45: #{tpu_custom_call.1} parent=5 // pred_check
        %p419 = pneg %p418
      $region46: #{tpu_custom_call.1} parent=5 // pred_check_branch
        %421 = sbr.rel (%p419) target = $region48
      $region47: #{tpu_custom_call.1} parent=5 // pred_region
        // Predicated region
        $region49: #{tpu_custom_call.1} parent=47 // pred_check
          %p422 = pneg %p50
        $region50: #{tpu_custom_call.1} parent=47 // pred_check_branch
          %424 = sbr.rel (%p422) target = $region52
        $region51: #{tpu_custom_call.1} parent=47 // pred_region
          %s425 = sand.u32 %s40, 1
          %s426 = scalar_lea.sflag [#allocation4], %s425
          %s427 = sand.u32 %s40, 1
          %s428 = smul.addr %s427, 16
          %s429 = scalar_lea.vmem [#allocation3], %s428
          %431 = vsyncadd %s426, 0
          %s432 = smul.addr %s30, 2
          %s433 = smul.addr %s432, 8
          %s434 = scalar_lea.hbm %s0, %s433
          %s436 = sshll.u32 %s434, 4
          %s437 = int_to_ptr.hbm [resolvable:$true] %s436
          %s438 = sshll.u32 %s429, 4
          %s439 = int_to_ptr.vmem [resolvable:$true] %s438
          %441 = dma.hbm_to_vmem [thread:$0]  %s437, 256, %s439, %s426
        $region52: #{tpu_custom_call.1} parent=47 // pred_fallthru
          _
        // Predicated region
        $region53: #{tpu_custom_call.1} parent=47 // pred_check
          %p442 = pneg %p76
        $region54: #{tpu_custom_call.1} parent=47 // pred_check_branch
          %444 = sbr.rel (%p442) target = $region56
        $region55: #{tpu_custom_call.1} parent=47 // pred_region
          %s445 = sand.u32 %s30, 1
          %s446 = scalar_lea.sflag [#allocation7], %s445
          %s447 = sand.u32 %s66, 1
          %s448 = smul.addr %s447, 16
          %s449 = scalar_lea.vmem [#allocation6], %s448
          %451 = vsyncadd %s446, 0
          %s452 = smul.addr %s30, 2
          %s453 = smul.addr %s452, 8
          %s454 = scalar_lea.hbm %s1, %s453
          %s456 = sshll.u32 %s454, 4
          %s457 = int_to_ptr.hbm [resolvable:$true] %s456
          %s458 = sshll.u32 %s449, 4
          %s459 = int_to_ptr.vmem [resolvable:$true] %s458
          %461 = dma.hbm_to_vmem [thread:$0]  %s457, 256, %s459, %s446
        $region56: #{tpu_custom_call.1} parent=47 // pred_fallthru
          _
        // Predicated region
        $region57: #{tpu_custom_call.1} parent=47 // pred_check
          %p462 = pneg %p102
        $region58: #{tpu_custom_call.1} parent=47 // pred_check_branch
          %464 = sbr.rel (%p462) target = $region60
        $region59: #{tpu_custom_call.1} parent=47 // pred_region
          %s465 = sand.u32 %s30, 1
          %s466 = scalar_lea.sflag [#allocation7], %s465
          %s467 = sand.u32 %s92, 1
          %s468 = scalar_lea.vmem [#allocation8], %s467
          %470 = vsyncadd %s466, 0
          %s471 = scalar_lea.hbm %s2, %s30
          %s473 = sshll.u32 %s471, 4
          %s474 = int_to_ptr.hbm [resolvable:$true] %s473
          %s475 = sshll.u32 %s468, 4
          %s476 = int_to_ptr.vmem [resolvable:$true] %s475
          %478 = dma.hbm_to_vmem [thread:$0]  %s474, 16, %s476, %s466
        $region60: #{tpu_custom_call.1} parent=47 // pred_fallthru
          _
      $region48: #{tpu_custom_call.1} parent=5 // pred_fallthru
        _
      %p479 = scmp.le.s32.totalorder 1, %s30
      %p480 = scmp.lt.s32.totalorder %s30, 3
      %p481 = pnand %p479, %p480
      %p482 = pneg %p481
      // Predicated region
      $region61: #{tpu_custom_call.1} parent=5 // pred_check
        _
      $region62: #{tpu_custom_call.1} parent=5 // pred_check_branch
        %484 = sbr.rel (%p481) target = $region64
      $region63: #{tpu_custom_call.1} parent=5 // pred_region
        %s485 = ssub.s32 %s30, 1
        %s486 = sand.u32 %s43, 1
        %s487 = scalar_lea.sflag [#allocation4], %s486
        %s488 = sand.u32 %s43, 1
        %s489 = smul.addr %s488, 16
        %s490 = scalar_lea.vmem [#allocation3], %s489
        // Predicated region
        $region65: #{tpu_custom_call.1} parent=63 // pred_check
          %p491 = pneg %p56
        $region66: #{tpu_custom_call.1} parent=63 // pred_check_branch
          %493 = sbr.rel (%p491) target = $region68
        $region67: #{tpu_custom_call.1} parent=63 // pred_region
          %495 = dma.done %s487, 256
        $region68: #{tpu_custom_call.1} parent=63 // pred_fallthru
          _
        %s496 = sand.u32 %s35, 1
        %s497 = scalar_lea.sflag [#allocation7], %s496
        %s498 = sand.u32 %s69, 1
        %s499 = smul.addr %s498, 16
        %s500 = scalar_lea.vmem [#allocation6], %s499
        // Predicated region
        $region69: #{tpu_custom_call.1} parent=63 // pred_check
          %p501 = pneg %p82
        $region70: #{tpu_custom_call.1} parent=63 // pred_check_branch
          %503 = sbr.rel (%p501) target = $region72
        $region71: #{tpu_custom_call.1} parent=63 // pred_region
          %505 = dma.done %s497, 256
        $region72: #{tpu_custom_call.1} parent=63 // pred_fallthru
          _
        %s506 = sand.u32 %s35, 1
        %s507 = scalar_lea.sflag [#allocation7], %s506
        %s508 = sand.u32 %s95, 1
        %s509 = scalar_lea.vmem [#allocation8], %s508
        // Predicated region
        $region73: #{tpu_custom_call.1} parent=63 // pred_check
          %p510 = pneg %p108
        $region74: #{tpu_custom_call.1} parent=63 // pred_check_branch
          %512 = sbr.rel (%p510) target = $region76
        $region75: #{tpu_custom_call.1} parent=63 // pred_region
          %514 = dma.done %s507, 16
        $region76: #{tpu_custom_call.1} parent=63 // pred_fallthru
          _
        // Predicated region
        $region77: #{tpu_custom_call.1} parent=63 // pred_check
          %p515 = pneg %p129
        $region78: #{tpu_custom_call.1} parent=63 // pred_check_branch
          %517 = sbr.rel (%p515) target = $region80
        $region79: #{tpu_custom_call.1} parent=63 // pred_region
          %519 = dma.done [#allocation10], 4096
        $region80: #{tpu_custom_call.1} parent=63 // pred_fallthru
          _
        // Predicated region
        $region81: #{tpu_custom_call.1} parent=63 // pred_check
          %p520 = pneg %p150
        $region82: #{tpu_custom_call.1} parent=63 // pred_check_branch
          %522 = sbr.rel (%p520) target = $region84
        $region83: #{tpu_custom_call.1} parent=63 // pred_region
          %524 = dma.done [#allocation10], 4096
        $region84: #{tpu_custom_call.1} parent=63 // pred_fallthru
          _
        // Predicated region
        $region85: #{tpu_custom_call.1} parent=63 // pred_check
          %p525 = pneg %p171
        $region86: #{tpu_custom_call.1} parent=63 // pred_check_branch
          %527 = sbr.rel (%p525) target = $region88
        $region87: #{tpu_custom_call.1} parent=63 // pred_region
          %529 = dma.done [#allocation13], 4096
        $region88: #{tpu_custom_call.1} parent=63 // pred_fallthru
          _
        // Predicated region
        $region89: #{tpu_custom_call.1} parent=63 // pred_check
          %p530 = pneg %p192
        $region90: #{tpu_custom_call.1} parent=63 // pred_check_branch
          %532 = sbr.rel (%p530) target = $region92
        $region91: #{tpu_custom_call.1} parent=63 // pred_region
          %534 = dma.done [#allocation13], 4096
        $region92: #{tpu_custom_call.1} parent=63 // pred_fallthru
          _
        // Predicated region
        $region93: #{tpu_custom_call.1} parent=63 // pred_check
          %p535 = pneg %p213
        $region94: #{tpu_custom_call.1} parent=63 // pred_check_branch
          %537 = sbr.rel (%p535) target = $region96
        $region95: #{tpu_custom_call.1} parent=63 // pred_region
          %539 = dma.done [#allocation16], 8192
        $region96: #{tpu_custom_call.1} parent=63 // pred_fallthru
          _
        // Predicated region
        $region97: #{tpu_custom_call.1} parent=63 // pred_check
          %p540 = pneg %p234
        $region98: #{tpu_custom_call.1} parent=63 // pred_check_branch
          %542 = sbr.rel (%p540) target = $region100
        $region99: #{tpu_custom_call.1} parent=63 // pred_region
          %544 = dma.done [#allocation16], 8192
        $region100: #{tpu_custom_call.1} parent=63 // pred_fallthru
          _
        // Predicated region
        $region101: #{tpu_custom_call.1} parent=63 // pred_check
          %p545 = pneg %p255
        $region102: #{tpu_custom_call.1} parent=63 // pred_check_branch
          %547 = sbr.rel (%p545) target = $region104
        $region103: #{tpu_custom_call.1} parent=63 // pred_region
          %549 = dma.done [#allocation19], 512
        $region104: #{tpu_custom_call.1} parent=63 // pred_fallthru
          _
        %s550 = sand.u32 %s43, 1
        %s551 = scalar_lea.sflag [#allocation4], %s550
        %s552 = sand.u32 %s43, 1
        %s553 = smul.addr %s552, 16
        %s554 = scalar_lea.vmem [#allocation3], %s553
        %p555 = pneg %p56
        %p556 = pneg %p53
        %s557 = sand.u32 %s35, 1
        %s558 = scalar_lea.sflag [#allocation7], %s557
        %s559 = sand.u32 %s69, 1
        %s560 = smul.addr %s559, 16
        %s561 = scalar_lea.vmem [#allocation6], %s560
        %p562 = pneg %p82
        %p563 = pneg %p79
        %s564 = sand.u32 %s35, 1
        %s565 = scalar_lea.sflag [#allocation7], %s564
        %s566 = sand.u32 %s95, 1
        %s567 = scalar_lea.vmem [#allocation8], %s566
        %p568 = pneg %p108
        %p569 = pneg %p105
        %p570 = pneg %p129
        %p571 = pneg %p126
        %p572 = pneg %p150
        %p573 = pneg %p147
        %p574 = pneg %p171
        %p575 = pneg %p168
        %p576 = pneg %p192
        %p577 = pneg %p189
        %p578 = pneg %p213
        %p579 = pneg %p210
        %p580 = pneg %p234
        %p581 = pneg %p231
        %p582 = pneg %p255
        %p583 = pneg %p252
        %p584 = pneg %p276
        %p585 = pneg %p273
        %p586 = pneg %p302
        %p587 = pneg %p299
        %s588 = sand.u32 %s289, 1
        %s589 = scalar_lea.sflag [#allocation5], %s588
        %s590 = sand.u32 %s289, 1
        %s591 = smul.addr %s590, 8
        %s592 = scalar_lea.vmem [#allocation20], %s591
        %v594 = vld [vmem:[%s490] sm:$0xff]
        %v595 = vld [vmem:[%s490 + $0x8] sm:$0xff]
        %v596 = vpack.c.bf16 %v594, %v594
        %v597 = vpack.c.bf16 %v595, %v595
        %v598 = vld [vmem:[%s500] sm:$0xff]
        %v599 = vld [vmem:[%s500 + $0x8] sm:$0xff]
        %v600 = vpack.c.bf16 %v598, %v598
        %v601 = vpack.c.bf16 %v599, %v599
        %v602 = vld [vmem:[%s509] sm:$0x1]
        %v603 = vmul.f32 %v602, -1e+09
        %v604 = vld [vmem:[#allocation18] sm:$0xff]
        %v605 = vld [vmem:[#allocation18 + $0x8] sm:$0xff]
        %v606 = vld [vmem:[#allocation18 + $0x10] sm:$0xff]
        %v607 = vld [vmem:[#allocation18 + $0x18] sm:$0xff]
        %v608 = vld [vmem:[#allocation9] sm:$0xff]
        %v609 = vld [vmem:[#allocation9 + $0x8] sm:$0xff]
        %v610 = vld [vmem:[#allocation9 + $0x10] sm:$0xff]
        %v611 = vld [vmem:[#allocation9 + $0x18] sm:$0xff]
        %v612 = vld [vmem:[#allocation9 + $0x20] sm:$0xff]
        %v613 = vld [vmem:[#allocation9 + $0x28] sm:$0xff]
        %v614 = vld [vmem:[#allocation9 + $0x30] sm:$0xff]
        %v615 = vld [vmem:[#allocation9 + $0x38] sm:$0xff]
        %v616 = vld [vmem:[#allocation9 + $0x40] sm:$0xff]
        %v617 = vld [vmem:[#allocation9 + $0x48] sm:$0xff]
        %v618 = vld [vmem:[#allocation9 + $0x50] sm:$0xff]
        %v619 = vld [vmem:[#allocation9 + $0x58] sm:$0xff]
        %v620 = vld [vmem:[#allocation9 + $0x60] sm:$0xff]
        %v621 = vld [vmem:[#allocation9 + $0x68] sm:$0xff]
        %v622 = vld [vmem:[#allocation9 + $0x70] sm:$0xff]
        %v623 = vld [vmem:[#allocation9 + $0x78] sm:$0xff]
        %v624 = vld [vmem:[#allocation9 + $0x80] sm:$0xff]
        %v625 = vld [vmem:[#allocation9 + $0x88] sm:$0xff]
        %v626 = vld [vmem:[#allocation9 + $0x90] sm:$0xff]
        %v627 = vld [vmem:[#allocation9 + $0x98] sm:$0xff]
        %v628 = vld [vmem:[#allocation9 + $0xa0] sm:$0xff]
        %v629 = vld [vmem:[#allocation9 + $0xa8] sm:$0xff]
        %v630 = vld [vmem:[#allocation9 + $0xb0] sm:$0xff]
        %v631 = vld [vmem:[#allocation9 + $0xb8] sm:$0xff]
        %v632 = vld [vmem:[#allocation9 + $0xc0] sm:$0xff]
        %v633 = vld [vmem:[#allocation9 + $0xc8] sm:$0xff]
        %v634 = vld [vmem:[#allocation9 + $0xd0] sm:$0xff]
        %v635 = vld [vmem:[#allocation9 + $0xd8] sm:$0xff]
        %v636 = vld [vmem:[#allocation9 + $0xe0] sm:$0xff]
        %v637 = vld [vmem:[#allocation9 + $0xe8] sm:$0xff]
        %v638 = vld [vmem:[#allocation9 + $0xf0] sm:$0xff]
        %v639 = vld [vmem:[#allocation9 + $0xf8] sm:$0xff]
        %v640 = vperm.slane %v604, 0
        %v641 = vperm.slane %v605, 0
        %v674 = vunpack.c.l.b16 %v608
        %v675 = vunpack.c.h.b16 %v608
        %v676 = vunpack.c.l.b16 %v609
        %v677 = vunpack.c.h.b16 %v609
        %v678 = vunpack.c.l.b16 %v610
        %v679 = vunpack.c.h.b16 %v610
        %v680 = vunpack.c.l.b16 %v611
        %v681 = vunpack.c.h.b16 %v611
        %v682 = vunpack.c.l.b16 %v612
        %v683 = vunpack.c.h.b16 %v612
        %v684 = vunpack.c.l.b16 %v613
        %v685 = vunpack.c.h.b16 %v613
        %v686 = vunpack.c.l.b16 %v614
        %v687 = vunpack.c.h.b16 %v614
        %v688 = vunpack.c.l.b16 %v615
        %v689 = vunpack.c.h.b16 %v615
        %v690 = vunpack.c.l.b16 %v616
        %v691 = vunpack.c.h.b16 %v616
        %v692 = vunpack.c.l.b16 %v617
        %v693 = vunpack.c.h.b16 %v617
        %v694 = vunpack.c.l.b16 %v618
        %v695 = vunpack.c.h.b16 %v618
        %v696 = vunpack.c.l.b16 %v619
        %v697 = vunpack.c.h.b16 %v619
        %v698 = vunpack.c.l.b16 %v620
        %v699 = vunpack.c.h.b16 %v620
        %v700 = vunpack.c.l.b16 %v621
        %v701 = vunpack.c.h.b16 %v621
        %v702 = vunpack.c.l.b16 %v622
        %v703 = vunpack.c.h.b16 %v622
        %v704 = vunpack.c.l.b16 %v623
        %v705 = vunpack.c.h.b16 %v623
        %v706 = vunpack.c.l.b16 %v624
        %v707 = vunpack.c.h.b16 %v624
        %v708 = vunpack.c.l.b16 %v625
        %v709 = vunpack.c.h.b16 %v625
        %v710 = vunpack.c.l.b16 %v626
        %v711 = vunpack.c.h.b16 %v626
        %v712 = vunpack.c.l.b16 %v627
        %v713 = vunpack.c.h.b16 %v627
        %v714 = vunpack.c.l.b16 %v628
        %v715 = vunpack.c.h.b16 %v628
        %v716 = vunpack.c.l.b16 %v629
        %v717 = vunpack.c.h.b16 %v629
        %v718 = vunpack.c.l.b16 %v630
        %v719 = vunpack.c.h.b16 %v630
        %v720 = vunpack.c.l.b16 %v631
        %v721 = vunpack.c.h.b16 %v631
        %v722 = vunpack.c.l.b16 %v632
        %v723 = vunpack.c.h.b16 %v632
        %v724 = vunpack.c.l.b16 %v633
        %v725 = vunpack.c.h.b16 %v633
        %v726 = vunpack.c.l.b16 %v634
        %v727 = vunpack.c.h.b16 %v634
        %v728 = vunpack.c.l.b16 %v635
        %v729 = vunpack.c.h.b16 %v635
        %v730 = vunpack.c.l.b16 %v636
        %v731 = vunpack.c.h.b16 %v636
        %v732 = vunpack.c.l.b16 %v637
        %v733 = vunpack.c.h.b16 %v637
        %v734 = vunpack.c.l.b16 %v638
        %v735 = vunpack.c.h.b16 %v638
        %v736 = vunpack.c.l.b16 %v639
        %v737 = vunpack.c.h.b16 %v639
        %v738 = vpack.c.b16 %v676, %v674
        %v739 = vpack.c.b16 %v677, %v675
        %v740 = vpack.c.b16 %v680, %v678
        %v741 = vpack.c.b16 %v681, %v679
        %v742 = vpack.c.b16 %v684, %v682
        %v743 = vpack.c.b16 %v685, %v683
        %v744 = vpack.c.b16 %v688, %v686
        %v745 = vpack.c.b16 %v689, %v687
        %v746 = vpack.c.b16 %v692, %v690
        %v747 = vpack.c.b16 %v693, %v691
        %v748 = vpack.c.b16 %v696, %v694
        %v749 = vpack.c.b16 %v697, %v695
        %v750 = vpack.c.b16 %v700, %v698
        %v751 = vpack.c.b16 %v701, %v699
        %v752 = vpack.c.b16 %v704, %v702
        %v753 = vpack.c.b16 %v705, %v703
        %v754 = vpack.c.b16 %v708, %v706
        %v755 = vpack.c.b16 %v709, %v707
        %v756 = vpack.c.b16 %v712, %v710
        %v757 = vpack.c.b16 %v713, %v711
        %v758 = vpack.c.b16 %v716, %v714
        %v759 = vpack.c.b16 %v717, %v715
        %v760 = vpack.c.b16 %v720, %v718
        %v761 = vpack.c.b16 %v721, %v719
        %v762 = vpack.c.b16 %v724, %v722
        %v763 = vpack.c.b16 %v725, %v723
        %v764 = vpack.c.b16 %v728, %v726
        %v765 = vpack.c.b16 %v729, %v727
        %v766 = vpack.c.b16 %v732, %v730
        %v767 = vpack.c.b16 %v733, %v731
        %v768 = vpack.c.b16 %v736, %v734
        %v769 = vpack.c.b16 %v737, %v735
        %802 = vmatpush.bf16.msra.mxu0 %v752
        %803 = vmatpush.bf16.msra.mxu0 %v750
        %804 = vmatpush.bf16.msra.mxu0 %v748
        %805 = vmatpush.bf16.msra.mxu0 %v746
        %806 = vmatpush.bf16.msra.mxu0 %v744
        %807 = vmatpush.bf16.msra.mxu0 %v742
        %808 = vmatpush.bf16.msra.mxu0 %v740
        %809 = vmatpush.bf16.msra.mxu0 %v738
        %810 = vmatmul.bf16.gmra.mxu0 %v596
        %v811 = vpop.f32.mrf.mxu0
        %v812 = vadd.f32 %v640, %v811
        %v813 = vpop.f32.mrf.mxu0
        %814 = vdwg.mxu0
        %815 = vmatpush.bf16.msra.mxu0 %v768
        %816 = vmatpush.bf16.msra.mxu0 %v766
        %817 = vmatpush.bf16.msra.mxu0 %v764
        %818 = vmatpush.bf16.msra.mxu0 %v762
        %819 = vmatpush.bf16.msra.mxu0 %v760
        %820 = vmatpush.bf16.msra.mxu0 %v758
        %821 = vmatpush.bf16.msra.mxu0 %v756
        %822 = vmatpush.bf16.msra.mxu0 %v754
        %823 = vmatmul.bf16.gmra.mxu0 %v597
        %v824 = vpop.f32.mrf.mxu0
        %v825 = vadd.f32 %v812, %v824
        %v826 = vpop.f32.mrf.mxu0
        %827 = vdwg.mxu0
        %828 = vmatpush.bf16.msra.mxu0 %v753
        %829 = vmatpush.bf16.msra.mxu0 %v751
        %830 = vmatpush.bf16.msra.mxu0 %v749
        %831 = vmatpush.bf16.msra.mxu0 %v747
        %832 = vmatpush.bf16.msra.mxu0 %v745
        %833 = vmatpush.bf16.msra.mxu0 %v743
        %834 = vmatpush.bf16.msra.mxu0 %v741
        %835 = vmatpush.bf16.msra.mxu0 %v739
        %836 = vmatmul.bf16.gmra.mxu0 %v596
        %v837 = vpop.f32.mrf.mxu0
        %v838 = vadd.f32 %v641, %v837
        %v839 = vpop.f32.mrf.mxu0
        %840 = vdwg.mxu0
        %841 = vmatpush.bf16.msra.mxu0 %v769
        %842 = vmatpush.bf16.msra.mxu0 %v767
        %843 = vmatpush.bf16.msra.mxu0 %v765
        %844 = vmatpush.bf16.msra.mxu0 %v763
        %845 = vmatpush.bf16.msra.mxu0 %v761
        %846 = vmatpush.bf16.msra.mxu0 %v759
        %847 = vmatpush.bf16.msra.mxu0 %v757
        %848 = vmatpush.bf16.msra.mxu0 %v755
        %849 = vmatmul.bf16.gmra.mxu0 %v597
        %v850 = vpop.f32.mrf.mxu0
        %v851 = vadd.f32 %v838, %v850
        %v852 = vpop.f32.mrf.mxu0
        %853 = vdwg.mxu0
        %v854 = vld [vmem:[#allocation11] sm:$0xff]
        %v855 = vld [vmem:[#allocation11 + $0x8] sm:$0xff]
        %v856 = vld [vmem:[#allocation11 + $0x10] sm:$0xff]
        %v857 = vld [vmem:[#allocation11 + $0x18] sm:$0xff]
        %v858 = vld [vmem:[#allocation11 + $0x20] sm:$0xff]
        %v859 = vld [vmem:[#allocation11 + $0x28] sm:$0xff]
        %v860 = vld [vmem:[#allocation11 + $0x30] sm:$0xff]
        %v861 = vld [vmem:[#allocation11 + $0x38] sm:$0xff]
        %v862 = vld [vmem:[#allocation11 + $0x40] sm:$0xff]
        %v863 = vld [vmem:[#allocation11 + $0x48] sm:$0xff]
        %v864 = vld [vmem:[#allocation11 + $0x50] sm:$0xff]
        %v865 = vld [vmem:[#allocation11 + $0x58] sm:$0xff]
        %v866 = vld [vmem:[#allocation11 + $0x60] sm:$0xff]
        %v867 = vld [vmem:[#allocation11 + $0x68] sm:$0xff]
        %v868 = vld [vmem:[#allocation11 + $0x70] sm:$0xff]
        %v869 = vld [vmem:[#allocation11 + $0x78] sm:$0xff]
        %v870 = vld [vmem:[#allocation11 + $0x80] sm:$0xff]
        %v871 = vld [vmem:[#allocation11 + $0x88] sm:$0xff]
        %v872 = vld [vmem:[#allocation11 + $0x90] sm:$0xff]
        %v873 = vld [vmem:[#allocation11 + $0x98] sm:$0xff]
        %v874 = vld [vmem:[#allocation11 + $0xa0] sm:$0xff]
        %v875 = vld [vmem:[#allocation11 + $0xa8] sm:$0xff]
        %v876 = vld [vmem:[#allocation11 + $0xb0] sm:$0xff]
        %v877 = vld [vmem:[#allocation11 + $0xb8] sm:$0xff]
        %v878 = vld [vmem:[#allocation11 + $0xc0] sm:$0xff]
        %v879 = vld [vmem:[#allocation11 + $0xc8] sm:$0xff]
        %v880 = vld [vmem:[#allocation11 + $0xd0] sm:$0xff]
        %v881 = vld [vmem:[#allocation11 + $0xd8] sm:$0xff]
        %v882 = vld [vmem:[#allocation11 + $0xe0] sm:$0xff]
        %v883 = vld [vmem:[#allocation11 + $0xe8] sm:$0xff]
        %v884 = vld [vmem:[#allocation11 + $0xf0] sm:$0xff]
        %v885 = vld [vmem:[#allocation11 + $0xf8] sm:$0xff]
        %v886 = vperm.slane %v604, 1
        %v887 = vperm.slane %v605, 1
        %v920 = vunpack.c.l.b16 %v854
        %v921 = vunpack.c.h.b16 %v854
        %v922 = vunpack.c.l.b16 %v855
        %v923 = vunpack.c.h.b16 %v855
        %v924 = vunpack.c.l.b16 %v856
        %v925 = vunpack.c.h.b16 %v856
        %v926 = vunpack.c.l.b16 %v857
        %v927 = vunpack.c.h.b16 %v857
        %v928 = vunpack.c.l.b16 %v858
        %v929 = vunpack.c.h.b16 %v858
        %v930 = vunpack.c.l.b16 %v859
        %v931 = vunpack.c.h.b16 %v859
        %v932 = vunpack.c.l.b16 %v860
        %v933 = vunpack.c.h.b16 %v860
        %v934 = vunpack.c.l.b16 %v861
        %v935 = vunpack.c.h.b16 %v861
        %v936 = vunpack.c.l.b16 %v862
        %v937 = vunpack.c.h.b16 %v862
        %v938 = vunpack.c.l.b16 %v863
        %v939 = vunpack.c.h.b16 %v863
        %v940 = vunpack.c.l.b16 %v864
        %v941 = vunpack.c.h.b16 %v864
        %v942 = vunpack.c.l.b16 %v865
        %v943 = vunpack.c.h.b16 %v865
        %v944 = vunpack.c.l.b16 %v866
        %v945 = vunpack.c.h.b16 %v866
        %v946 = vunpack.c.l.b16 %v867
        %v947 = vunpack.c.h.b16 %v867
        %v948 = vunpack.c.l.b16 %v868
        %v949 = vunpack.c.h.b16 %v868
        %v950 = vunpack.c.l.b16 %v869
        %v951 = vunpack.c.h.b16 %v869
        %v952 = vunpack.c.l.b16 %v870
        %v953 = vunpack.c.h.b16 %v870
        %v954 = vunpack.c.l.b16 %v871
        %v955 = vunpack.c.h.b16 %v871
        %v956 = vunpack.c.l.b16 %v872
        %v957 = vunpack.c.h.b16 %v872
        %v958 = vunpack.c.l.b16 %v873
        %v959 = vunpack.c.h.b16 %v873
        %v960 = vunpack.c.l.b16 %v874
        %v961 = vunpack.c.h.b16 %v874
        %v962 = vunpack.c.l.b16 %v875
        %v963 = vunpack.c.h.b16 %v875
        %v964 = vunpack.c.l.b16 %v876
        %v965 = vunpack.c.h.b16 %v876
        %v966 = vunpack.c.l.b16 %v877
        %v967 = vunpack.c.h.b16 %v877
        %v968 = vunpack.c.l.b16 %v878
        %v969 = vunpack.c.h.b16 %v878
        %v970 = vunpack.c.l.b16 %v879
        %v971 = vunpack.c.h.b16 %v879
        %v972 = vunpack.c.l.b16 %v880
        %v973 = vunpack.c.h.b16 %v880
        %v974 = vunpack.c.l.b16 %v881
        %v975 = vunpack.c.h.b16 %v881
        %v976 = vunpack.c.l.b16 %v882
        %v977 = vunpack.c.h.b16 %v882
        %v978 = vunpack.c.l.b16 %v883
        %v979 = vunpack.c.h.b16 %v883
        %v980 = vunpack.c.l.b16 %v884
        %v981 = vunpack.c.h.b16 %v884
        %v982 = vunpack.c.l.b16 %v885
        %v983 = vunpack.c.h.b16 %v885
        %v984 = vpack.c.b16 %v922, %v920
        %v985 = vpack.c.b16 %v923, %v921
        %v986 = vpack.c.b16 %v926, %v924
        %v987 = vpack.c.b16 %v927, %v925
        %v988 = vpack.c.b16 %v930, %v928
        %v989 = vpack.c.b16 %v931, %v929
        %v990 = vpack.c.b16 %v934, %v932
        %v991 = vpack.c.b16 %v935, %v933
        %v992 = vpack.c.b16 %v938, %v936
        %v993 = vpack.c.b16 %v939, %v937
        %v994 = vpack.c.b16 %v942, %v940
        %v995 = vpack.c.b16 %v943, %v941
        %v996 = vpack.c.b16 %v946, %v944
        %v997 = vpack.c.b16 %v947, %v945
        %v998 = vpack.c.b16 %v950, %v948
        %v999 = vpack.c.b16 %v951, %v949
        %v1000 = vpack.c.b16 %v954, %v952
        %v1001 = vpack.c.b16 %v955, %v953
        %v1002 = vpack.c.b16 %v958, %v956
        %v1003 = vpack.c.b16 %v959, %v957
        %v1004 = vpack.c.b16 %v962, %v960
        %v1005 = vpack.c.b16 %v963, %v961
        %v1006 = vpack.c.b16 %v966, %v964
        %v1007 = vpack.c.b16 %v967, %v965
        %v1008 = vpack.c.b16 %v970, %v968
        %v1009 = vpack.c.b16 %v971, %v969
        %v1010 = vpack.c.b16 %v974, %v972
        %v1011 = vpack.c.b16 %v975, %v973
        %v1012 = vpack.c.b16 %v978, %v976
        %v1013 = vpack.c.b16 %v979, %v977
        %v1014 = vpack.c.b16 %v982, %v980
        %v1015 = vpack.c.b16 %v983, %v981
        %1048 = vmatpush.bf16.msra.mxu0 %v998
        %1049 = vmatpush.bf16.msra.mxu0 %v996
        %1050 = vmatpush.bf16.msra.mxu0 %v994
        %1051 = vmatpush.bf16.msra.mxu0 %v992
        %1052 = vmatpush.bf16.msra.mxu0 %v990
        %1053 = vmatpush.bf16.msra.mxu0 %v988
        %1054 = vmatpush.bf16.msra.mxu0 %v986
        %1055 = vmatpush.bf16.msra.mxu0 %v984
        %1056 = vmatmul.bf16.gmra.mxu0 %v600
        %v1057 = vpop.f32.mrf.mxu0
        %v1058 = vadd.f32 %v886, %v1057
        %v1059 = vpop.f32.mrf.mxu0
        %1060 = vdwg.mxu0
        %1061 = vmatpush.bf16.msra.mxu0 %v1014
        %1062 = vmatpush.bf16.msra.mxu0 %v1012
        %1063 = vmatpush.bf16.msra.mxu0 %v1010
        %1064 = vmatpush.bf16.msra.mxu0 %v1008
        %1065 = vmatpush.bf16.msra.mxu0 %v1006
        %1066 = vmatpush.bf16.msra.mxu0 %v1004
        %1067 = vmatpush.bf16.msra.mxu0 %v1002
        %1068 = vmatpush.bf16.msra.mxu0 %v1000
        %1069 = vmatmul.bf16.gmra.mxu0 %v601
        %v1070 = vpop.f32.mrf.mxu0
        %v1071 = vadd.f32 %v1058, %v1070
        %v1072 = vpop.f32.mrf.mxu0
        %1073 = vdwg.mxu0
        %1074 = vmatpush.bf16.msra.mxu0 %v999
        %1075 = vmatpush.bf16.msra.mxu0 %v997
        %1076 = vmatpush.bf16.msra.mxu0 %v995
        %1077 = vmatpush.bf16.msra.mxu0 %v993
        %1078 = vmatpush.bf16.msra.mxu0 %v991
        %1079 = vmatpush.bf16.msra.mxu0 %v989
        %1080 = vmatpush.bf16.msra.mxu0 %v987
        %1081 = vmatpush.bf16.msra.mxu0 %v985
        %1082 = vmatmul.bf16.gmra.mxu0 %v600
        %v1083 = vpop.f32.mrf.mxu0
        %v1084 = vadd.f32 %v887, %v1083
        %v1085 = vpop.f32.mrf.mxu0
        %1086 = vdwg.mxu0
        %1087 = vmatpush.bf16.msra.mxu0 %v1015
        %1088 = vmatpush.bf16.msra.mxu0 %v1013
        %1089 = vmatpush.bf16.msra.mxu0 %v1011
        %1090 = vmatpush.bf16.msra.mxu0 %v1009
        %1091 = vmatpush.bf16.msra.mxu0 %v1007
        %1092 = vmatpush.bf16.msra.mxu0 %v1005
        %1093 = vmatpush.bf16.msra.mxu0 %v1003
        %1094 = vmatpush.bf16.msra.mxu0 %v1001
        %1095 = vmatmul.bf16.gmra.mxu0 %v601
        %v1096 = vpop.f32.mrf.mxu0
        %v1097 = vadd.f32 %v1084, %v1096
        %v1098 = vpop.f32.mrf.mxu0
        %1099 = vdwg.mxu0
        %v1100 = vld [vmem:[#allocation12] sm:$0xff]
        %v1101 = vld [vmem:[#allocation12 + $0x8] sm:$0xff]
        %v1102 = vld [vmem:[#allocation12 + $0x10] sm:$0xff]
        %v1103 = vld [vmem:[#allocation12 + $0x18] sm:$0xff]
        %v1104 = vld [vmem:[#allocation12 + $0x20] sm:$0xff]
        %v1105 = vld [vmem:[#allocation12 + $0x28] sm:$0xff]
        %v1106 = vld [vmem:[#allocation12 + $0x30] sm:$0xff]
        %v1107 = vld [vmem:[#allocation12 + $0x38] sm:$0xff]
        %v1108 = vld [vmem:[#allocation12 + $0x40] sm:$0xff]
        %v1109 = vld [vmem:[#allocation12 + $0x48] sm:$0xff]
        %v1110 = vld [vmem:[#allocation12 + $0x50] sm:$0xff]
        %v1111 = vld [vmem:[#allocation12 + $0x58] sm:$0xff]
        %v1112 = vld [vmem:[#allocation12 + $0x60] sm:$0xff]
        %v1113 = vld [vmem:[#allocation12 + $0x68] sm:$0xff]
        %v1114 = vld [vmem:[#allocation12 + $0x70] sm:$0xff]
        %v1115 = vld [vmem:[#allocation12 + $0x78] sm:$0xff]
        %v1116 = vld [vmem:[#allocation12 + $0x80] sm:$0xff]
        %v1117 = vld [vmem:[#allocation12 + $0x88] sm:$0xff]
        %v1118 = vld [vmem:[#allocation12 + $0x90] sm:$0xff]
        %v1119 = vld [vmem:[#allocation12 + $0x98] sm:$0xff]
        %v1120 = vld [vmem:[#allocation12 + $0xa0] sm:$0xff]
        %v1121 = vld [vmem:[#allocation12 + $0xa8] sm:$0xff]
        %v1122 = vld [vmem:[#allocation12 + $0xb0] sm:$0xff]
        %v1123 = vld [vmem:[#allocation12 + $0xb8] sm:$0xff]
        %v1124 = vld [vmem:[#allocation12 + $0xc0] sm:$0xff]
        %v1125 = vld [vmem:[#allocation12 + $0xc8] sm:$0xff]
        %v1126 = vld [vmem:[#allocation12 + $0xd0] sm:$0xff]
        %v1127 = vld [vmem:[#allocation12 + $0xd8] sm:$0xff]
        %v1128 = vld [vmem:[#allocation12 + $0xe0] sm:$0xff]
        %v1129 = vld [vmem:[#allocation12 + $0xe8] sm:$0xff]
        %v1130 = vld [vmem:[#allocation12 + $0xf0] sm:$0xff]
        %v1131 = vld [vmem:[#allocation12 + $0xf8] sm:$0xff]
        %v1132 = vperm.slane %v604, 2
        %v1133 = vperm.slane %v605, 2
        %v1166 = vunpack.c.l.b16 %v1100
        %v1167 = vunpack.c.h.b16 %v1100
        %v1168 = vunpack.c.l.b16 %v1101
        %v1169 = vunpack.c.h.b16 %v1101
        %v1170 = vunpack.c.l.b16 %v1102
        %v1171 = vunpack.c.h.b16 %v1102
        %v1172 = vunpack.c.l.b16 %v1103
        %v1173 = vunpack.c.h.b16 %v1103
        %v1174 = vunpack.c.l.b16 %v1104
        %v1175 = vunpack.c.h.b16 %v1104
        %v1176 = vunpack.c.l.b16 %v1105
        %v1177 = vunpack.c.h.b16 %v1105
        %v1178 = vunpack.c.l.b16 %v1106
        %v1179 = vunpack.c.h.b16 %v1106
        %v1180 = vunpack.c.l.b16 %v1107
        %v1181 = vunpack.c.h.b16 %v1107
        %v1182 = vunpack.c.l.b16 %v1108
        %v1183 = vunpack.c.h.b16 %v1108
        %v1184 = vunpack.c.l.b16 %v1109
        %v1185 = vunpack.c.h.b16 %v1109
        %v1186 = vunpack.c.l.b16 %v1110
        %v1187 = vunpack.c.h.b16 %v1110
        %v1188 = vunpack.c.l.b16 %v1111
        %v1189 = vunpack.c.h.b16 %v1111
        %v1190 = vunpack.c.l.b16 %v1112
        %v1191 = vunpack.c.h.b16 %v1112
        %v1192 = vunpack.c.l.b16 %v1113
        %v1193 = vunpack.c.h.b16 %v1113
        %v1194 = vunpack.c.l.b16 %v1114
        %v1195 = vunpack.c.h.b16 %v1114
        %v1196 = vunpack.c.l.b16 %v1115
        %v1197 = vunpack.c.h.b16 %v1115
        %v1198 = vunpack.c.l.b16 %v1116
        %v1199 = vunpack.c.h.b16 %v1116
        %v1200 = vunpack.c.l.b16 %v1117
        %v1201 = vunpack.c.h.b16 %v1117
        %v1202 = vunpack.c.l.b16 %v1118
        %v1203 = vunpack.c.h.b16 %v1118
        %v1204 = vunpack.c.l.b16 %v1119
        %v1205 = vunpack.c.h.b16 %v1119
        %v1206 = vunpack.c.l.b16 %v1120
        %v1207 = vunpack.c.h.b16 %v1120
        %v1208 = vunpack.c.l.b16 %v1121
        %v1209 = vunpack.c.h.b16 %v1121
        %v1210 = vunpack.c.l.b16 %v1122
        %v1211 = vunpack.c.h.b16 %v1122
        %v1212 = vunpack.c.l.b16 %v1123
        %v1213 = vunpack.c.h.b16 %v1123
        %v1214 = vunpack.c.l.b16 %v1124
        %v1215 = vunpack.c.h.b16 %v1124
        %v1216 = vunpack.c.l.b16 %v1125
        %v1217 = vunpack.c.h.b16 %v1125
        %v1218 = vunpack.c.l.b16 %v1126
        %v1219 = vunpack.c.h.b16 %v1126
        %v1220 = vunpack.c.l.b16 %v1127
        %v1221 = vunpack.c.h.b16 %v1127
        %v1222 = vunpack.c.l.b16 %v1128
        %v1223 = vunpack.c.h.b16 %v1128
        %v1224 = vunpack.c.l.b16 %v1129
        %v1225 = vunpack.c.h.b16 %v1129
        %v1226 = vunpack.c.l.b16 %v1130
        %v1227 = vunpack.c.h.b16 %v1130
        %v1228 = vunpack.c.l.b16 %v1131
        %v1229 = vunpack.c.h.b16 %v1131
        %v1230 = vpack.c.b16 %v1168, %v1166
        %v1231 = vpack.c.b16 %v1169, %v1167
        %v1232 = vpack.c.b16 %v1172, %v1170
        %v1233 = vpack.c.b16 %v1173, %v1171
        %v1234 = vpack.c.b16 %v1176, %v1174
        %v1235 = vpack.c.b16 %v1177, %v1175
        %v1236 = vpack.c.b16 %v1180, %v1178
        %v1237 = vpack.c.b16 %v1181, %v1179
        %v1238 = vpack.c.b16 %v1184, %v1182
        %v1239 = vpack.c.b16 %v1185, %v1183
        %v1240 = vpack.c.b16 %v1188, %v1186
        %v1241 = vpack.c.b16 %v1189, %v1187
        %v1242 = vpack.c.b16 %v1192, %v1190
        %v1243 = vpack.c.b16 %v1193, %v1191
        %v1244 = vpack.c.b16 %v1196, %v1194
        %v1245 = vpack.c.b16 %v1197, %v1195
        %v1246 = vpack.c.b16 %v1200, %v1198
        %v1247 = vpack.c.b16 %v1201, %v1199
        %v1248 = vpack.c.b16 %v1204, %v1202
        %v1249 = vpack.c.b16 %v1205, %v1203
        %v1250 = vpack.c.b16 %v1208, %v1206
        %v1251 = vpack.c.b16 %v1209, %v1207
        %v1252 = vpack.c.b16 %v1212, %v1210
        %v1253 = vpack.c.b16 %v1213, %v1211
        %v1254 = vpack.c.b16 %v1216, %v1214
        %v1255 = vpack.c.b16 %v1217, %v1215
        %v1256 = vpack.c.b16 %v1220, %v1218
        %v1257 = vpack.c.b16 %v1221, %v1219
        %v1258 = vpack.c.b16 %v1224, %v1222
        %v1259 = vpack.c.b16 %v1225, %v1223
        %v1260 = vpack.c.b16 %v1228, %v1226
        %v1261 = vpack.c.b16 %v1229, %v1227
        %1294 = vmatpush.bf16.msra.mxu0 %v1244
        %1295 = vmatpush.bf16.msra.mxu0 %v1242
        %1296 = vmatpush.bf16.msra.mxu0 %v1240
        %1297 = vmatpush.bf16.msra.mxu0 %v1238
        %1298 = vmatpush.bf16.msra.mxu0 %v1236
        %1299 = vmatpush.bf16.msra.mxu0 %v1234
        %1300 = vmatpush.bf16.msra.mxu0 %v1232
        %1301 = vmatpush.bf16.msra.mxu0 %v1230
        %1302 = vmatmul.bf16.gmra.mxu0 %v600
        %v1303 = vpop.f32.mrf.mxu0
        %v1304 = vadd.f32 %v1132, %v1303
        %v1305 = vpop.f32.mrf.mxu0
        %1306 = vdwg.mxu0
        %1307 = vmatpush.bf16.msra.mxu0 %v1260
        %1308 = vmatpush.bf16.msra.mxu0 %v1258
        %1309 = vmatpush.bf16.msra.mxu0 %v1256
        %1310 = vmatpush.bf16.msra.mxu0 %v1254
        %1311 = vmatpush.bf16.msra.mxu0 %v1252
        %1312 = vmatpush.bf16.msra.mxu0 %v1250
        %1313 = vmatpush.bf16.msra.mxu0 %v1248
        %1314 = vmatpush.bf16.msra.mxu0 %v1246
        %1315 = vmatmul.bf16.gmra.mxu0 %v601
        %v1316 = vpop.f32.mrf.mxu0
        %v1317 = vadd.f32 %v1304, %v1316
        %v1318 = vpop.f32.mrf.mxu0
        %1319 = vdwg.mxu0
        %1320 = vmatpush.bf16.msra.mxu0 %v1245
        %1321 = vmatpush.bf16.msra.mxu0 %v1243
        %1322 = vmatpush.bf16.msra.mxu0 %v1241
        %1323 = vmatpush.bf16.msra.mxu0 %v1239
        %1324 = vmatpush.bf16.msra.mxu0 %v1237
        %1325 = vmatpush.bf16.msra.mxu0 %v1235
        %1326 = vmatpush.bf16.msra.mxu0 %v1233
        %1327 = vmatpush.bf16.msra.mxu0 %v1231
        %1328 = vmatmul.bf16.gmra.mxu0 %v600
        %v1329 = vpop.f32.mrf.mxu0
        %v1330 = vadd.f32 %v1133, %v1329
        %v1331 = vpop.f32.mrf.mxu0
        %1332 = vdwg.mxu0
        %1333 = vmatpush.bf16.msra.mxu0 %v1261
        %1334 = vmatpush.bf16.msra.mxu0 %v1259
        %1335 = vmatpush.bf16.msra.mxu0 %v1257
        %1336 = vmatpush.bf16.msra.mxu0 %v1255
        %1337 = vmatpush.bf16.msra.mxu0 %v1253
        %1338 = vmatpush.bf16.msra.mxu0 %v1251
        %1339 = vmatpush.bf16.msra.mxu0 %v1249
        %1340 = vmatpush.bf16.msra.mxu0 %v1247
        %1341 = vmatmul.bf16.gmra.mxu0 %v601
        %v1342 = vpop.f32.mrf.mxu0
        %v1343 = vadd.f32 %v1330, %v1342
        %v1344 = vpop.f32.mrf.mxu0
        %1345 = vdwg.mxu0
        %v1346 = vpack.c.bf16 %v825, %v825
        %v1347 = vpack.c.bf16 %v1071, %v1071
        %v1348 = vpack.c.bf16 %v1317, %v1317
        %v1350 = vperm.slane %v603, 0
        %1352 = vmatpush.bf16.xpose.msra.mxu0 0
        %1353 = vmatpush.bf16.xpose.msra.mxu0 0
        %1354 = vmatpush.bf16.xpose.msra.mxu0 0
        %1355 = vmatpush.bf16.xpose.msra.mxu0 0
        %1356 = vmatpush.bf16.xpose.msra.mxu0 0
        %1357 = vmatpush.bf16.xpose.msra.mxu0 0
        %1358 = vmatpush.bf16.xpose.msra.mxu0 0
        %1359 = vmatpush.bf16.xpose.msra.mxu0 %v1347
        %1360 = vmatmul.bf16.gmra.mxu0 %v1346
        %v1361 = vpop.f32.mrf.mxu0
        %v1362 = vadd.f32 %v1350, %v1361
        %v1363 = vpop.f32.mrf.mxu0
        %1364 = vdwg.mxu0
        %vm1365 = vcmask 64512
        %v1366 = vsel %vm1365, %v1362, -inf
        %1367 = vmax.xlane.f32.xlu0 %v1366
        %v1368 = vpop.xlane.xlu0 %1367
        %v1369 = vsub.f32 %v1362, %v1368
        %v1370 = vmul.f32 %v1369, 1.442695
        %v1371 = vpow.pop %v1370
        %v1372 = vsel %vm1365, %v1371, 0.0
        %1373 = vadd.xlane.f32.xlu0 %v1372
        %v1374 = vpop.xlane.xlu0 %1373
        %v1375 = vrcp.pop %v1374
        %v1376 = vmul.f32 %v1371, %v1375
        %v1377 = vpack.c.bf16 %v1376, %v1376
        %v1379 = vsel %vm1365, %v1377, 0
        %vm1381 = vcmask 1043456
        %v1383 = vsel %vm1381, %v1348, 0
        %1385 = vmatpush.bf16.msra.mxu0 0
        %1386 = vmatpush.bf16.msra.mxu0 0
        %1387 = vmatpush.bf16.msra.mxu0 0
        %1388 = vmatpush.bf16.msra.mxu0 0
        %1389 = vmatpush.bf16.msra.mxu0 0
        %1390 = vmatpush.bf16.msra.mxu0 0
        %1391 = vmatpush.bf16.msra.mxu0 0
        %1392 = vmatpush.bf16.msra.mxu0 %v1383
        %1393 = vmatmul.bf16.gmra.mxu0 %v1379
        %v1394 = vpop.f32.mrf.mxu0
        %v1395 = vadd.f32 0.0, %v1394
        %v1396 = vpop.f32.mrf.mxu0
        %1397 = vdwg.mxu0
        %1398 = vst [vmem:[#allocation2] sm:$0xff] %v1395
        %v1399 = vpack.c.bf16 %v851, %v851
        %v1400 = vpack.c.bf16 %v1097, %v1097
        %v1401 = vpack.c.bf16 %v1343, %v1343
        %1402 = vmatpush.bf16.xpose.msra.mxu0 0
        %1403 = vmatpush.bf16.xpose.msra.mxu0 0
        %1404 = vmatpush.bf16.xpose.msra.mxu0 0
        %1405 = vmatpush.bf16.xpose.msra.mxu0 0
        %1406 = vmatpush.bf16.xpose.msra.mxu0 0
        %1407 = vmatpush.bf16.xpose.msra.mxu0 0
        %1408 = vmatpush.bf16.xpose.msra.mxu0 0
        %1409 = vmatpush.bf16.xpose.msra.mxu0 %v1400
        %1410 = vmatmul.bf16.gmra.mxu0 %v1399
        %v1411 = vpop.f32.mrf.mxu0
        %v1412 = vadd.f32 %v1350, %v1411
        %v1413 = vpop.f32.mrf.mxu0
        %1414 = vdwg.mxu0
        %v1415 = vsel %vm1365, %v1412, -inf
        %1416 = vmax.xlane.f32.xlu0 %v1415
        %v1417 = vpop.xlane.xlu0 %1416
        %v1418 = vsub.f32 %v1412, %v1417
        %v1419 = vmul.f32 %v1418, 1.442695
        %v1420 = vpow.pop %v1419
        %v1421 = vsel %vm1365, %v1420, 0.0
        %1422 = vadd.xlane.f32.xlu0 %v1421
        %v1423 = vpop.xlane.xlu0 %1422
        %v1424 = vrcp.pop %v1423
        %v1425 = vmul.f32 %v1420, %v1424
        %v1426 = vpack.c.bf16 %v1425, %v1425
        %v1428 = vsel %vm1365, %v1426, 0
        %v1431 = vsel %vm1381, %v1401, 0
        %1433 = vmatpush.bf16.msra.mxu0 0
        %1434 = vmatpush.bf16.msra.mxu0 0
        %1435 = vmatpush.bf16.msra.mxu0 0
        %1436 = vmatpush.bf16.msra.mxu0 0
        %1437 = vmatpush.bf16.msra.mxu0 0
        %1438 = vmatpush.bf16.msra.mxu0 0
        %1439 = vmatpush.bf16.msra.mxu0 0
        %1440 = vmatpush.bf16.msra.mxu0 %v1431
        %1441 = vmatmul.bf16.gmra.mxu0 %v1428
        %v1442 = vpop.f32.mrf.mxu0
        %v1443 = vadd.f32 0.0, %v1442
        %v1444 = vpop.f32.mrf.mxu0
        %1445 = vdwg.mxu0
        %1446 = vst [vmem:[#allocation2 + $0x8] sm:$0xff] %v1443
        %v1447 = vld [vmem:[#allocation2] sm:$0xff]
        %v1448 = vld [vmem:[#allocation2 + $0x8] sm:$0xff]
        %v1449 = vpack.c.bf16 %v1447, %v1447
        %v1450 = vpack.c.bf16 %v1448, %v1448
        %v1451 = vld [vmem:[#allocation14] sm:$0xff]
        %v1452 = vld [vmem:[#allocation14 + $0x8] sm:$0xff]
        %v1453 = vld [vmem:[#allocation14 + $0x10] sm:$0xff]
        %v1454 = vld [vmem:[#allocation14 + $0x18] sm:$0xff]
        %v1455 = vld [vmem:[#allocation14 + $0x20] sm:$0xff]
        %v1456 = vld [vmem:[#allocation14 + $0x28] sm:$0xff]
        %v1457 = vld [vmem:[#allocation14 + $0x30] sm:$0xff]
        %v1458 = vld [vmem:[#allocation14 + $0x38] sm:$0xff]
        %v1459 = vld [vmem:[#allocation14 + $0x40] sm:$0xff]
        %v1460 = vld [vmem:[#allocation14 + $0x48] sm:$0xff]
        %v1461 = vld [vmem:[#allocation14 + $0x50] sm:$0xff]
        %v1462 = vld [vmem:[#allocation14 + $0x58] sm:$0xff]
        %v1463 = vld [vmem:[#allocation14 + $0x60] sm:$0xff]
        %v1464 = vld [vmem:[#allocation14 + $0x68] sm:$0xff]
        %v1465 = vld [vmem:[#allocation14 + $0x70] sm:$0xff]
        %v1466 = vld [vmem:[#allocation14 + $0x78] sm:$0xff]
        %v1467 = vld [vmem:[#allocation14 + $0x80] sm:$0xff]
        %v1468 = vld [vmem:[#allocation14 + $0x88] sm:$0xff]
        %v1469 = vld [vmem:[#allocation14 + $0x90] sm:$0xff]
        %v1470 = vld [vmem:[#allocation14 + $0x98] sm:$0xff]
        %v1471 = vld [vmem:[#allocation14 + $0xa0] sm:$0xff]
        %v1472 = vld [vmem:[#allocation14 + $0xa8] sm:$0xff]
        %v1473 = vld [vmem:[#allocation14 + $0xb0] sm:$0xff]
        %v1474 = vld [vmem:[#allocation14 + $0xb8] sm:$0xff]
        %v1475 = vld [vmem:[#allocation14 + $0xc0] sm:$0xff]
        %v1476 = vld [vmem:[#allocation14 + $0xc8] sm:$0xff]
        %v1477 = vld [vmem:[#allocation14 + $0xd0] sm:$0xff]
        %v1478 = vld [vmem:[#allocation14 + $0xd8] sm:$0xff]
        %v1479 = vld [vmem:[#allocation14 + $0xe0] sm:$0xff]
        %v1480 = vld [vmem:[#allocation14 + $0xe8] sm:$0xff]
        %v1481 = vld [vmem:[#allocation14 + $0xf0] sm:$0xff]
        %v1482 = vld [vmem:[#allocation14 + $0xf8] sm:$0xff]
        %v1483 = vperm.slane %v604, 3
        %v1484 = vperm.slane %v605, 3
        %v1517 = vunpack.c.l.b16 %v1451
        %v1518 = vunpack.c.h.b16 %v1451
        %v1519 = vunpack.c.l.b16 %v1452
        %v1520 = vunpack.c.h.b16 %v1452
        %v1521 = vunpack.c.l.b16 %v1453
        %v1522 = vunpack.c.h.b16 %v1453
        %v1523 = vunpack.c.l.b16 %v1454
        %v1524 = vunpack.c.h.b16 %v1454
        %v1525 = vunpack.c.l.b16 %v1455
        %v1526 = vunpack.c.h.b16 %v1455
        %v1527 = vunpack.c.l.b16 %v1456
        %v1528 = vunpack.c.h.b16 %v1456
        %v1529 = vunpack.c.l.b16 %v1457
        %v1530 = vunpack.c.h.b16 %v1457
        %v1531 = vunpack.c.l.b16 %v1458
        %v1532 = vunpack.c.h.b16 %v1458
        %v1533 = vunpack.c.l.b16 %v1459
        %v1534 = vunpack.c.h.b16 %v1459
        %v1535 = vunpack.c.l.b16 %v1460
        %v1536 = vunpack.c.h.b16 %v1460
        %v1537 = vunpack.c.l.b16 %v1461
        %v1538 = vunpack.c.h.b16 %v1461
        %v1539 = vunpack.c.l.b16 %v1462
        %v1540 = vunpack.c.h.b16 %v1462
        %v1541 = vunpack.c.l.b16 %v1463
        %v1542 = vunpack.c.h.b16 %v1463
        %v1543 = vunpack.c.l.b16 %v1464
        %v1544 = vunpack.c.h.b16 %v1464
        %v1545 = vunpack.c.l.b16 %v1465
        %v1546 = vunpack.c.h.b16 %v1465
        %v1547 = vunpack.c.l.b16 %v1466
        %v1548 = vunpack.c.h.b16 %v1466
        %v1549 = vunpack.c.l.b16 %v1467
        %v1550 = vunpack.c.h.b16 %v1467
        %v1551 = vunpack.c.l.b16 %v1468
        %v1552 = vunpack.c.h.b16 %v1468
        %v1553 = vunpack.c.l.b16 %v1469
        %v1554 = vunpack.c.h.b16 %v1469
        %v1555 = vunpack.c.l.b16 %v1470
        %v1556 = vunpack.c.h.b16 %v1470
        %v1557 = vunpack.c.l.b16 %v1471
        %v1558 = vunpack.c.h.b16 %v1471
        %v1559 = vunpack.c.l.b16 %v1472
        %v1560 = vunpack.c.h.b16 %v1472
        %v1561 = vunpack.c.l.b16 %v1473
        %v1562 = vunpack.c.h.b16 %v1473
        %v1563 = vunpack.c.l.b16 %v1474
        %v1564 = vunpack.c.h.b16 %v1474
        %v1565 = vunpack.c.l.b16 %v1475
        %v1566 = vunpack.c.h.b16 %v1475
        %v1567 = vunpack.c.l.b16 %v1476
        %v1568 = vunpack.c.h.b16 %v1476
        %v1569 = vunpack.c.l.b16 %v1477
        %v1570 = vunpack.c.h.b16 %v1477
        %v1571 = vunpack.c.l.b16 %v1478
        %v1572 = vunpack.c.h.b16 %v1478
        %v1573 = vunpack.c.l.b16 %v1479
        %v1574 = vunpack.c.h.b16 %v1479
        %v1575 = vunpack.c.l.b16 %v1480
        %v1576 = vunpack.c.h.b16 %v1480
        %v1577 = vunpack.c.l.b16 %v1481
        %v1578 = vunpack.c.h.b16 %v1481
        %v1579 = vunpack.c.l.b16 %v1482
        %v1580 = vunpack.c.h.b16 %v1482
        %v1581 = vpack.c.b16 %v1519, %v1517
        %v1582 = vpack.c.b16 %v1520, %v1518
        %v1583 = vpack.c.b16 %v1523, %v1521
        %v1584 = vpack.c.b16 %v1524, %v1522
        %v1585 = vpack.c.b16 %v1527, %v1525
        %v1586 = vpack.c.b16 %v1528, %v1526
        %v1587 = vpack.c.b16 %v1531, %v1529
        %v1588 = vpack.c.b16 %v1532, %v1530
        %v1589 = vpack.c.b16 %v1535, %v1533
        %v1590 = vpack.c.b16 %v1536, %v1534
        %v1591 = vpack.c.b16 %v1539, %v1537
        %v1592 = vpack.c.b16 %v1540, %v1538
        %v1593 = vpack.c.b16 %v1543, %v1541
        %v1594 = vpack.c.b16 %v1544, %v1542
        %v1595 = vpack.c.b16 %v1547, %v1545
        %v1596 = vpack.c.b16 %v1548, %v1546
        %v1597 = vpack.c.b16 %v1551, %v1549
        %v1598 = vpack.c.b16 %v1552, %v1550
        %v1599 = vpack.c.b16 %v1555, %v1553
        %v1600 = vpack.c.b16 %v1556, %v1554
        %v1601 = vpack.c.b16 %v1559, %v1557
        %v1602 = vpack.c.b16 %v1560, %v1558
        %v1603 = vpack.c.b16 %v1563, %v1561
        %v1604 = vpack.c.b16 %v1564, %v1562
        %v1605 = vpack.c.b16 %v1567, %v1565
        %v1606 = vpack.c.b16 %v1568, %v1566
        %v1607 = vpack.c.b16 %v1571, %v1569
        %v1608 = vpack.c.b16 %v1572, %v1570
        %v1609 = vpack.c.b16 %v1575, %v1573
        %v1610 = vpack.c.b16 %v1576, %v1574
        %v1611 = vpack.c.b16 %v1579, %v1577
        %v1612 = vpack.c.b16 %v1580, %v1578
        %1645 = vmatpush.bf16.msra.mxu0 %v1595
        %1646 = vmatpush.bf16.msra.mxu0 %v1593
        %1647 = vmatpush.bf16.msra.mxu0 %v1591
        %1648 = vmatpush.bf16.msra.mxu0 %v1589
        %1649 = vmatpush.bf16.msra.mxu0 %v1587
        %1650 = vmatpush.bf16.msra.mxu0 %v1585
        %1651 = vmatpush.bf16.msra.mxu0 %v1583
        %1652 = vmatpush.bf16.msra.mxu0 %v1581
        %1653 = vmatmul.bf16.gmra.mxu0 %v1449
        %v1654 = vpop.f32.mrf.mxu0
        %v1655 = vadd.f32 %v1483, %v1654
        %v1656 = vpop.f32.mrf.mxu0
        %1657 = vdwg.mxu0
        %1658 = vmatpush.bf16.msra.mxu0 %v1611
        %1659 = vmatpush.bf16.msra.mxu0 %v1609
        %1660 = vmatpush.bf16.msra.mxu0 %v1607
        %1661 = vmatpush.bf16.msra.mxu0 %v1605
        %1662 = vmatpush.bf16.msra.mxu0 %v1603
        %1663 = vmatpush.bf16.msra.mxu0 %v1601
        %1664 = vmatpush.bf16.msra.mxu0 %v1599
        %1665 = vmatpush.bf16.msra.mxu0 %v1597
        %1666 = vmatmul.bf16.gmra.mxu0 %v1450
        %v1667 = vpop.f32.mrf.mxu0
        %v1668 = vadd.f32 %v1655, %v1667
        %v1669 = vpop.f32.mrf.mxu0
        %1670 = vdwg.mxu0
        %1671 = vmatpush.bf16.msra.mxu0 %v1596
        %1672 = vmatpush.bf16.msra.mxu0 %v1594
        %1673 = vmatpush.bf16.msra.mxu0 %v1592
        %1674 = vmatpush.bf16.msra.mxu0 %v1590
        %1675 = vmatpush.bf16.msra.mxu0 %v1588
        %1676 = vmatpush.bf16.msra.mxu0 %v1586
        %1677 = vmatpush.bf16.msra.mxu0 %v1584
        %1678 = vmatpush.bf16.msra.mxu0 %v1582
        %1679 = vmatmul.bf16.gmra.mxu0 %v1449
        %v1680 = vpop.f32.mrf.mxu0
        %v1681 = vadd.f32 %v1484, %v1680
        %v1682 = vpop.f32.mrf.mxu0
        %1683 = vdwg.mxu0
        %1684 = vmatpush.bf16.msra.mxu0 %v1612
        %1685 = vmatpush.bf16.msra.mxu0 %v1610
        %1686 = vmatpush.bf16.msra.mxu0 %v1608
        %1687 = vmatpush.bf16.msra.mxu0 %v1606
        %1688 = vmatpush.bf16.msra.mxu0 %v1604
        %1689 = vmatpush.bf16.msra.mxu0 %v1602
        %1690 = vmatpush.bf16.msra.mxu0 %v1600
        %1691 = vmatpush.bf16.msra.mxu0 %v1598
        %1692 = vmatmul.bf16.gmra.mxu0 %v1450
        %v1693 = vpop.f32.mrf.mxu0
        %v1694 = vadd.f32 %v1681, %v1693
        %v1695 = vpop.f32.mrf.mxu0
        %1696 = vdwg.mxu0
        %v1697 = vadd.f32 %v594, %v1668
        %v1698 = vadd.f32 %v595, %v1694
        %v1699 = vadd.f32 %v1697, %v1698
        %1700 = vadd.xlane.f32.xlu0 %v1699
        %v1701 = vpop.xlane.xlu0 %1700
        %v1702 = vrcp.pop 256.0
        %v1703 = vmul.f32 256.0, %v1702
        %v1704 = vsub.f32 1.0, %v1703
        %v1705 = vmul.f32 %v1702, %v1704
        %v1706 = vadd.f32 %v1702, %v1705
        %vm1707 = vweird.f32 %v1702
        %v1708 = vsel %vm1707, %v1702, %v1706
        %v1709 = vmul.f32 %v1701, %v1708
        %v1710 = vsub.f32 %v1697, %v1709
        %v1711 = vsub.f32 %v1698, %v1709
        %v1712 = vmul.f32 %v1710, %v1710
        %v1713 = vmul.f32 %v1711, %v1711
        %v1714 = vadd.f32 %v1712, %v1713
        %1715 = vadd.xlane.f32.xlu0 %v1714
        %v1716 = vpop.xlane.xlu0 %1715
        %v1717 = vmul.f32 %v1716, %v1708
        %v1718 = vadd.f32 %v1717, 1e-05
        %v1719 = vrsqrt.pop %v1718
        %v1720 = vmul.f32 %v1719, %v1718
        %v1721 = vmul.f32 %v1720, %v1719
        %v1722 = vmul.f32 0.5, %v1721
        %v1723 = vsub.f32 1.5, %v1722
        %v1724 = vmul.f32 %v1719, %v1723
        %vm1725 = vweird.f32 %v1718
        %vm1726 = vweird.f32 %v1719
        %vm1727 = vmor %vm1725, %vm1726
        %v1728 = vsel %vm1727, %v1719, %v1724
        %v1729 = vmul.f32 %v1710, %v1728
        %v1730 = vmul.f32 %v1711, %v1728
        %v1731 = vperm.slane %v604, 4
        %v1732 = vperm.slane %v605, 4
        %v1733 = vmul.f32 %v1729, %v1731
        %v1734 = vmul.f32 %v1730, %v1732
        %v1735 = vperm.slane %v604, 5
        %v1736 = vperm.slane %v605, 5
        %v1737 = vadd.f32 %v1733, %v1735
        %v1738 = vadd.f32 %v1734, %v1736
        %v1739 = vpack.c.bf16 %v1737, %v1737
        %v1740 = vpack.c.bf16 %v1738, %v1738
        %v1741 = vld [vmem:[#allocation15] sm:$0xff]
        %v1742 = vld [vmem:[#allocation15 + $0x8] sm:$0xff]
        %v1743 = vld [vmem:[#allocation15 + $0x10] sm:$0xff]
        %v1744 = vld [vmem:[#allocation15 + $0x18] sm:$0xff]
        %v1745 = vld [vmem:[#allocation15 + $0x20] sm:$0xff]
        %v1746 = vld [vmem:[#allocation15 + $0x28] sm:$0xff]
        %v1747 = vld [vmem:[#allocation15 + $0x30] sm:$0xff]
        %v1748 = vld [vmem:[#allocation15 + $0x38] sm:$0xff]
        %v1749 = vld [vmem:[#allocation15 + $0x40] sm:$0xff]
        %v1750 = vld [vmem:[#allocation15 + $0x48] sm:$0xff]
        %v1751 = vld [vmem:[#allocation15 + $0x50] sm:$0xff]
        %v1752 = vld [vmem:[#allocation15 + $0x58] sm:$0xff]
        %v1753 = vld [vmem:[#allocation15 + $0x60] sm:$0xff]
        %v1754 = vld [vmem:[#allocation15 + $0x68] sm:$0xff]
        %v1755 = vld [vmem:[#allocation15 + $0x70] sm:$0xff]
        %v1756 = vld [vmem:[#allocation15 + $0x78] sm:$0xff]
        %v1757 = vld [vmem:[#allocation15 + $0x80] sm:$0xff]
        %v1758 = vld [vmem:[#allocation15 + $0x88] sm:$0xff]
        %v1759 = vld [vmem:[#allocation15 + $0x90] sm:$0xff]
        %v1760 = vld [vmem:[#allocation15 + $0x98] sm:$0xff]
        %v1761 = vld [vmem:[#allocation15 + $0xa0] sm:$0xff]
        %v1762 = vld [vmem:[#allocation15 + $0xa8] sm:$0xff]
        %v1763 = vld [vmem:[#allocation15 + $0xb0] sm:$0xff]
        %v1764 = vld [vmem:[#allocation15 + $0xb8] sm:$0xff]
        %v1765 = vld [vmem:[#allocation15 + $0xc0] sm:$0xff]
        %v1766 = vld [vmem:[#allocation15 + $0xc8] sm:$0xff]
        %v1767 = vld [vmem:[#allocation15 + $0xd0] sm:$0xff]
        %v1768 = vld [vmem:[#allocation15 + $0xd8] sm:$0xff]
        %v1769 = vld [vmem:[#allocation15 + $0xe0] sm:$0xff]
        %v1770 = vld [vmem:[#allocation15 + $0xe8] sm:$0xff]
        %v1771 = vld [vmem:[#allocation15 + $0xf0] sm:$0xff]
        %v1772 = vld [vmem:[#allocation15 + $0xf8] sm:$0xff]
        %v1773 = vld [vmem:[#allocation15 + $0x100] sm:$0xff]
        %v1774 = vld [vmem:[#allocation15 + $0x108] sm:$0xff]
        %v1775 = vld [vmem:[#allocation15 + $0x110] sm:$0xff]
        %v1776 = vld [vmem:[#allocation15 + $0x118] sm:$0xff]
        %v1777 = vld [vmem:[#allocation15 + $0x120] sm:$0xff]
        %v1778 = vld [vmem:[#allocation15 + $0x128] sm:$0xff]
        %v1779 = vld [vmem:[#allocation15 + $0x130] sm:$0xff]
        %v1780 = vld [vmem:[#allocation15 + $0x138] sm:$0xff]
        %v1781 = vld [vmem:[#allocation15 + $0x140] sm:$0xff]
        %v1782 = vld [vmem:[#allocation15 + $0x148] sm:$0xff]
        %v1783 = vld [vmem:[#allocation15 + $0x150] sm:$0xff]
        %v1784 = vld [vmem:[#allocation15 + $0x158] sm:$0xff]
        %v1785 = vld [vmem:[#allocation15 + $0x160] sm:$0xff]
        %v1786 = vld [vmem:[#allocation15 + $0x168] sm:$0xff]
        %v1787 = vld [vmem:[#allocation15 + $0x170] sm:$0xff]
        %v1788 = vld [vmem:[#allocation15 + $0x178] sm:$0xff]
        %v1789 = vld [vmem:[#allocation15 + $0x180] sm:$0xff]
        %v1790 = vld [vmem:[#allocation15 + $0x188] sm:$0xff]
        %v1791 = vld [vmem:[#allocation15 + $0x190] sm:$0xff]
        %v1792 = vld [vmem:[#allocation15 + $0x198] sm:$0xff]
        %v1793 = vld [vmem:[#allocation15 + $0x1a0] sm:$0xff]
        %v1794 = vld [vmem:[#allocation15 + $0x1a8] sm:$0xff]
        %v1795 = vld [vmem:[#allocation15 + $0x1b0] sm:$0xff]
        %v1796 = vld [vmem:[#allocation15 + $0x1b8] sm:$0xff]
        %v1797 = vld [vmem:[#allocation15 + $0x1c0] sm:$0xff]
        %v1798 = vld [vmem:[#allocation15 + $0x1c8] sm:$0xff]
        %v1799 = vld [vmem:[#allocation15 + $0x1d0] sm:$0xff]
        %v1800 = vld [vmem:[#allocation15 + $0x1d8] sm:$0xff]
        %v1801 = vld [vmem:[#allocation15 + $0x1e0] sm:$0xff]
        %v1802 = vld [vmem:[#allocation15 + $0x1e8] sm:$0xff]
        %v1803 = vld [vmem:[#allocation15 + $0x1f0] sm:$0xff]
        %v1804 = vld [vmem:[#allocation15 + $0x1f8] sm:$0xff]
        %v1805 = vld [vmem:[%s10] sm:$0xf]
        %v1807 = vperm.slane %v1805, 0
        %v1808 = vperm.slane %v1805, 1
        %v1809 = vperm.slane %v1805, 2
        %v1810 = vperm.slane %v1805, 3
        %v1879 = vunpack.c.l.b16 %v1741
        %v1880 = vunpack.c.h.b16 %v1741
        %v1881 = vunpack.c.l.b16 %v1742
        %v1882 = vunpack.c.h.b16 %v1742
        %v1883 = vunpack.c.l.b16 %v1743
        %v1884 = vunpack.c.h.b16 %v1743
        %v1885 = vunpack.c.l.b16 %v1744
        %v1886 = vunpack.c.h.b16 %v1744
        %v1887 = vunpack.c.l.b16 %v1745
        %v1888 = vunpack.c.h.b16 %v1745
        %v1889 = vunpack.c.l.b16 %v1746
        %v1890 = vunpack.c.h.b16 %v1746
        %v1891 = vunpack.c.l.b16 %v1747
        %v1892 = vunpack.c.h.b16 %v1747
        %v1893 = vunpack.c.l.b16 %v1748
        %v1894 = vunpack.c.h.b16 %v1748
        %v1895 = vunpack.c.l.b16 %v1749
        %v1896 = vunpack.c.h.b16 %v1749
        %v1897 = vunpack.c.l.b16 %v1750
        %v1898 = vunpack.c.h.b16 %v1750
        %v1899 = vunpack.c.l.b16 %v1751
        %v1900 = vunpack.c.h.b16 %v1751
        %v1901 = vunpack.c.l.b16 %v1752
        %v1902 = vunpack.c.h.b16 %v1752
        %v1903 = vunpack.c.l.b16 %v1753
        %v1904 = vunpack.c.h.b16 %v1753
        %v1905 = vunpack.c.l.b16 %v1754
        %v1906 = vunpack.c.h.b16 %v1754
        %v1907 = vunpack.c.l.b16 %v1755
        %v1908 = vunpack.c.h.b16 %v1755
        %v1909 = vunpack.c.l.b16 %v1756
        %v1910 = vunpack.c.h.b16 %v1756
        %v1911 = vunpack.c.l.b16 %v1757
        %v1912 = vunpack.c.h.b16 %v1757
        %v1913 = vunpack.c.l.b16 %v1758
        %v1914 = vunpack.c.h.b16 %v1758
        %v1915 = vunpack.c.l.b16 %v1759
        %v1916 = vunpack.c.h.b16 %v1759
        %v1917 = vunpack.c.l.b16 %v1760
        %v1918 = vunpack.c.h.b16 %v1760
        %v1919 = vunpack.c.l.b16 %v1761
        %v1920 = vunpack.c.h.b16 %v1761
        %v1921 = vunpack.c.l.b16 %v1762
        %v1922 = vunpack.c.h.b16 %v1762
        %v1923 = vunpack.c.l.b16 %v1763
        %v1924 = vunpack.c.h.b16 %v1763
        %v1925 = vunpack.c.l.b16 %v1764
        %v1926 = vunpack.c.h.b16 %v1764
        %v1927 = vunpack.c.l.b16 %v1765
        %v1928 = vunpack.c.h.b16 %v1765
        %v1929 = vunpack.c.l.b16 %v1766
        %v1930 = vunpack.c.h.b16 %v1766
        %v1931 = vunpack.c.l.b16 %v1767
        %v1932 = vunpack.c.h.b16 %v1767
        %v1933 = vunpack.c.l.b16 %v1768
        %v1934 = vunpack.c.h.b16 %v1768
        %v1935 = vunpack.c.l.b16 %v1769
        %v1936 = vunpack.c.h.b16 %v1769
        %v1937 = vunpack.c.l.b16 %v1770
        %v1938 = vunpack.c.h.b16 %v1770
        %v1939 = vunpack.c.l.b16 %v1771
        %v1940 = vunpack.c.h.b16 %v1771
        %v1941 = vunpack.c.l.b16 %v1772
        %v1942 = vunpack.c.h.b16 %v1772
        %v1943 = vunpack.c.l.b16 %v1773
        %v1944 = vunpack.c.h.b16 %v1773
        %v1945 = vunpack.c.l.b16 %v1774
        %v1946 = vunpack.c.h.b16 %v1774
        %v1947 = vunpack.c.l.b16 %v1775
        %v1948 = vunpack.c.h.b16 %v1775
        %v1949 = vunpack.c.l.b16 %v1776
        %v1950 = vunpack.c.h.b16 %v1776
        %v1951 = vunpack.c.l.b16 %v1777
        %v1952 = vunpack.c.h.b16 %v1777
        %v1953 = vunpack.c.l.b16 %v1778
        %v1954 = vunpack.c.h.b16 %v1778
        %v1955 = vunpack.c.l.b16 %v1779
        %v1956 = vunpack.c.h.b16 %v1779
        %v1957 = vunpack.c.l.b16 %v1780
        %v1958 = vunpack.c.h.b16 %v1780
        %v1959 = vunpack.c.l.b16 %v1781
        %v1960 = vunpack.c.h.b16 %v1781
        %v1961 = vunpack.c.l.b16 %v1782
        %v1962 = vunpack.c.h.b16 %v1782
        %v1963 = vunpack.c.l.b16 %v1783
        %v1964 = vunpack.c.h.b16 %v1783
        %v1965 = vunpack.c.l.b16 %v1784
        %v1966 = vunpack.c.h.b16 %v1784
        %v1967 = vunpack.c.l.b16 %v1785
        %v1968 = vunpack.c.h.b16 %v1785
        %v1969 = vunpack.c.l.b16 %v1786
        %v1970 = vunpack.c.h.b16 %v1786
        %v1971 = vunpack.c.l.b16 %v1787
        %v1972 = vunpack.c.h.b16 %v1787
        %v1973 = vunpack.c.l.b16 %v1788
        %v1974 = vunpack.c.h.b16 %v1788
        %v1975 = vunpack.c.l.b16 %v1789
        %v1976 = vunpack.c.h.b16 %v1789
        %v1977 = vunpack.c.l.b16 %v1790
        %v1978 = vunpack.c.h.b16 %v1790
        %v1979 = vunpack.c.l.b16 %v1791
        %v1980 = vunpack.c.h.b16 %v1791
        %v1981 = vunpack.c.l.b16 %v1792
        %v1982 = vunpack.c.h.b16 %v1792
        %v1983 = vunpack.c.l.b16 %v1793
        %v1984 = vunpack.c.h.b16 %v1793
        %v1985 = vunpack.c.l.b16 %v1794
        %v1986 = vunpack.c.h.b16 %v1794
        %v1987 = vunpack.c.l.b16 %v1795
        %v1988 = vunpack.c.h.b16 %v1795
        %v1989 = vunpack.c.l.b16 %v1796
        %v1990 = vunpack.c.h.b16 %v1796
        %v1991 = vunpack.c.l.b16 %v1797
        %v1992 = vunpack.c.h.b16 %v1797
        %v1993 = vunpack.c.l.b16 %v1798
        %v1994 = vunpack.c.h.b16 %v1798
        %v1995 = vunpack.c.l.b16 %v1799
        %v1996 = vunpack.c.h.b16 %v1799
        %v1997 = vunpack.c.l.b16 %v1800
        %v1998 = vunpack.c.h.b16 %v1800
        %v1999 = vunpack.c.l.b16 %v1801
        %v2000 = vunpack.c.h.b16 %v1801
        %v2001 = vunpack.c.l.b16 %v1802
        %v2002 = vunpack.c.h.b16 %v1802
        %v2003 = vunpack.c.l.b16 %v1803
        %v2004 = vunpack.c.h.b16 %v1803
        %v2005 = vunpack.c.l.b16 %v1804
        %v2006 = vunpack.c.h.b16 %v1804
        %v2007 = vpack.c.b16 %v1883, %v1879
        %v2008 = vpack.c.b16 %v1884, %v1880
        %v2009 = vpack.c.b16 %v1885, %v1881
        %v2010 = vpack.c.b16 %v1886, %v1882
        %v2011 = vpack.c.b16 %v1891, %v1887
        %v2012 = vpack.c.b16 %v1892, %v1888
        %v2013 = vpack.c.b16 %v1893, %v1889
        %v2014 = vpack.c.b16 %v1894, %v1890
        %v2015 = vpack.c.b16 %v1899, %v1895
        %v2016 = vpack.c.b16 %v1900, %v1896
        %v2017 = vpack.c.b16 %v1901, %v1897
        %v2018 = vpack.c.b16 %v1902, %v1898
        %v2019 = vpack.c.b16 %v1907, %v1903
        %v2020 = vpack.c.b16 %v1908, %v1904
        %v2021 = vpack.c.b16 %v1909, %v1905
        %v2022 = vpack.c.b16 %v1910, %v1906
        %v2023 = vpack.c.b16 %v1915, %v1911
        %v2024 = vpack.c.b16 %v1916, %v1912
        %v2025 = vpack.c.b16 %v1917, %v1913
        %v2026 = vpack.c.b16 %v1918, %v1914
        %v2027 = vpack.c.b16 %v1923, %v1919
        %v2028 = vpack.c.b16 %v1924, %v1920
        %v2029 = vpack.c.b16 %v1925, %v1921
        %v2030 = vpack.c.b16 %v1926, %v1922
        %v2031 = vpack.c.b16 %v1931, %v1927
        %v2032 = vpack.c.b16 %v1932, %v1928
        %v2033 = vpack.c.b16 %v1933, %v1929
        %v2034 = vpack.c.b16 %v1934, %v1930
        %v2035 = vpack.c.b16 %v1939, %v1935
        %v2036 = vpack.c.b16 %v1940, %v1936
        %v2037 = vpack.c.b16 %v1941, %v1937
        %v2038 = vpack.c.b16 %v1942, %v1938
        %v2039 = vpack.c.b16 %v1947, %v1943
        %v2040 = vpack.c.b16 %v1948, %v1944
        %v2041 = vpack.c.b16 %v1949, %v1945
        %v2042 = vpack.c.b16 %v1950, %v1946
        %v2043 = vpack.c.b16 %v1955, %v1951
        %v2044 = vpack.c.b16 %v1956, %v1952
        %v2045 = vpack.c.b16 %v1957, %v1953
        %v2046 = vpack.c.b16 %v1958, %v1954
        %v2047 = vpack.c.b16 %v1963, %v1959
        %v2048 = vpack.c.b16 %v1964, %v1960
        %v2049 = vpack.c.b16 %v1965, %v1961
        %v2050 = vpack.c.b16 %v1966, %v1962
        %v2051 = vpack.c.b16 %v1971, %v1967
        %v2052 = vpack.c.b16 %v1972, %v1968
        %v2053 = vpack.c.b16 %v1973, %v1969
        %v2054 = vpack.c.b16 %v1974, %v1970
        %v2055 = vpack.c.b16 %v1979, %v1975
        %v2056 = vpack.c.b16 %v1980, %v1976
        %v2057 = vpack.c.b16 %v1981, %v1977
        %v2058 = vpack.c.b16 %v1982, %v1978
        %v2059 = vpack.c.b16 %v1987, %v1983
        %v2060 = vpack.c.b16 %v1988, %v1984
        %v2061 = vpack.c.b16 %v1989, %v1985
        %v2062 = vpack.c.b16 %v1990, %v1986
        %v2063 = vpack.c.b16 %v1995, %v1991
        %v2064 = vpack.c.b16 %v1996, %v1992
        %v2065 = vpack.c.b16 %v1997, %v1993
        %v2066 = vpack.c.b16 %v1998, %v1994
        %v2067 = vpack.c.b16 %v2003, %v1999
        %v2068 = vpack.c.b16 %v2004, %v2000
        %v2069 = vpack.c.b16 %v2005, %v2001
        %v2070 = vpack.c.b16 %v2006, %v2002
        %2135 = vmatpush.bf16.msra.mxu0 %v2035
        %2136 = vmatpush.bf16.msra.mxu0 %v2031
        %2137 = vmatpush.bf16.msra.mxu0 %v2027
        %2138 = vmatpush.bf16.msra.mxu0 %v2023
        %2139 = vmatpush.bf16.msra.mxu0 %v2019
        %2140 = vmatpush.bf16.msra.mxu0 %v2015
        %2141 = vmatpush.bf16.msra.mxu0 %v2011
        %2142 = vmatpush.bf16.msra.mxu0 %v2007
        %2143 = vmatmul.bf16.gmra.mxu0 %v1739
        %v2144 = vpop.f32.mrf.mxu0
        %v2145 = vadd.f32 %v1807, %v2144
        %v2146 = vpop.f32.mrf.mxu0
        %2147 = vdwg.mxu0
        %2148 = vmatpush.bf16.msra.mxu0 %v2067
        %2149 = vmatpush.bf16.msra.mxu0 %v2063
        %2150 = vmatpush.bf16.msra.mxu0 %v2059
        %2151 = vmatpush.bf16.msra.mxu0 %v2055
        %2152 = vmatpush.bf16.msra.mxu0 %v2051
        %2153 = vmatpush.bf16.msra.mxu0 %v2047
        %2154 = vmatpush.bf16.msra.mxu0 %v2043
        %2155 = vmatpush.bf16.msra.mxu0 %v2039
        %2156 = vmatmul.bf16.gmra.mxu0 %v1740
        %v2157 = vpop.f32.mrf.mxu0
        %v2158 = vadd.f32 %v2145, %v2157
        %v2159 = vpop.f32.mrf.mxu0
        %2160 = vdwg.mxu0
        %2161 = vmatpush.bf16.msra.mxu0 %v2036
        %2162 = vmatpush.bf16.msra.mxu0 %v2032
        %2163 = vmatpush.bf16.msra.mxu0 %v2028
        %2164 = vmatpush.bf16.msra.mxu0 %v2024
        %2165 = vmatpush.bf16.msra.mxu0 %v2020
        %2166 = vmatpush.bf16.msra.mxu0 %v2016
        %2167 = vmatpush.bf16.msra.mxu0 %v2012
        %2168 = vmatpush.bf16.msra.mxu0 %v2008
        %2169 = vmatmul.bf16.gmra.mxu0 %v1739
        %v2170 = vpop.f32.mrf.mxu0
        %v2171 = vadd.f32 %v1808, %v2170
        %v2172 = vpop.f32.mrf.mxu0
        %2173 = vdwg.mxu0
        %2174 = vmatpush.bf16.msra.mxu0 %v2068
        %2175 = vmatpush.bf16.msra.mxu0 %v2064
        %2176 = vmatpush.bf16.msra.mxu0 %v2060
        %2177 = vmatpush.bf16.msra.mxu0 %v2056
        %2178 = vmatpush.bf16.msra.mxu0 %v2052
        %2179 = vmatpush.bf16.msra.mxu0 %v2048
        %2180 = vmatpush.bf16.msra.mxu0 %v2044
        %2181 = vmatpush.bf16.msra.mxu0 %v2040
        %2182 = vmatmul.bf16.gmra.mxu0 %v1740
        %v2183 = vpop.f32.mrf.mxu0
        %v2184 = vadd.f32 %v2171, %v2183
        %v2185 = vpop.f32.mrf.mxu0
        %2186 = vdwg.mxu0
        %2187 = vmatpush.bf16.msra.mxu0 %v2037
        %2188 = vmatpush.bf16.msra.mxu0 %v2033
        %2189 = vmatpush.bf16.msra.mxu0 %v2029
        %2190 = vmatpush.bf16.msra.mxu0 %v2025
        %2191 = vmatpush.bf16.msra.mxu0 %v2021
        %2192 = vmatpush.bf16.msra.mxu0 %v2017
        %2193 = vmatpush.bf16.msra.mxu0 %v2013
        %2194 = vmatpush.bf16.msra.mxu0 %v2009
        %2195 = vmatmul.bf16.gmra.mxu0 %v1739
        %v2196 = vpop.f32.mrf.mxu0
        %v2197 = vadd.f32 %v1809, %v2196
        %v2198 = vpop.f32.mrf.mxu0
        %2199 = vdwg.mxu0
        %2200 = vmatpush.bf16.msra.mxu0 %v2069
        %2201 = vmatpush.bf16.msra.mxu0 %v2065
        %2202 = vmatpush.bf16.msra.mxu0 %v2061
        %2203 = vmatpush.bf16.msra.mxu0 %v2057
        %2204 = vmatpush.bf16.msra.mxu0 %v2053
        %2205 = vmatpush.bf16.msra.mxu0 %v2049
        %2206 = vmatpush.bf16.msra.mxu0 %v2045
        %2207 = vmatpush.bf16.msra.mxu0 %v2041
        %2208 = vmatmul.bf16.gmra.mxu0 %v1740
        %v2209 = vpop.f32.mrf.mxu0
        %v2210 = vadd.f32 %v2197, %v2209
        %v2211 = vpop.f32.mrf.mxu0
        %2212 = vdwg.mxu0
        %2213 = vmatpush.bf16.msra.mxu0 %v2038
        %2214 = vmatpush.bf16.msra.mxu0 %v2034
        %2215 = vmatpush.bf16.msra.mxu0 %v2030
        %2216 = vmatpush.bf16.msra.mxu0 %v2026
        %2217 = vmatpush.bf16.msra.mxu0 %v2022
        %2218 = vmatpush.bf16.msra.mxu0 %v2018
        %2219 = vmatpush.bf16.msra.mxu0 %v2014
        %2220 = vmatpush.bf16.msra.mxu0 %v2010
        %2221 = vmatmul.bf16.gmra.mxu0 %v1739
        %v2222 = vpop.f32.mrf.mxu0
        %v2223 = vadd.f32 %v1810, %v2222
        %v2224 = vpop.f32.mrf.mxu0
        %2225 = vdwg.mxu0
        %2226 = vmatpush.bf16.msra.mxu0 %v2070
        %2227 = vmatpush.bf16.msra.mxu0 %v2066
        %2228 = vmatpush.bf16.msra.mxu0 %v2062
        %2229 = vmatpush.bf16.msra.mxu0 %v2058
        %2230 = vmatpush.bf16.msra.mxu0 %v2054
        %2231 = vmatpush.bf16.msra.mxu0 %v2050
        %2232 = vmatpush.bf16.msra.mxu0 %v2046
        %2233 = vmatpush.bf16.msra.mxu0 %v2042
        %2234 = vmatmul.bf16.gmra.mxu0 %v1740
        %v2235 = vpop.f32.mrf.mxu0
        %v2236 = vadd.f32 %v2223, %v2235
        %v2237 = vpop.f32.mrf.mxu0
        %2238 = vdwg.mxu0
        %v2239 = vmax.f32 %v2158, 0.0
        %v2240 = vmax.f32 %v2184, 0.0
        %v2241 = vmax.f32 %v2210, 0.0
        %v2242 = vmax.f32 %v2236, 0.0
        %v2243 = vpack.c.bf16 %v2239, %v2239
        %v2244 = vpack.c.bf16 %v2240, %v2240
        %v2245 = vpack.c.bf16 %v2241, %v2241
        %v2246 = vpack.c.bf16 %v2242, %v2242
        %v2247 = vld [vmem:[#allocation17] sm:$0xff]
        %v2248 = vld [vmem:[#allocation17 + $0x8] sm:$0xff]
        %v2249 = vld [vmem:[#allocation17 + $0x10] sm:$0xff]
        %v2250 = vld [vmem:[#allocation17 + $0x18] sm:$0xff]
        %v2251 = vld [vmem:[#allocation17 + $0x20] sm:$0xff]
        %v2252 = vld [vmem:[#allocation17 + $0x28] sm:$0xff]
        %v2253 = vld [vmem:[#allocation17 + $0x30] sm:$0xff]
        %v2254 = vld [vmem:[#allocation17 + $0x38] sm:$0xff]
        %v2255 = vld [vmem:[#allocation17 + $0x40] sm:$0xff]
        %v2256 = vld [vmem:[#allocation17 + $0x48] sm:$0xff]
        %v2257 = vld [vmem:[#allocation17 + $0x50] sm:$0xff]
        %v2258 = vld [vmem:[#allocation17 + $0x58] sm:$0xff]
        %v2259 = vld [vmem:[#allocation17 + $0x60] sm:$0xff]
        %v2260 = vld [vmem:[#allocation17 + $0x68] sm:$0xff]
        %v2261 = vld [vmem:[#allocation17 + $0x70] sm:$0xff]
        %v2262 = vld [vmem:[#allocation17 + $0x78] sm:$0xff]
        %v2263 = vld [vmem:[#allocation17 + $0x80] sm:$0xff]
        %v2264 = vld [vmem:[#allocation17 + $0x88] sm:$0xff]
        %v2265 = vld [vmem:[#allocation17 + $0x90] sm:$0xff]
        %v2266 = vld [vmem:[#allocation17 + $0x98] sm:$0xff]
        %v2267 = vld [vmem:[#allocation17 + $0xa0] sm:$0xff]
        %v2268 = vld [vmem:[#allocation17 + $0xa8] sm:$0xff]
        %v2269 = vld [vmem:[#allocation17 + $0xb0] sm:$0xff]
        %v2270 = vld [vmem:[#allocation17 + $0xb8] sm:$0xff]
        %v2271 = vld [vmem:[#allocation17 + $0xc0] sm:$0xff]
        %v2272 = vld [vmem:[#allocation17 + $0xc8] sm:$0xff]
        %v2273 = vld [vmem:[#allocation17 + $0xd0] sm:$0xff]
        %v2274 = vld [vmem:[#allocation17 + $0xd8] sm:$0xff]
        %v2275 = vld [vmem:[#allocation17 + $0xe0] sm:$0xff]
        %v2276 = vld [vmem:[#allocation17 + $0xe8] sm:$0xff]
        %v2277 = vld [vmem:[#allocation17 + $0xf0] sm:$0xff]
        %v2278 = vld [vmem:[#allocation17 + $0xf8] sm:$0xff]
        %v2279 = vld [vmem:[#allocation17 + $0x100] sm:$0xff]
        %v2280 = vld [vmem:[#allocation17 + $0x108] sm:$0xff]
        %v2281 = vld [vmem:[#allocation17 + $0x110] sm:$0xff]
        %v2282 = vld [vmem:[#allocation17 + $0x118] sm:$0xff]
        %v2283 = vld [vmem:[#allocation17 + $0x120] sm:$0xff]
        %v2284 = vld [vmem:[#allocation17 + $0x128] sm:$0xff]
        %v2285 = vld [vmem:[#allocation17 + $0x130] sm:$0xff]
        %v2286 = vld [vmem:[#allocation17 + $0x138] sm:$0xff]
        %v2287 = vld [vmem:[#allocation17 + $0x140] sm:$0xff]
        %v2288 = vld [vmem:[#allocation17 + $0x148] sm:$0xff]
        %v2289 = vld [vmem:[#allocation17 + $0x150] sm:$0xff]
        %v2290 = vld [vmem:[#allocation17 + $0x158] sm:$0xff]
        %v2291 = vld [vmem:[#allocation17 + $0x160] sm:$0xff]
        %v2292 = vld [vmem:[#allocation17 + $0x168] sm:$0xff]
        %v2293 = vld [vmem:[#allocation17 + $0x170] sm:$0xff]
        %v2294 = vld [vmem:[#allocation17 + $0x178] sm:$0xff]
        %v2295 = vld [vmem:[#allocation17 + $0x180] sm:$0xff]
        %v2296 = vld [vmem:[#allocation17 + $0x188] sm:$0xff]
        %v2297 = vld [vmem:[#allocation17 + $0x190] sm:$0xff]
        %v2298 = vld [vmem:[#allocation17 + $0x198] sm:$0xff]
        %v2299 = vld [vmem:[#allocation17 + $0x1a0] sm:$0xff]
        %v2300 = vld [vmem:[#allocation17 + $0x1a8] sm:$0xff]
        %v2301 = vld [vmem:[#allocation17 + $0x1b0] sm:$0xff]
        %v2302 = vld [vmem:[#allocation17 + $0x1b8] sm:$0xff]
        %v2303 = vld [vmem:[#allocation17 + $0x1c0] sm:$0xff]
        %v2304 = vld [vmem:[#allocation17 + $0x1c8] sm:$0xff]
        %v2305 = vld [vmem:[#allocation17 + $0x1d0] sm:$0xff]
        %v2306 = vld [vmem:[#allocation17 + $0x1d8] sm:$0xff]
        %v2307 = vld [vmem:[#allocation17 + $0x1e0] sm:$0xff]
        %v2308 = vld [vmem:[#allocation17 + $0x1e8] sm:$0xff]
        %v2309 = vld [vmem:[#allocation17 + $0x1f0] sm:$0xff]
        %v2310 = vld [vmem:[#allocation17 + $0x1f8] sm:$0xff]
        %v2311 = vperm.slane %v604, 6
        %v2312 = vperm.slane %v605, 6
        %v2377 = vunpack.c.l.b16 %v2247
        %v2378 = vunpack.c.h.b16 %v2247
        %v2379 = vunpack.c.l.b16 %v2248
        %v2380 = vunpack.c.h.b16 %v2248
        %v2381 = vunpack.c.l.b16 %v2249
        %v2382 = vunpack.c.h.b16 %v2249
        %v2383 = vunpack.c.l.b16 %v2250
        %v2384 = vunpack.c.h.b16 %v2250
        %v2385 = vunpack.c.l.b16 %v2251
        %v2386 = vunpack.c.h.b16 %v2251
        %v2387 = vunpack.c.l.b16 %v2252
        %v2388 = vunpack.c.h.b16 %v2252
        %v2389 = vunpack.c.l.b16 %v2253
        %v2390 = vunpack.c.h.b16 %v2253
        %v2391 = vunpack.c.l.b16 %v2254
        %v2392 = vunpack.c.h.b16 %v2254
        %v2393 = vunpack.c.l.b16 %v2255
        %v2394 = vunpack.c.h.b16 %v2255
        %v2395 = vunpack.c.l.b16 %v2256
        %v2396 = vunpack.c.h.b16 %v2256
        %v2397 = vunpack.c.l.b16 %v2257
        %v2398 = vunpack.c.h.b16 %v2257
        %v2399 = vunpack.c.l.b16 %v2258
        %v2400 = vunpack.c.h.b16 %v2258
        %v2401 = vunpack.c.l.b16 %v2259
        %v2402 = vunpack.c.h.b16 %v2259
        %v2403 = vunpack.c.l.b16 %v2260
        %v2404 = vunpack.c.h.b16 %v2260
        %v2405 = vunpack.c.l.b16 %v2261
        %v2406 = vunpack.c.h.b16 %v2261
        %v2407 = vunpack.c.l.b16 %v2262
        %v2408 = vunpack.c.h.b16 %v2262
        %v2409 = vunpack.c.l.b16 %v2263
        %v2410 = vunpack.c.h.b16 %v2263
        %v2411 = vunpack.c.l.b16 %v2264
        %v2412 = vunpack.c.h.b16 %v2264
        %v2413 = vunpack.c.l.b16 %v2265
        %v2414 = vunpack.c.h.b16 %v2265
        %v2415 = vunpack.c.l.b16 %v2266
        %v2416 = vunpack.c.h.b16 %v2266
        %v2417 = vunpack.c.l.b16 %v2267
        %v2418 = vunpack.c.h.b16 %v2267
        %v2419 = vunpack.c.l.b16 %v2268
        %v2420 = vunpack.c.h.b16 %v2268
        %v2421 = vunpack.c.l.b16 %v2269
        %v2422 = vunpack.c.h.b16 %v2269
        %v2423 = vunpack.c.l.b16 %v2270
        %v2424 = vunpack.c.h.b16 %v2270
        %v2425 = vunpack.c.l.b16 %v2271
        %v2426 = vunpack.c.h.b16 %v2271
        %v2427 = vunpack.c.l.b16 %v2272
        %v2428 = vunpack.c.h.b16 %v2272
        %v2429 = vunpack.c.l.b16 %v2273
        %v2430 = vunpack.c.h.b16 %v2273
        %v2431 = vunpack.c.l.b16 %v2274
        %v2432 = vunpack.c.h.b16 %v2274
        %v2433 = vunpack.c.l.b16 %v2275
        %v2434 = vunpack.c.h.b16 %v2275
        %v2435 = vunpack.c.l.b16 %v2276
        %v2436 = vunpack.c.h.b16 %v2276
        %v2437 = vunpack.c.l.b16 %v2277
        %v2438 = vunpack.c.h.b16 %v2277
        %v2439 = vunpack.c.l.b16 %v2278
        %v2440 = vunpack.c.h.b16 %v2278
        %v2441 = vunpack.c.l.b16 %v2279
        %v2442 = vunpack.c.h.b16 %v2279
        %v2443 = vunpack.c.l.b16 %v2280
        %v2444 = vunpack.c.h.b16 %v2280
        %v2445 = vunpack.c.l.b16 %v2281
        %v2446 = vunpack.c.h.b16 %v2281
        %v2447 = vunpack.c.l.b16 %v2282
        %v2448 = vunpack.c.h.b16 %v2282
        %v2449 = vunpack.c.l.b16 %v2283
        %v2450 = vunpack.c.h.b16 %v2283
        %v2451 = vunpack.c.l.b16 %v2284
        %v2452 = vunpack.c.h.b16 %v2284
        %v2453 = vunpack.c.l.b16 %v2285
        %v2454 = vunpack.c.h.b16 %v2285
        %v2455 = vunpack.c.l.b16 %v2286
        %v2456 = vunpack.c.h.b16 %v2286
        %v2457 = vunpack.c.l.b16 %v2287
        %v2458 = vunpack.c.h.b16 %v2287
        %v2459 = vunpack.c.l.b16 %v2288
        %v2460 = vunpack.c.h.b16 %v2288
        %v2461 = vunpack.c.l.b16 %v2289
        %v2462 = vunpack.c.h.b16 %v2289
        %v2463 = vunpack.c.l.b16 %v2290
        %v2464 = vunpack.c.h.b16 %v2290
        %v2465 = vunpack.c.l.b16 %v2291
        %v2466 = vunpack.c.h.b16 %v2291
        %v2467 = vunpack.c.l.b16 %v2292
        %v2468 = vunpack.c.h.b16 %v2292
        %v2469 = vunpack.c.l.b16 %v2293
        %v2470 = vunpack.c.h.b16 %v2293
        %v2471 = vunpack.c.l.b16 %v2294
        %v2472 = vunpack.c.h.b16 %v2294
        %v2473 = vunpack.c.l.b16 %v2295
        %v2474 = vunpack.c.h.b16 %v2295
        %v2475 = vunpack.c.l.b16 %v2296
        %v2476 = vunpack.c.h.b16 %v2296
        %v2477 = vunpack.c.l.b16 %v2297
        %v2478 = vunpack.c.h.b16 %v2297
        %v2479 = vunpack.c.l.b16 %v2298
        %v2480 = vunpack.c.h.b16 %v2298
        %v2481 = vunpack.c.l.b16 %v2299
        %v2482 = vunpack.c.h.b16 %v2299
        %v2483 = vunpack.c.l.b16 %v2300
        %v2484 = vunpack.c.h.b16 %v2300
        %v2485 = vunpack.c.l.b16 %v2301
        %v2486 = vunpack.c.h.b16 %v2301
        %v2487 = vunpack.c.l.b16 %v2302
        %v2488 = vunpack.c.h.b16 %v2302
        %v2489 = vunpack.c.l.b16 %v2303
        %v2490 = vunpack.c.h.b16 %v2303
        %v2491 = vunpack.c.l.b16 %v2304
        %v2492 = vunpack.c.h.b16 %v2304
        %v2493 = vunpack.c.l.b16 %v2305
        %v2494 = vunpack.c.h.b16 %v2305
        %v2495 = vunpack.c.l.b16 %v2306
        %v2496 = vunpack.c.h.b16 %v2306
        %v2497 = vunpack.c.l.b16 %v2307
        %v2498 = vunpack.c.h.b16 %v2307
        %v2499 = vunpack.c.l.b16 %v2308
        %v2500 = vunpack.c.h.b16 %v2308
        %v2501 = vunpack.c.l.b16 %v2309
        %v2502 = vunpack.c.h.b16 %v2309
        %v2503 = vunpack.c.l.b16 %v2310
        %v2504 = vunpack.c.h.b16 %v2310
        %v2505 = vpack.c.b16 %v2379, %v2377
        %v2506 = vpack.c.b16 %v2380, %v2378
        %v2507 = vpack.c.b16 %v2383, %v2381
        %v2508 = vpack.c.b16 %v2384, %v2382
        %v2509 = vpack.c.b16 %v2387, %v2385
        %v2510 = vpack.c.b16 %v2388, %v2386
        %v2511 = vpack.c.b16 %v2391, %v2389
        %v2512 = vpack.c.b16 %v2392, %v2390
        %v2513 = vpack.c.b16 %v2395, %v2393
        %v2514 = vpack.c.b16 %v2396, %v2394
        %v2515 = vpack.c.b16 %v2399, %v2397
        %v2516 = vpack.c.b16 %v2400, %v2398
        %v2517 = vpack.c.b16 %v2403, %v2401
        %v2518 = vpack.c.b16 %v2404, %v2402
        %v2519 = vpack.c.b16 %v2407, %v2405
        %v2520 = vpack.c.b16 %v2408, %v2406
        %v2521 = vpack.c.b16 %v2411, %v2409
        %v2522 = vpack.c.b16 %v2412, %v2410
        %v2523 = vpack.c.b16 %v2415, %v2413
        %v2524 = vpack.c.b16 %v2416, %v2414
        %v2525 = vpack.c.b16 %v2419, %v2417
        %v2526 = vpack.c.b16 %v2420, %v2418
        %v2527 = vpack.c.b16 %v2423, %v2421
        %v2528 = vpack.c.b16 %v2424, %v2422
        %v2529 = vpack.c.b16 %v2427, %v2425
        %v2530 = vpack.c.b16 %v2428, %v2426
        %v2531 = vpack.c.b16 %v2431, %v2429
        %v2532 = vpack.c.b16 %v2432, %v2430
        %v2533 = vpack.c.b16 %v2435, %v2433
        %v2534 = vpack.c.b16 %v2436, %v2434
        %v2535 = vpack.c.b16 %v2439, %v2437
        %v2536 = vpack.c.b16 %v2440, %v2438
        %v2537 = vpack.c.b16 %v2443, %v2441
        %v2538 = vpack.c.b16 %v2444, %v2442
        %v2539 = vpack.c.b16 %v2447, %v2445
        %v2540 = vpack.c.b16 %v2448, %v2446
        %v2541 = vpack.c.b16 %v2451, %v2449
        %v2542 = vpack.c.b16 %v2452, %v2450
        %v2543 = vpack.c.b16 %v2455, %v2453
        %v2544 = vpack.c.b16 %v2456, %v2454
        %v2545 = vpack.c.b16 %v2459, %v2457
        %v2546 = vpack.c.b16 %v2460, %v2458
        %v2547 = vpack.c.b16 %v2463, %v2461
        %v2548 = vpack.c.b16 %v2464, %v2462
        %v2549 = vpack.c.b16 %v2467, %v2465
        %v2550 = vpack.c.b16 %v2468, %v2466
        %v2551 = vpack.c.b16 %v2471, %v2469
        %v2552 = vpack.c.b16 %v2472, %v2470
        %v2553 = vpack.c.b16 %v2475, %v2473
        %v2554 = vpack.c.b16 %v2476, %v2474
        %v2555 = vpack.c.b16 %v2479, %v2477
        %v2556 = vpack.c.b16 %v2480, %v2478
        %v2557 = vpack.c.b16 %v2483, %v2481
        %v2558 = vpack.c.b16 %v2484, %v2482
        %v2559 = vpack.c.b16 %v2487, %v2485
        %v2560 = vpack.c.b16 %v2488, %v2486
        %v2561 = vpack.c.b16 %v2491, %v2489
        %v2562 = vpack.c.b16 %v2492, %v2490
        %v2563 = vpack.c.b16 %v2495, %v2493
        %v2564 = vpack.c.b16 %v2496, %v2494
        %v2565 = vpack.c.b16 %v2499, %v2497
        %v2566 = vpack.c.b16 %v2500, %v2498
        %v2567 = vpack.c.b16 %v2503, %v2501
        %v2568 = vpack.c.b16 %v2504, %v2502
        %2633 = vmatpush.bf16.msra.mxu0 %v2519
        %2634 = vmatpush.bf16.msra.mxu0 %v2517
        %2635 = vmatpush.bf16.msra.mxu0 %v2515
        %2636 = vmatpush.bf16.msra.mxu0 %v2513
        %2637 = vmatpush.bf16.msra.mxu0 %v2511
        %2638 = vmatpush.bf16.msra.mxu0 %v2509
        %2639 = vmatpush.bf16.msra.mxu0 %v2507
        %2640 = vmatpush.bf16.msra.mxu0 %v2505
        %2641 = vmatmul.bf16.gmra.mxu0 %v2243
        %v2642 = vpop.f32.mrf.mxu0
        %v2643 = vadd.f32 %v2311, %v2642
        %v2644 = vpop.f32.mrf.mxu0
        %2645 = vdwg.mxu0
        %2646 = vmatpush.bf16.msra.mxu0 %v2535
        %2647 = vmatpush.bf16.msra.mxu0 %v2533
        %2648 = vmatpush.bf16.msra.mxu0 %v2531
        %2649 = vmatpush.bf16.msra.mxu0 %v2529
        %2650 = vmatpush.bf16.msra.mxu0 %v2527
        %2651 = vmatpush.bf16.msra.mxu0 %v2525
        %2652 = vmatpush.bf16.msra.mxu0 %v2523
        %2653 = vmatpush.bf16.msra.mxu0 %v2521
        %2654 = vmatmul.bf16.gmra.mxu0 %v2244
        %v2655 = vpop.f32.mrf.mxu0
        %v2656 = vadd.f32 %v2643, %v2655
        %v2657 = vpop.f32.mrf.mxu0
        %2658 = vdwg.mxu0
        %2659 = vmatpush.bf16.msra.mxu0 %v2551
        %2660 = vmatpush.bf16.msra.mxu0 %v2549
        %2661 = vmatpush.bf16.msra.mxu0 %v2547
        %2662 = vmatpush.bf16.msra.mxu0 %v2545
        %2663 = vmatpush.bf16.msra.mxu0 %v2543
        %2664 = vmatpush.bf16.msra.mxu0 %v2541
        %2665 = vmatpush.bf16.msra.mxu0 %v2539
        %2666 = vmatpush.bf16.msra.mxu0 %v2537
        %2667 = vmatmul.bf16.gmra.mxu0 %v2245
        %v2668 = vpop.f32.mrf.mxu0
        %v2669 = vadd.f32 %v2656, %v2668
        %v2670 = vpop.f32.mrf.mxu0
        %2671 = vdwg.mxu0
        %2672 = vmatpush.bf16.msra.mxu0 %v2567
        %2673 = vmatpush.bf16.msra.mxu0 %v2565
        %2674 = vmatpush.bf16.msra.mxu0 %v2563
        %2675 = vmatpush.bf16.msra.mxu0 %v2561
        %2676 = vmatpush.bf16.msra.mxu0 %v2559
        %2677 = vmatpush.bf16.msra.mxu0 %v2557
        %2678 = vmatpush.bf16.msra.mxu0 %v2555
        %2679 = vmatpush.bf16.msra.mxu0 %v2553
        %2680 = vmatmul.bf16.gmra.mxu0 %v2246
        %v2681 = vpop.f32.mrf.mxu0
        %v2682 = vadd.f32 %v2669, %v2681
        %v2683 = vpop.f32.mrf.mxu0
        %2684 = vdwg.mxu0
        %2685 = vmatpush.bf16.msra.mxu0 %v2520
        %2686 = vmatpush.bf16.msra.mxu0 %v2518
        %2687 = vmatpush.bf16.msra.mxu0 %v2516
        %2688 = vmatpush.bf16.msra.mxu0 %v2514
        %2689 = vmatpush.bf16.msra.mxu0 %v2512
        %2690 = vmatpush.bf16.msra.mxu0 %v2510
        %2691 = vmatpush.bf16.msra.mxu0 %v2508
        %2692 = vmatpush.bf16.msra.mxu0 %v2506
        %2693 = vmatmul.bf16.gmra.mxu0 %v2243
        %v2694 = vpop.f32.mrf.mxu0
        %v2695 = vadd.f32 %v2312, %v2694
        %v2696 = vpop.f32.mrf.mxu0
        %2697 = vdwg.mxu0
        %2698 = vmatpush.bf16.msra.mxu0 %v2536
        %2699 = vmatpush.bf16.msra.mxu0 %v2534
        %2700 = vmatpush.bf16.msra.mxu0 %v2532
        %2701 = vmatpush.bf16.msra.mxu0 %v2530
        %2702 = vmatpush.bf16.msra.mxu0 %v2528
        %2703 = vmatpush.bf16.msra.mxu0 %v2526
        %2704 = vmatpush.bf16.msra.mxu0 %v2524
        %2705 = vmatpush.bf16.msra.mxu0 %v2522
        %2706 = vmatmul.bf16.gmra.mxu0 %v2244
        %v2707 = vpop.f32.mrf.mxu0
        %v2708 = vadd.f32 %v2695, %v2707
        %v2709 = vpop.f32.mrf.mxu0
        %2710 = vdwg.mxu0
        %2711 = vmatpush.bf16.msra.mxu0 %v2552
        %2712 = vmatpush.bf16.msra.mxu0 %v2550
        %2713 = vmatpush.bf16.msra.mxu0 %v2548
        %2714 = vmatpush.bf16.msra.mxu0 %v2546
        %2715 = vmatpush.bf16.msra.mxu0 %v2544
        %2716 = vmatpush.bf16.msra.mxu0 %v2542
        %2717 = vmatpush.bf16.msra.mxu0 %v2540
        %2718 = vmatpush.bf16.msra.mxu0 %v2538
        %2719 = vmatmul.bf16.gmra.mxu0 %v2245
        %v2720 = vpop.f32.mrf.mxu0
        %v2721 = vadd.f32 %v2708, %v2720
        %v2722 = vpop.f32.mrf.mxu0
        %2723 = vdwg.mxu0
        %2724 = vmatpush.bf16.msra.mxu0 %v2568
        %2725 = vmatpush.bf16.msra.mxu0 %v2566
        %2726 = vmatpush.bf16.msra.mxu0 %v2564
        %2727 = vmatpush.bf16.msra.mxu0 %v2562
        %2728 = vmatpush.bf16.msra.mxu0 %v2560
        %2729 = vmatpush.bf16.msra.mxu0 %v2558
        %2730 = vmatpush.bf16.msra.mxu0 %v2556
        %2731 = vmatpush.bf16.msra.mxu0 %v2554
        %2732 = vmatmul.bf16.gmra.mxu0 %v2246
        %v2733 = vpop.f32.mrf.mxu0
        %v2734 = vadd.f32 %v2721, %v2733
        %v2735 = vpop.f32.mrf.mxu0
        %2736 = vdwg.mxu0
        %v2737 = vadd.f32 %v1737, %v2682
        %v2738 = vadd.f32 %v1738, %v2734
        %v2739 = vadd.f32 %v2737, %v2738
        %2740 = vadd.xlane.f32.xlu0 %v2739
        %v2741 = vpop.xlane.xlu0 %2740
        %v2742 = vmul.f32 %v2741, %v1708
        %v2743 = vsub.f32 %v2737, %v2742
        %v2744 = vsub.f32 %v2738, %v2742
        %v2745 = vmul.f32 %v2743, %v2743
        %v2746 = vmul.f32 %v2744, %v2744
        %v2747 = vadd.f32 %v2745, %v2746
        %2748 = vadd.xlane.f32.xlu0 %v2747
        %v2749 = vpop.xlane.xlu0 %2748
        %v2750 = vmul.f32 %v2749, %v1708
        %v2751 = vadd.f32 %v2750, 1e-05
        %v2752 = vrsqrt.pop %v2751
        %v2753 = vmul.f32 %v2752, %v2751
        %v2754 = vmul.f32 %v2753, %v2752
        %v2755 = vmul.f32 0.5, %v2754
        %v2756 = vsub.f32 1.5, %v2755
        %v2757 = vmul.f32 %v2752, %v2756
        %vm2758 = vweird.f32 %v2751
        %vm2759 = vweird.f32 %v2752
        %vm2760 = vmor %vm2758, %vm2759
        %v2761 = vsel %vm2760, %v2752, %v2757
        %v2762 = vmul.f32 %v2743, %v2761
        %v2763 = vmul.f32 %v2744, %v2761
        %v2764 = vperm.slane %v604, 7
        %v2765 = vperm.slane %v605, 7
        %v2766 = vmul.f32 %v2762, %v2764
        %v2767 = vmul.f32 %v2763, %v2765
        %v2768 = vperm.slane %v606, 0
        %v2769 = vperm.slane %v607, 0
        %v2770 = vadd.f32 %v2766, %v2768
        %v2771 = vadd.f32 %v2767, %v2769
        %v2772 = vpack.c.bf16 %v2771, %v2770
        %2773 = vst [vmem:[%s592] sm:$0xff] %v2772
        %s2774 = sand.u32 %s289, 1
        %s2775 = scalar_lea.sflag [#allocation5], %s2774
        %s2776 = sand.u32 %s289, 1
        %s2777 = smul.addr %s2776, 8
        %s2778 = scalar_lea.vmem [#allocation20], %s2777
        // Predicated region
        $region105: #{tpu_custom_call.1} parent=63 // pred_check
          %p2779 = pneg %p299
        $region106: #{tpu_custom_call.1} parent=63 // pred_check_branch
          %2781 = sbr.rel (%p2779) target = $region108
        $region107: #{tpu_custom_call.1} parent=63 // pred_region
          %2783 = vsyncadd %s2775, 0
          %s2784 = smul.addr %s35, 2
          %s2785 = smul.addr %s2784, 4
          %s2786 = scalar_lea.hbm %s11, %s2785
          %s2788 = sshll.u32 %s2778, 4
          %s2789 = int_to_ptr.vmem [resolvable:$true] %s2788
          %s2790 = sshll.u32 %s2786, 4
          %s2791 = int_to_ptr.hbm [resolvable:$true] %s2790
          %2793 = dma.vmem_to_hbm [thread:$0]  %s2789, 128, %s2791, %s2775
        $region108: #{tpu_custom_call.1} parent=63 // pred_fallthru
          _
      $region64: #{tpu_custom_call.1} parent=5 // pred_fallthru
        _
      %p2794 = scmp.le.s32.totalorder 2, %s30
      // Predicated region
      $region109: #{tpu_custom_call.1} parent=5 // pred_check
        %p2795 = pneg %p2794
      $region110: #{tpu_custom_call.1} parent=5 // pred_check_branch
        %2797 = sbr.rel (%p2795) target = $region112
      $region111: #{tpu_custom_call.1} parent=5 // pred_region
        %s2798 = ssub.s32 %s30, 2
        // Predicated region
        $region113: #{tpu_custom_call.1} parent=111 // pred_check
          %p2799 = pneg %p305
        $region114: #{tpu_custom_call.1} parent=111 // pred_check_branch
          %2801 = sbr.rel (%p2799) target = $region116
        $region115: #{tpu_custom_call.1} parent=111 // pred_region
          %s2802 = sand.u32 %s290, 1
          %s2803 = scalar_lea.sflag [#allocation5], %s2802
          %s2804 = sand.u32 %s290, 1
          %s2805 = smul.addr %s2804, 8
          %s2806 = scalar_lea.vmem [#allocation20], %s2805
          %2808 = dma.done %s2803, 128
        $region116: #{tpu_custom_call.1} parent=111 // pred_fallthru
          _
      $region112: #{tpu_custom_call.1} parent=5 // pred_fallthru
        _
    $region6: #{tpu_custom_call.1} parent=1 // loop_footer
      %s34 = sadd.s32 1, %s30
    $region7: #{tpu_custom_call.1} parent=1 // loop_footer_branch
      %29 = sbr.rel target = $region3
    $region8: #{tpu_custom_call.1} parent=1 // loop_exit
      _
    %2809 = vsyncpa [#allocation4], 1
    %s2810 = scalar_lea.sflag [#allocation4], 1
    %2811 = vsyncpa %s2810, 1
    %2812 = vsyncpa [#allocation7], 1
    %s2813 = scalar_lea.sflag [#allocation7], 1
    %2814 = vsyncpa %s2813, 1
    %2815 = vsyncpa [#allocation10], 1
    %2816 = vsyncpa [#allocation13], 1
    %2817 = vsyncpa [#allocation16], 1
    %2818 = vsyncpa [#allocation19], 1
    %2819 = vsyncpa [#allocation5], 1
    %s2820 = scalar_lea.sflag [#allocation5], 1
    %2821 = vsyncpa %s2820, 1

// kernel: tpu_custom_call.1
$region0: #{tpu_custom_call.1}
  #allocation0 [shape = 'u32[]', space=smem, size = 0x4, offset = 0x4, fixed_abs, tag = 'smem constant byte address 0x4 - core index']
  #allocation1 [shape = 'u32[72,128]{1,0:T(1,128)}', space=vmem, size = 0x9000, scoped, tag = 'internal scratch']
  #allocation2 [shape = 'f32[1,8,256]{2,1,0:T(8,128)}', space=vmem, size = 0x2000, scoped, tag = 'scratch operand']
  %s0 = inlined_call_operand.hbm [shape: f32[2,8,256], index: 0, kind: input, shape index: {}]
  %s1 = inlined_call_operand.hbm [shape: f32[2,8,256], index: 1, kind: input, shape index: {}]
  %s2 = inlined_call_operand.hbm [shape: f32[2,1,8], index: 2, kind: input, shape index: {}]
  %s3 = inlined_call_operand.hbm [shape: bf16[256,256], index: 3, kind: input, shape index: {}]
  %s4 = inlined_call_operand.hbm [shape: bf16[256,256], index: 4, kind: input, shape index: {}]
  %s5 = inlined_call_operand.hbm [shape: bf16[256,256], index: 5, kind: input, shape index: {}]
  %s6 = inlined_call_operand.hbm [shape: bf16[256,256], index: 6, kind: input, shape index: {}]
  %s7 = inlined_call_operand.hbm [shape: bf16[256,512], index: 7, kind: input, shape index: {}]
  %s8 = inlined_call_operand.hbm [shape: bf16[512,256], index: 8, kind: input, shape index: {}]
  %s9 = inlined_call_operand.hbm [shape: f32[16,256], index: 9, kind: input, shape index: {}]
  %s10 = inlined_call_operand.vmem [shape: f32[1,512], index: 10, kind: input, shape index: {}]
  %s11 = inlined_call_operand.hbm [shape: bf16[2,8,256], index: 11, kind: output, shape index: {}]
  %s12 = sld [smem:[#allocation0]]
  $region117: #{tpu_custom_call.1} parent=0
    _
  %s14 = ssub.s32 1, %s12
  %s15 = scalar_select 0, %s14, %s12
  $region1: #{tpu_custom_call.1} parent=0
    #allocation3 [shape = 'u8[16384]{0}', space=vmem, size = 0x4000, scoped, tag = 'input window, operand 0']
    #allocation4 [shape = 's32[2]{0}', space=sflag, size = 0x8, scoped, tag = 'scoped memory for tpu_custom_call.1']
    #allocation5 [shape = 's32[2]{0}', space=sflag, size = 0x8, scoped, tag = 'scoped memory for tpu_custom_call.1']
    #allocation6 [shape = 'u8[16384]{0}', space=vmem, size = 0x4000, scoped, tag = 'input window, operand 1']
    #allocation7 [shape = 's32[2]{0}', space=sflag, size = 0x8, scoped, tag = 'scoped memory for tpu_custom_call.1']
    #allocation8 [shape = 'u8[1024]{0}', space=vmem, size = 0x400, scoped, tag = 'input window, operand 2']
    #allocation9 [shape = 'u8[131072]{0}', space=vmem, size = 0x20000, scoped, tag = 'input window, operand 3, single buffered']
    #allocation10 [shape = 's32[1]{0}', space=sflag, size = 0x4, scoped, tag = 'scoped memory for tpu_custom_call.1']
    #allocation11 [shape = 'u8[131072]{0}', space=vmem, size = 0x20000, scoped, tag = 'input window, operand 4, single buffered']
    #allocation12 [shape = 'u8[131072]{0}', space=vmem, size = 0x20000, scoped, tag = 'input window, operand 5, single buffered']
    #allocation13 [shape = 's32[1]{0}', space=sflag, size = 0x4, scoped, tag = 'scoped memory for tpu_custom_call.1']
    #allocation14 [shape = 'u8[131072]{0}', space=vmem, size = 0x20000, scoped, tag = 'input window, operand 6, single buffered']
    #allocation15 [shape = 'u8[262144]{0}', space=vmem, size = 0x40000, scoped, tag = 'input window, operand 7, single buffered']
    #allocation16 [shape = 's32[1]{0}', space=sflag, size = 0x4, scoped, tag = 'scoped memory for tpu_custom_call.1']
    #allocation17 [shape = 'u8[262144]{0}', space=vmem, size = 0x40000, scoped, tag = 'input window, operand 8, single buffered']
    #allocation18 [shape = 'u8[16384]{0}', space=vmem, size = 0x4000, scoped, tag = 'input window, operand 9, single buffered']
    #allocation19 [shape = 's32[1]{0}', space=sflag, size = 0x4, scoped, tag = 'scoped memory for tpu_custom_call.1']
    #allocation20 [shape = 'u8[8192]{0}', space=vmem, size = 0x2000, scoped, tag = 'output window, operand 0']
    %16 = vsyncpa [#allocation4], 0
    %s17 = scalar_lea.sflag [#allocation4], 1
    %18 = vsyncpa %s17, 0
    %19 = vsyncpa [#allocation7], 0
    %s20 = scalar_lea.sflag [#allocation7], 1
    %21 = vsyncpa %s20, 0
    %22 = vsyncpa [#allocation10], 0
    %23 = vsyncpa [#allocation13], 0
    %24 = vsyncpa [#allocation16], 0
    %25 = vsyncpa [#allocation19], 0
    %26 = vsyncpa [#allocation5], 0
    %s27 = scalar_lea.sflag [#allocation5], 1
    %28 = vsyncpa %s27, 0
    loop: start=0, step=1, limit=4
    $region2: #{tpu_custom_call.1} parent=1 // loop_pre_header
      _
    $region3: #{tpu_custom_call.1} parent=1 // loop_header
      %s30 = sphi 0, %s34
      %p31 = scmp.ge.s32.totalorder %s30, 4
      %s40 = sphi 0, %s42
      %s43 = sphi 0, %s40
      %s44 = sphi 0, %s43
      %s60 = sphi 0, %s44
      %s66 = sphi 0, %s68
      %s69 = sphi 0, %s66
      %s70 = sphi 0, %s69
      %s86 = sphi 0, %s70
      %s92 = sphi 0, %s94
      %s95 = sphi 0, %s92
      %s96 = sphi 0, %s95
      %s112 = sphi 0, %s96
      %s116 = sphi 0, %s116
      %s118 = sphi 0, %s116
      %s119 = sphi 0, %s118
      %s133 = sphi 0, %s119
      %s137 = sphi 0, %s137
      %s139 = sphi 0, %s137
      %s140 = sphi 0, %s139
      %s154 = sphi 0, %s140
      %s158 = sphi 0, %s158
      %s160 = sphi 0, %s158
      %s161 = sphi 0, %s160
      %s175 = sphi 0, %s161
      %s179 = sphi 0, %s179
      %s181 = sphi 0, %s179
      %s182 = sphi 0, %s181
      %s196 = sphi 0, %s182
      %s200 = sphi 0, %s200
      %s202 = sphi 0, %s200
      %s203 = sphi 0, %s202
      %s217 = sphi 0, %s203
      %s221 = sphi 0, %s221
      %s223 = sphi 0, %s221
      %s224 = sphi 0, %s223
      %s238 = sphi 0, %s224
      %s242 = sphi 0, %s242
      %s244 = sphi 0, %s242
      %s245 = sphi 0, %s244
      %s259 = sphi 0, %s245
      %s263 = sphi 0, %s263
      %s265 = sphi 0, %s263
      %s266 = sphi 0, %s265
      %s280 = sphi 0, %s266
      %s286 = sphi 0, %s288
      %s289 = sphi 0, %s286
      %s290 = sphi 0, %s289
      %s306 = sphi 0, %s290
    $region4: #{tpu_custom_call.1} parent=1 // loop_header_branch
      %33 = sbr.rel (%p31) target = $region8
    $region5: #{tpu_custom_call.1} parent=1 // loop_body
      %s35 = ssub.s32 %s30, 1
      %s36 = ssub.s32 %s30, 2
      %s37 = sadd.s32 %s30, 1
      %s38 = ssub.s32 %s30, %s37
      %p39 = scmp.eq.s32.totalorder %s38, 0
      %s41 = sadd.s32 %s40, 1
      %s42 = scalar_select %p39, %s40, %s41
      %p45 = pneg %p39
      %p46 = scmp.eq.s32.totalorder %s30, 1
      %p47 = por %p45, %p46
      %p48 = scmp.ne.s32.totalorder %s40, %s43
      %p49 = scmp.eq.s32.totalorder %s30, 0
      %p50 = por %p48, %p49
      %p51 = scmp.ne.s32.totalorder %s40, %s43
      %p52 = scmp.eq.s32.totalorder %s35, 1
      %p53 = por %p51, %p52
      %p54 = scmp.ne.s32.totalorder %s43, %s44
      %p55 = scmp.eq.s32.totalorder %s35, 0
      %p56 = por %p54, %p55
      %p57 = scmp.ne.s32.totalorder %s43, %s44
      %p58 = scmp.eq.s32.totalorder %s36, 1
      %p59 = por %p57, %p58
      %p61 = scmp.ne.s32.totalorder %s44, %s60
      %p62 = scmp.eq.s32.totalorder %s36, 0
      %p63 = por %p61, %p62
      %s64 = ssub.s32 %s30, %s37
      %p65 = scmp.eq.s32.totalorder %s64, 0
      %s67 = sadd.s32 %s66, 1
      %s68 = scalar_select %p65, %s66, %s67
      %p71 = pneg %p65
      %p72 = scmp.eq.s32.totalorder %s30, 1
      %p73 = por %p71, %p72
      %p74 = scmp.ne.s32.totalorder %s66, %s69
      %p75 = scmp.eq.s32.totalorder %s30, 0
      %p76 = por %p74, %p75
      %p77 = scmp.ne.s32.totalorder %s66, %s69
      %p78 = scmp.eq.s32.totalorder %s35, 1
      %p79 = por %p77, %p78
      %p80 = scmp.ne.s32.totalorder %s69, %s70
      %p81 = scmp.eq.s32.totalorder %s35, 0
      %p82 = por %p80, %p81
      %p83 = scmp.ne.s32.totalorder %s69, %s70
      %p84 = scmp.eq.s32.totalorder %s36, 1
      %p85 = por %p83, %p84
      %p87 = scmp.ne.s32.totalorder %s70, %s86
      %p88 = scmp.eq.s32.totalorder %s36, 0
      %p89 = por %p87, %p88
      %s90 = ssub.s32 %s30, %s37
      %p91 = scmp.eq.s32.totalorder %s90, 0
      %s93 = sadd.s32 %s92, 1
      %s94 = scalar_select %p91, %s92, %s93
      %p97 = pneg %p91
      %p98 = scmp.eq.s32.totalorder %s30, 1
      %p99 = por %p97, %p98
      %p100 = scmp.ne.s32.totalorder %s92, %s95
      %p101 = scmp.eq.s32.totalorder %s30, 0
      %p102 = por %p100, %p101
      %p103 = scmp.ne.s32.totalorder %s92, %s95
      %p104 = scmp.eq.s32.totalorder %s35, 1
      %p105 = por %p103, %p104
      %p106 = scmp.ne.s32.totalorder %s95, %s96
      %p107 = scmp.eq.s32.totalorder %s35, 0
      %p108 = por %p106, %p107
      %p109 = scmp.ne.s32.totalorder %s95, %s96
      %p110 = scmp.eq.s32.totalorder %s36, 1
      %p111 = por %p109, %p110
      %p113 = scmp.ne.s32.totalorder %s96, %s112
      %p114 = scmp.eq.s32.totalorder %s36, 0
      %p115 = por %p113, %p114
      %s117 = sadd.s32 %s116, 1
      %p120 = scmp.eq.s32.totalorder %s30, 1
      %p121 = scmp.ne.s32.totalorder %s116, %s118
      %p122 = scmp.eq.s32.totalorder %s30, 0
      %p123 = por %p121, %p122
      %p124 = scmp.ne.s32.totalorder %s116, %s118
      %p125 = scmp.eq.s32.totalorder %s35, 1
      %p126 = por %p124, %p125
      %p127 = scmp.ne.s32.totalorder %s118, %s119
      %p128 = scmp.eq.s32.totalorder %s35, 0
      %p129 = por %p127, %p128
      %p130 = scmp.ne.s32.totalorder %s118, %s119
      %p131 = scmp.eq.s32.totalorder %s36, 1
      %p132 = por %p130, %p131
      %p134 = scmp.ne.s32.totalorder %s119, %s133
      %p135 = scmp.eq.s32.totalorder %s36, 0
      %p136 = por %p134, %p135
      %s138 = sadd.s32 %s137, 1
      %p141 = scmp.eq.s32.totalorder %s30, 1
      %p142 = scmp.ne.s32.totalorder %s137, %s139
      %p143 = scmp.eq.s32.totalorder %s30, 0
      %p144 = por %p142, %p143
      %p145 = scmp.ne.s32.totalorder %s137, %s139
      %p146 = scmp.eq.s32.totalorder %s35, 1
      %p147 = por %p145, %p146
      %p148 = scmp.ne.s32.totalorder %s139, %s140
      %p149 = scmp.eq.s32.totalorder %s35, 0
      %p150 = por %p148, %p149
      %p151 = scmp.ne.s32.totalorder %s139, %s140
      %p152 = scmp.eq.s32.totalorder %s36, 1
      %p153 = por %p151, %p152
      %p155 = scmp.ne.s32.totalorder %s140, %s154
      %p156 = scmp.eq.s32.totalorder %s36, 0
      %p157 = por %p155, %p156
      %s159 = sadd.s32 %s158, 1
      %p162 = scmp.eq.s32.totalorder %s30, 1
      %p163 = scmp.ne.s32.totalorder %s158, %s160
      %p164 = scmp.eq.s32.totalorder %s30, 0
      %p165 = por %p163, %p164
      %p166 = scmp.ne.s32.totalorder %s158, %s160
      %p167 = scmp.eq.s32.totalorder %s35, 1
      %p168 = por %p166, %p167
      %p169 = scmp.ne.s32.totalorder %s160, %s161
      %p170 = scmp.eq.s32.totalorder %s35, 0
      %p171 = por %p169, %p170
      %p172 = scmp.ne.s32.totalorder %s160, %s161
      %p173 = scmp.eq.s32.totalorder %s36, 1
      %p174 = por %p172, %p173
      %p176 = scmp.ne.s32.totalorder %s161, %s175
      %p177 = scmp.eq.s32.totalorder %s36, 0
      %p178 = por %p176, %p177
      %s180 = sadd.s32 %s179, 1
      %p183 = scmp.eq.s32.totalorder %s30, 1
      %p184 = scmp.ne.s32.totalorder %s179, %s181
      %p185 = scmp.eq.s32.totalorder %s30, 0
      %p186 = por %p184, %p185
      %p187 = scmp.ne.s32.totalorder %s179, %s181
      %p188 = scmp.eq.s32.totalorder %s35, 1
      %p189 = por %p187, %p188
      %p190 = scmp.ne.s32.totalorder %s181, %s182
      %p191 = scmp.eq.s32.totalorder %s35, 0
      %p192 = por %p190, %p191
      %p193 = scmp.ne.s32.totalorder %s181, %s182
      %p194 = scmp.eq.s32.totalorder %s36, 1
      %p195 = por %p193, %p194
      %p197 = scmp.ne.s32.totalorder %s182, %s196
      %p198 = scmp.eq.s32.totalorder %s36, 0
      %p199 = por %p197, %p198
      %s201 = sadd.s32 %s200, 1
      %p204 = scmp.eq.s32.totalorder %s30, 1
      %p205 = scmp.ne.s32.totalorder %s200, %s202
      %p206 = scmp.eq.s32.totalorder %s30, 0
      %p207 = por %p205, %p206
      %p208 = scmp.ne.s32.totalorder %s200, %s202
      %p209 = scmp.eq.s32.totalorder %s35, 1
      %p210 = por %p208, %p209
      %p211 = scmp.ne.s32.totalorder %s202, %s203
      %p212 = scmp.eq.s32.totalorder %s35, 0
      %p213 = por %p211, %p212
      %p214 = scmp.ne.s32.totalorder %s202, %s203
      %p215 = scmp.eq.s32.totalorder %s36, 1
      %p216 = por %p214, %p215
      %p218 = scmp.ne.s32.totalorder %s203, %s217
      %p219 = scmp.eq.s32.totalorder %s36, 0
      %p220 = por %p218, %p219
      %s222 = sadd.s32 %s221, 1
      %p225 = scmp.eq.s32.totalorder %s30, 1
      %p226 = scmp.ne.s32.totalorder %s221, %s223
      %p227 = scmp.eq.s32.totalorder %s30, 0
      %p228 = por %p226, %p227
      %p229 = scmp.ne.s32.totalorder %s221, %s223
      %p230 = scmp.eq.s32.totalorder %s35, 1
      %p231 = por %p229, %p230
      %p232 = scmp.ne.s32.totalorder %s223, %s224
      %p233 = scmp.eq.s32.totalorder %s35, 0
      %p234 = por %p232, %p233
      %p235 = scmp.ne.s32.totalorder %s223, %s224
      %p236 = scmp.eq.s32.totalorder %s36, 1
      %p237 = por %p235, %p236
      %p239 = scmp.ne.s32.totalorder %s224, %s238
      %p240 = scmp.eq.s32.totalorder %s36, 0
      %p241 = por %p239, %p240
      %s243 = sadd.s32 %s242, 1
      %p246 = scmp.eq.s32.totalorder %s30, 1
      %p247 = scmp.ne.s32.totalorder %s242, %s244
      %p248 = scmp.eq.s32.totalorder %s30, 0
      %p249 = por %p247, %p248
      %p250 = scmp.ne.s32.totalorder %s242, %s244
      %p251 = scmp.eq.s32.totalorder %s35, 1
      %p252 = por %p250, %p251
      %p253 = scmp.ne.s32.totalorder %s244, %s245
      %p254 = scmp.eq.s32.totalorder %s35, 0
      %p255 = por %p253, %p254
      %p256 = scmp.ne.s32.totalorder %s244, %s245
      %p257 = scmp.eq.s32.totalorder %s36, 1
      %p258 = por %p256, %p257
      %p260 = scmp.ne.s32.totalorder %s245, %s259
      %p261 = scmp.eq.s32.totalorder %s36, 0
      %p262 = por %p260, %p261
      %s264 = sadd.s32 %s263, 1
      %p267 = scmp.eq.s32.totalorder %s30, 1
      %p268 = scmp.ne.s32.totalorder %s263, %s265
      %p269 = scmp.eq.s32.totalorder %s30, 0
      %p270 = por %p268, %p269
      %p271 = scmp.ne.s32.totalorder %s263, %s265
      %p272 = scmp.eq.s32.totalorder %s35, 1
      %p273 = por %p271, %p272
      %p274 = scmp.ne.s32.totalorder %s265, %s266
      %p275 = scmp.eq.s32.totalorder %s35, 0
      %p276 = por %p274, %p275
      %p277 = scmp.ne.s32.totalorder %s265, %s266
      %p278 = scmp.eq.s32.totalorder %s36, 1
      %p279 = por %p277, %p278
      %p281 = scmp.ne.s32.totalorder %s266, %s280
      %p282 = scmp.eq.s32.totalorder %s36, 0
      %p283 = por %p281, %p282
      %s284 = ssub.s32 %s30, %s37
      %p285 = scmp.eq.s32.totalorder %s284, 0
      %s287 = sadd.s32 %s286, 1
      %s288 = scalar_select %p285, %s286, %s287
      %p291 = pneg %p285
      %p292 = scmp.eq.s32.totalorder %s30, 1
      %p293 = por %p291, %p292
      %p294 = scmp.ne.s32.totalorder %s286, %s289
      %p295 = scmp.eq.s32.totalorder %s30, 0
      %p296 = por %p294, %p295
      %p297 = scmp.ne.s32.totalorder %s286, %s289
      %p298 = scmp.eq.s32.totalorder %s35, 1
      %p299 = por %p297, %p298
      %p300 = scmp.ne.s32.totalorder %s289, %s290
      %p301 = scmp.eq.s32.totalorder %s35, 0
      %p302 = por %p300, %p301
      %p303 = scmp.ne.s32.totalorder %s289, %s290
      %p304 = scmp.eq.s32.totalorder %s36, 1
      %p305 = por %p303, %p304
      %p307 = scmp.ne.s32.totalorder %s290, %s306
      %p308 = scmp.eq.s32.totalorder %s36, 0
      %p309 = por %p307, %p308
      %p310 = scmp.le.s32.totalorder 1, %s30
      %p311 = scmp.lt.s32.totalorder %s30, 3
      %p312 = pnand %p310, %p311
      %p313 = pneg %p312
      // Predicated region
      $region9: #{tpu_custom_call.1} parent=5 // pred_check
        _
      $region10: #{tpu_custom_call.1} parent=5 // pred_check_branch
        %315 = sbr.rel (%p312) target = $region12
      $region11: #{tpu_custom_call.1} parent=5 // pred_region
        %s316 = ssub.s32 %s30, 1
        // Predicated region
        $region13: #{tpu_custom_call.1} parent=11 // pred_check
          %p317 = pneg %p129
        $region14: #{tpu_custom_call.1} parent=11 // pred_check_branch
          %319 = sbr.rel (%p317) target = $region16
        $region15: #{tpu_custom_call.1} parent=11 // pred_region
          %321 = vsyncadd [#allocation10], 0
          %s322 = sshll.u32 %s3, 4
          %s323 = int_to_ptr.hbm [resolvable:$true] %s322
          %s324 = sshll.u32 [#allocation9], 4
          %s325 = int_to_ptr.vmem [resolvable:$true] %s324
          %330 = dma.hbm_to_vmem [thread:$0]  %s323, 4096, %s325, [#allocation10], 128, 128, 8
        $region16: #{tpu_custom_call.1} parent=11 // pred_fallthru
          _
        // Predicated region
        $region17: #{tpu_custom_call.1} parent=11 // pred_check
          %p331 = pneg %p150
        $region18: #{tpu_custom_call.1} parent=11 // pred_check_branch
          %333 = sbr.rel (%p331) target = $region20
        $region19: #{tpu_custom_call.1} parent=11 // pred_region
          %335 = vsyncadd [#allocation10], 0
          %s336 = sshll.u32 %s4, 4
          %s337 = int_to_ptr.hbm [resolvable:$true] %s336
          %s338 = sshll.u32 [#allocation11], 4
          %s339 = int_to_ptr.vmem [resolvable:$true] %s338
          %344 = dma.hbm_to_vmem [thread:$0]  %s337, 4096, %s339, [#allocation10], 128, 128, 8
        $region20: #{tpu_custom_call.1} parent=11 // pred_fallthru
          _
        // Predicated region
        $region21: #{tpu_custom_call.1} parent=11 // pred_check
          %p345 = pneg %p171
        $region22: #{tpu_custom_call.1} parent=11 // pred_check_branch
          %347 = sbr.rel (%p345) target = $region24
        $region23: #{tpu_custom_call.1} parent=11 // pred_region
          %349 = vsyncadd [#allocation13], 0
          %s350 = sshll.u32 %s5, 4
          %s351 = int_to_ptr.hbm [resolvable:$true] %s350
          %s352 = sshll.u32 [#allocation12], 4
          %s353 = int_to_ptr.vmem [resolvable:$true] %s352
          %358 = dma.hbm_to_vmem [thread:$0]  %s351, 4096, %s353, [#allocation13], 128, 128, 8
        $region24: #{tpu_custom_call.1} parent=11 // pred_fallthru
          _
        // Predicated region
        $region25: #{tpu_custom_call.1} parent=11 // pred_check
          %p359 = pneg %p192
        $region26: #{tpu_custom_call.1} parent=11 // pred_check_branch
          %361 = sbr.rel (%p359) target = $region28
        $region27: #{tpu_custom_call.1} parent=11 // pred_region
          %363 = vsyncadd [#allocation13], 0
          %s364 = sshll.u32 %s6, 4
          %s365 = int_to_ptr.hbm [resolvable:$true] %s364
          %s366 = sshll.u32 [#allocation14], 4
          %s367 = int_to_ptr.vmem [resolvable:$true] %s366
          %372 = dma.hbm_to_vmem [thread:$0]  %s365, 4096, %s367, [#allocation13], 128, 128, 8
        $region28: #{tpu_custom_call.1} parent=11 // pred_fallthru
          _
        // Predicated region
        $region29: #{tpu_custom_call.1} parent=11 // pred_check
          %p373 = pneg %p213
        $region30: #{tpu_custom_call.1} parent=11 // pred_check_branch
          %375 = sbr.rel (%p373) target = $region32
        $region31: #{tpu_custom_call.1} parent=11 // pred_region
          %377 = vsyncadd [#allocation16], 0
          %s378 = sshll.u32 %s7, 4
          %s379 = int_to_ptr.hbm [resolvable:$true] %s378
          %s380 = sshll.u32 [#allocation15], 4
          %s381 = int_to_ptr.vmem [resolvable:$true] %s380
          %386 = dma.hbm_to_vmem [thread:$0]  %s379, 8192, %s381, [#allocation16], 256, 256, 16
        $region32: #{tpu_custom_call.1} parent=11 // pred_fallthru
          _
        // Predicated region
        $region33: #{tpu_custom_call.1} parent=11 // pred_check
          %p387 = pneg %p234
        $region34: #{tpu_custom_call.1} parent=11 // pred_check_branch
          %389 = sbr.rel (%p387) target = $region36
        $region35: #{tpu_custom_call.1} parent=11 // pred_region
          %391 = vsyncadd [#allocation16], 0
          %s392 = sshll.u32 %s8, 4
          %s393 = int_to_ptr.hbm [resolvable:$true] %s392
          %s394 = sshll.u32 [#allocation17], 4
          %s395 = int_to_ptr.vmem [resolvable:$true] %s394
          %400 = dma.hbm_to_vmem [thread:$0]  %s393, 8192, %s395, [#allocation16], 128, 128, 8
        $region36: #{tpu_custom_call.1} parent=11 // pred_fallthru
          _
        // Predicated region
        $region37: #{tpu_custom_call.1} parent=11 // pred_check
          %p401 = pneg %p255
        $region38: #{tpu_custom_call.1} parent=11 // pred_check_branch
          %403 = sbr.rel (%p401) target = $region40
        $region39: #{tpu_custom_call.1} parent=11 // pred_region
          %405 = vsyncadd [#allocation19], 0
          %s406 = sshll.u32 %s9, 4
          %s407 = int_to_ptr.hbm [resolvable:$true] %s406
          %s408 = sshll.u32 [#allocation18], 4
          %s409 = int_to_ptr.vmem [resolvable:$true] %s408
          %414 = dma.hbm_to_vmem [thread:$0]  %s407, 512, %s409, [#allocation19], 256, 256, 16
        $region40: #{tpu_custom_call.1} parent=11 // pred_fallthru
          _
        // Predicated region
        $region41: #{tpu_custom_call.1} parent=11 // pred_check
          %p415 = pneg %p276
        $region42: #{tpu_custom_call.1} parent=11 // pred_check_branch
          %417 = sbr.rel (%p415) target = $region44
        $region43: #{tpu_custom_call.1} parent=11 // pred_region
          _
        $region44: #{tpu_custom_call.1} parent=11 // pred_fallthru
          _
      $region12: #{tpu_custom_call.1} parent=5 // pred_fallthru
        _
      %p418 = scmp.lt.s32.totalorder %s30, 2
      // Predicated region
      $region45: #{tpu_custom_call.1} parent=5 // pred_check
        %p419 = pneg %p418
      $region46: #{tpu_custom_call.1} parent=5 // pred_check_branch
        %421 = sbr.rel (%p419) target = $region48
      $region47: #{tpu_custom_call.1} parent=5 // pred_region
        // Predicated region
        $region49: #{tpu_custom_call.1} parent=47 // pred_check
          %p422 = pneg %p50
        $region50: #{tpu_custom_call.1} parent=47 // pred_check_branch
          %424 = sbr.rel (%p422) target = $region52
        $region51: #{tpu_custom_call.1} parent=47 // pred_region
          %s425 = sand.u32 %s40, 1
          %s426 = scalar_lea.sflag [#allocation4], %s425
          %s427 = sand.u32 %s40, 1
          %s428 = smul.addr %s427, 16
          %s429 = scalar_lea.vmem [#allocation3], %s428
          %431 = vsyncadd %s426, 0
          %s432 = smul.addr %s30, 2
          %s433 = smul.addr %s432, 8
          %s434 = scalar_lea.hbm %s0, %s433
          %s436 = sshll.u32 %s434, 4
          %s437 = int_to_ptr.hbm [resolvable:$true] %s436
          %s438 = sshll.u32 %s429, 4
          %s439 = int_to_ptr.vmem [resolvable:$true] %s438
          %441 = dma.hbm_to_vmem [thread:$0]  %s437, 256, %s439, %s426
        $region52: #{tpu_custom_call.1} parent=47 // pred_fallthru
          _
        // Predicated region
        $region53: #{tpu_custom_call.1} parent=47 // pred_check
          %p442 = pneg %p76
        $region54: #{tpu_custom_call.1} parent=47 // pred_check_branch
          %444 = sbr.rel (%p442) target = $region56
        $region55: #{tpu_custom_call.1} parent=47 // pred_region
          %s445 = sand.u32 %s30, 1
          %s446 = scalar_lea.sflag [#allocation7], %s445
          %s447 = sand.u32 %s66, 1
          %s448 = smul.addr %s447, 16
          %s449 = scalar_lea.vmem [#allocation6], %s448
          %451 = vsyncadd %s446, 0
          %s452 = smul.addr %s30, 2
          %s453 = smul.addr %s452, 8
          %s454 = scalar_lea.hbm %s1, %s453
          %s456 = sshll.u32 %s454, 4
          %s457 = int_to_ptr.hbm [resolvable:$true] %s456
          %s458 = sshll.u32 %s449, 4
          %s459 = int_to_ptr.vmem [resolvable:$true] %s458
          %461 = dma.hbm_to_vmem [thread:$0]  %s457, 256, %s459, %s446
        $region56: #{tpu_custom_call.1} parent=47 // pred_fallthru
          _
        // Predicated region
        $region57: #{tpu_custom_call.1} parent=47 // pred_check
          %p462 = pneg %p102
        $region58: #{tpu_custom_call.1} parent=47 // pred_check_branch
          %464 = sbr.rel (%p462) target = $region60
        $region59: #{tpu_custom_call.1} parent=47 // pred_region
          %s465 = sand.u32 %s30, 1
          %s466 = scalar_lea.sflag [#allocation7], %s465
          %s467 = sand.u32 %s92, 1
          %s468 = scalar_lea.vmem [#allocation8], %s467
          %470 = vsyncadd %s466, 0
          %s471 = scalar_lea.hbm %s2, %s30
          %s473 = sshll.u32 %s471, 4
          %s474 = int_to_ptr.hbm [resolvable:$true] %s473
          %s475 = sshll.u32 %s468, 4
          %s476 = int_to_ptr.vmem [resolvable:$true] %s475
          %478 = dma.hbm_to_vmem [thread:$0]  %s474, 16, %s476, %s466
        $region60: #{tpu_custom_call.1} parent=47 // pred_fallthru
          _
      $region48: #{tpu_custom_call.1} parent=5 // pred_fallthru
        _
      %p479 = scmp.le.s32.totalorder 1, %s30
      %p480 = scmp.lt.s32.totalorder %s30, 3
      %p481 = pnand %p479, %p480
      %p482 = pneg %p481
      // Predicated region
      $region61: #{tpu_custom_call.1} parent=5 // pred_check
        _
      $region62: #{tpu_custom_call.1} parent=5 // pred_check_branch
        %484 = sbr.rel (%p481) target = $region64
      $region63: #{tpu_custom_call.1} parent=5 // pred_region
        %s485 = ssub.s32 %s30, 1
        %s486 = sand.u32 %s43, 1
        %s487 = scalar_lea.sflag [#allocation4], %s486
        %s488 = sand.u32 %s43, 1
        %s489 = smul.addr %s488, 16
        %s490 = scalar_lea.vmem [#allocation3], %s489
        // Predicated region
        $region65: #{tpu_custom_call.1} parent=63 // pred_check
          %p491 = pneg %p56
        $region66: #{tpu_custom_call.1} parent=63 // pred_check_branch
          %493 = sbr.rel (%p491) target = $region68
        $region67: #{tpu_custom_call.1} parent=63 // pred_region
          %495 = dma.done %s487, 256
        $region68: #{tpu_custom_call.1} parent=63 // pred_fallthru
          _
        %s496 = sand.u32 %s35, 1
        %s497 = scalar_lea.sflag [#allocation7], %s496
        %s498 = sand.u32 %s69, 1
        %s499 = smul.addr %s498, 16
        %s500 = scalar_lea.vmem [#allocation6], %s499
        // Predicated region
        $region69: #{tpu_custom_call.1} parent=63 // pred_check
          %p501 = pneg %p82
        $region70: #{tpu_custom_call.1} parent=63 // pred_check_branch
          %503 = sbr.rel (%p501) target = $region72
        $region71: #{tpu_custom_call.1} parent=63 // pred_region
          %505 = dma.done %s497, 256
        $region72: #{tpu_custom_call.1} parent=63 // pred_fallthru
          _
        %s506 = sand.u32 %s35, 1
        %s507 = scalar_lea.sflag [#allocation7], %s506
        %s508 = sand.u32 %s95, 1
        %s509 = scalar_lea.vmem [#allocation8], %s508
        // Predicated region
        $region73: #{tpu_custom_call.1} parent=63 // pred_check
          %p510 = pneg %p108
        $region74: #{tpu_custom_call.1} parent=63 // pred_check_branch
          %512 = sbr.rel (%p510) target = $region76
        $region75: #{tpu_custom_call.1} parent=63 // pred_region
          %514 = dma.done %s507, 16
        $region76: #{tpu_custom_call.1} parent=63 // pred_fallthru
          _
        // Predicated region
        $region77: #{tpu_custom_call.1} parent=63 // pred_check
          %p515 = pneg %p129
        $region78: #{tpu_custom_call.1} parent=63 // pred_check_branch
          %517 = sbr.rel (%p515) target = $region80
        $region79: #{tpu_custom_call.1} parent=63 // pred_region
          %519 = dma.done [#allocation10], 4096
        $region80: #{tpu_custom_call.1} parent=63 // pred_fallthru
          _
        // Predicated region
        $region81: #{tpu_custom_call.1} parent=63 // pred_check
          %p520 = pneg %p150
        $region82: #{tpu_custom_call.1} parent=63 // pred_check_branch
          %522 = sbr.rel (%p520) target = $region84
        $region83: #{tpu_custom_call.1} parent=63 // pred_region
          %524 = dma.done [#allocation10], 4096
        $region84: #{tpu_custom_call.1} parent=63 // pred_fallthru
          _
        // Predicated region
        $region85: #{tpu_custom_call.1} parent=63 // pred_check
          %p525 = pneg %p171
        $region86: #{tpu_custom_call.1} parent=63 // pred_check_branch
          %527 = sbr.rel (%p525) target = $region88
        $region87: #{tpu_custom_call.1} parent=63 // pred_region
          %529 = dma.done [#allocation13], 4096
        $region88: #{tpu_custom_call.1} parent=63 // pred_fallthru
          _
        // Predicated region
        $region89: #{tpu_custom_call.1} parent=63 // pred_check
          %p530 = pneg %p192
        $region90: #{tpu_custom_call.1} parent=63 // pred_check_branch
          %532 = sbr.rel (%p530) target = $region92
        $region91: #{tpu_custom_call.1} parent=63 // pred_region
          %534 = dma.done [#allocation13], 4096
        $region92: #{tpu_custom_call.1} parent=63 // pred_fallthru
          _
        // Predicated region
        $region93: #{tpu_custom_call.1} parent=63 // pred_check
          %p535 = pneg %p213
        $region94: #{tpu_custom_call.1} parent=63 // pred_check_branch
          %537 = sbr.rel (%p535) target = $region96
        $region95: #{tpu_custom_call.1} parent=63 // pred_region
          %539 = dma.done [#allocation16], 8192
        $region96: #{tpu_custom_call.1} parent=63 // pred_fallthru
          _
        // Predicated region
        $region97: #{tpu_custom_call.1} parent=63 // pred_check
          %p540 = pneg %p234
        $region98: #{tpu_custom_call.1} parent=63 // pred_check_branch
          %542 = sbr.rel (%p540) target = $region100
        $region99: #{tpu_custom_call.1} parent=63 // pred_region
          %544 = dma.done [#allocation16], 8192
        $region100: #{tpu_custom_call.1} parent=63 // pred_fallthru
          _
        // Predicated region
        $region101: #{tpu_custom_call.1} parent=63 // pred_check
          %p545 = pneg %p255
        $region102: #{tpu_custom_call.1} parent=63 // pred_check_branch
          %547 = sbr.rel (%p545) target = $region104
        $region103: #{tpu_custom_call.1} parent=63 // pred_region
          %549 = dma.done [#allocation19], 512
        $region104: #{tpu_custom_call.1} parent=63 // pred_fallthru
          _
        %s550 = sand.u32 %s43, 1
        %s551 = scalar_lea.sflag [#allocation4], %s550
        %s552 = sand.u32 %s43, 1
        %s553 = smul.addr %s552, 16
        %s554 = scalar_lea.vmem [#allocation3], %s553
        %p555 = pneg %p56
        %p556 = pneg %p53
        %s557 = sand.u32 %s35, 1
        %s558 = scalar_lea.sflag [#allocation7], %s557
        %s559 = sand.u32 %s69, 1
        %s560 = smul.addr %s559, 16
        %s561 = scalar_lea.vmem [#allocation6], %s560
        %p562 = pneg %p82
        %p563 = pneg %p79
        %s564 = sand.u32 %s35, 1
        %s565 = scalar_lea.sflag [#allocation7], %s564
        %s566 = sand.u32 %s95, 1
        %s567 = scalar_lea.vmem [#allocation8], %s566
        %p568 = pneg %p108
        %p569 = pneg %p105
        %p570 = pneg %p129
        %p571 = pneg %p126
        %p572 = pneg %p150
        %p573 = pneg %p147
        %p574 = pneg %p171
        %p575 = pneg %p168
        %p576 = pneg %p192
        %p577 = pneg %p189
        %p578 = pneg %p213
        %p579 = pneg %p210
        %p580 = pneg %p234
        %p581 = pneg %p231
        %p582 = pneg %p255
        %p583 = pneg %p252
        %p584 = pneg %p276
        %p585 = pneg %p273
        %p586 = pneg %p302
        %p587 = pneg %p299
        %s588 = sand.u32 %s289, 1
        %s589 = scalar_lea.sflag [#allocation5], %s588
        %s590 = sand.u32 %s289, 1
        %s591 = smul.addr %s590, 8
        %s592 = scalar_lea.vmem [#allocation20], %s591
        %v594 = vld [vmem:[%s490] sm:$0xff]
        %v595 = vld [vmem:[%s490 + $0x8] sm:$0xff]
        %v596 = vpack.c.bf16 %v594, %v594
        %v597 = vpack.c.bf16 %v595, %v595
        %v598 = vld [vmem:[%s500] sm:$0xff]
        %v599 = vld [vmem:[%s500 + $0x8] sm:$0xff]
        %v600 = vpack.c.bf16 %v598, %v598
        %v601 = vpack.c.bf16 %v599, %v599
        %v602 = vld [vmem:[%s509] sm:$0x1]
        %v603 = vmul.f32 %v602, -1e+09
        %v604 = vld [vmem:[#allocation18] sm:$0xff]
        %v605 = vld [vmem:[#allocation18 + $0x8] sm:$0xff]
        %v606 = vld [vmem:[#allocation18 + $0x10] sm:$0xff]
        %v607 = vld [vmem:[#allocation18 + $0x18] sm:$0xff]
        %v608 = vld [vmem:[#allocation9] sm:$0xff]
        %v609 = vld [vmem:[#allocation9 + $0x8] sm:$0xff]
        %v610 = vld [vmem:[#allocation9 + $0x10] sm:$0xff]
        %v611 = vld [vmem:[#allocation9 + $0x18] sm:$0xff]
        %v612 = vld [vmem:[#allocation9 + $0x20] sm:$0xff]
        %v613 = vld [vmem:[#allocation9 + $0x28] sm:$0xff]
        %v614 = vld [vmem:[#allocation9 + $0x30] sm:$0xff]
        %v615 = vld [vmem:[#allocation9 + $0x38] sm:$0xff]
        %v616 = vld [vmem:[#allocation9 + $0x40] sm:$0xff]
        %v617 = vld [vmem:[#allocation9 + $0x48] sm:$0xff]
        %v618 = vld [vmem:[#allocation9 + $0x50] sm:$0xff]
        %v619 = vld [vmem:[#allocation9 + $0x58] sm:$0xff]
        %v620 = vld [vmem:[#allocation9 + $0x60] sm:$0xff]
        %v621 = vld [vmem:[#allocation9 + $0x68] sm:$0xff]
        %v622 = vld [vmem:[#allocation9 + $0x70] sm:$0xff]
        %v623 = vld [vmem:[#allocation9 + $0x78] sm:$0xff]
        %v624 = vld [vmem:[#allocation9 + $0x80] sm:$0xff]
        %v625 = vld [vmem:[#allocation9 + $0x88] sm:$0xff]
        %v626 = vld [vmem:[#allocation9 + $0x90] sm:$0xff]
        %v627 = vld [vmem:[#allocation9 + $0x98] sm:$0xff]
        %v628 = vld [vmem:[#allocation9 + $0xa0] sm:$0xff]
        %v629 = vld [vmem:[#allocation9 + $0xa8] sm:$0xff]
        %v630 = vld [vmem:[#allocation9 + $0xb0] sm:$0xff]
        %v631 = vld [vmem:[#allocation9 + $0xb8] sm:$0xff]
        %v632 = vld [vmem:[#allocation9 + $0xc0] sm:$0xff]
        %v633 = vld [vmem:[#allocation9 + $0xc8] sm:$0xff]
        %v634 = vld [vmem:[#allocation9 + $0xd0] sm:$0xff]
        %v635 = vld [vmem:[#allocation9 + $0xd8] sm:$0xff]
        %v636 = vld [vmem:[#allocation9 + $0xe0] sm:$0xff]
        %v637 = vld [vmem:[#allocation9 + $0xe8] sm:$0xff]
        %v638 = vld [vmem:[#allocation9 + $0xf0] sm:$0xff]
        %v639 = vld [vmem:[#allocation9 + $0xf8] sm:$0xff]
        %v640 = vperm.slane %v604, 0
        %v641 = vperm.slane %v605, 0
        %v674 = vunpack.c.l.b16 %v608
        %v675 = vunpack.c.h.b16 %v608
        %v676 = vunpack.c.l.b16 %v609
        %v677 = vunpack.c.h.b16 %v609
        %v678 = vunpack.c.l.b16 %v610
        %v679 = vunpack.c.h.b16 %v610
        %v680 = vunpack.c.l.b16 %v611
        %v681 = vunpack.c.h.b16 %v611
        %v682 = vunpack.c.l.b16 %v612
        %v683 = vunpack.c.h.b16 %v612
        %v684 = vunpack.c.l.b16 %v613
        %v685 = vunpack.c.h.b16 %v613
        %v686 = vunpack.c.l.b16 %v614
        %v687 = vunpack.c.h.b16 %v614
        %v688 = vunpack.c.l.b16 %v615
        %v689 = vunpack.c.h.b16 %v615
        %v690 = vunpack.c.l.b16 %v616
        %v691 = vunpack.c.h.b16 %v616
        %v692 = vunpack.c.l.b16 %v617
        %v693 = vunpack.c.h.b16 %v617
        %v694 = vunpack.c.l.b16 %v618
        %v695 = vunpack.c.h.b16 %v618
        %v696 = vunpack.c.l.b16 %v619
        %v697 = vunpack.c.h.b16 %v619
        %v698 = vunpack.c.l.b16 %v620
        %v699 = vunpack.c.h.b16 %v620
        %v700 = vunpack.c.l.b16 %v621
        %v701 = vunpack.c.h.b16 %v621
        %v702 = vunpack.c.l.b16 %v622
        %v703 = vunpack.c.h.b16 %v622
        %v704 = vunpack.c.l.b16 %v623
        %v705 = vunpack.c.h.b16 %v623
        %v706 = vunpack.c.l.b16 %v624
        %v707 = vunpack.c.h.b16 %v624
        %v708 = vunpack.c.l.b16 %v625
        %v709 = vunpack.c.h.b16 %v625
        %v710 = vunpack.c.l.b16 %v626
        %v711 = vunpack.c.h.b16 %v626
        %v712 = vunpack.c.l.b16 %v627
        %v713 = vunpack.c.h.b16 %v627
        %v714 = vunpack.c.l.b16 %v628
        %v715 = vunpack.c.h.b16 %v628
        %v716 = vunpack.c.l.b16 %v629
        %v717 = vunpack.c.h.b16 %v629
        %v718 = vunpack.c.l.b16 %v630
        %v719 = vunpack.c.h.b16 %v630
        %v720 = vunpack.c.l.b16 %v631
        %v721 = vunpack.c.h.b16 %v631
        %v722 = vunpack.c.l.b16 %v632
        %v723 = vunpack.c.h.b16 %v632
        %v724 = vunpack.c.l.b16 %v633
        %v725 = vunpack.c.h.b16 %v633
        %v726 = vunpack.c.l.b16 %v634
        %v727 = vunpack.c.h.b16 %v634
        %v728 = vunpack.c.l.b16 %v635
        %v729 = vunpack.c.h.b16 %v635
        %v730 = vunpack.c.l.b16 %v636
        %v731 = vunpack.c.h.b16 %v636
        %v732 = vunpack.c.l.b16 %v637
        %v733 = vunpack.c.h.b16 %v637
        %v734 = vunpack.c.l.b16 %v638
        %v735 = vunpack.c.h.b16 %v638
        %v736 = vunpack.c.l.b16 %v639
        %v737 = vunpack.c.h.b16 %v639
        %v738 = vpack.c.b16 %v676, %v674
        %v739 = vpack.c.b16 %v677, %v675
        %v740 = vpack.c.b16 %v680, %v678
        %v741 = vpack.c.b16 %v681, %v679
        %v742 = vpack.c.b16 %v684, %v682
        %v743 = vpack.c.b16 %v685, %v683
        %v744 = vpack.c.b16 %v688, %v686
        %v745 = vpack.c.b16 %v689, %v687
        %v746 = vpack.c.b16 %v692, %v690
        %v747 = vpack.c.b16 %v693, %v691
        %v748 = vpack.c.b16 %v696, %v694
        %v749 = vpack.c.b16 %v697, %v695
        %v750 = vpack.c.b16 %v700, %v698
        %v751 = vpack.c.b16 %v701, %v699
        %v752 = vpack.c.b16 %v704, %v702
        %v753 = vpack.c.b16 %v705, %v703
        %v754 = vpack.c.b16 %v708, %v706
        %v755 = vpack.c.b16 %v709, %v707
        %v756 = vpack.c.b16 %v712, %v710
        %v757 = vpack.c.b16 %v713, %v711
        %v758 = vpack.c.b16 %v716, %v714
        %v759 = vpack.c.b16 %v717, %v715
        %v760 = vpack.c.b16 %v720, %v718
        %v761 = vpack.c.b16 %v721, %v719
        %v762 = vpack.c.b16 %v724, %v722
        %v763 = vpack.c.b16 %v725, %v723
        %v764 = vpack.c.b16 %v728, %v726
        %v765 = vpack.c.b16 %v729, %v727
        %v766 = vpack.c.b16 %v732, %v730
        %v767 = vpack.c.b16 %v733, %v731
        %v768 = vpack.c.b16 %v736, %v734
        %v769 = vpack.c.b16 %v737, %v735
        %802 = vmatpush.bf16.msra.mxu0 %v752
        %803 = vmatpush.bf16.msra.mxu0 %v750
        %804 = vmatpush.bf16.msra.mxu0 %v748
        %805 = vmatpush.bf16.msra.mxu0 %v746
        %806 = vmatpush.bf16.msra.mxu0 %v744
        %807 = vmatpush.bf16.msra.mxu0 %v742
        %808 = vmatpush.bf16.msra.mxu0 %v740
        %809 = vmatpush.bf16.msra.mxu0 %v738
        %810 = vmatmul.bf16.gmra.mxu0 %v596
        %v811 = vpop.f32.mrf.mxu0
        %v812 = vadd.f32 %v640, %v811
        %v813 = vpop.f32.mrf.mxu0
        %814 = vdwg.mxu0
        %815 = vmatpush.bf16.msra.mxu0 %v768
        %816 = vmatpush.bf16.msra.mxu0 %v766
        %817 = vmatpush.bf16.msra.mxu0 %v764
        %818 = vmatpush.bf16.msra.mxu0 %v762
        %819 = vmatpush.bf16.msra.mxu0 %v760
        %820 = vmatpush.bf16.msra.mxu0 %v758
        %821 = vmatpush.bf16.msra.mxu0 %v756
        %822 = vmatpush.bf16.msra.mxu0 %v754
        %823 = vmatmul.bf16.gmra.mxu0 %v597
        %v824 = vpop.f32.mrf.mxu0
        %v825 = vadd.f32 %v812, %v824
        %v826 = vpop.f32.mrf.mxu0
        %827 = vdwg.mxu0
        %828 = vmatpush.bf16.msra.mxu0 %v753
        %829 = vmatpush.bf16.msra.mxu0 %v751
        %830 = vmatpush.bf16.msra.mxu0 %v749
        %831 = vmatpush.bf16.msra.mxu0 %v747
        %832 = vmatpush.bf16.msra.mxu0 %v745
        %833 = vmatpush.bf16.msra.mxu0 %v743
        %834 = vmatpush.bf16.msra.mxu0 %v741
        %835 = vmatpush.bf16.msra.mxu0 %v739
        %836 = vmatmul.bf16.gmra.mxu0 %v596
        %v837 = vpop.f32.mrf.mxu0
        %v838 = vadd.f32 %v641, %v837
        %v839 = vpop.f32.mrf.mxu0
        %840 = vdwg.mxu0
        %841 = vmatpush.bf16.msra.mxu0 %v769
        %842 = vmatpush.bf16.msra.mxu0 %v767
        %843 = vmatpush.bf16.msra.mxu0 %v765
        %844 = vmatpush.bf16.msra.mxu0 %v763
        %845 = vmatpush.bf16.msra.mxu0 %v761
        %846 = vmatpush.bf16.msra.mxu0 %v759
        %847 = vmatpush.bf16.msra.mxu0 %v757
        %848 = vmatpush.bf16.msra.mxu0 %v755
        %849 = vmatmul.bf16.gmra.mxu0 %v597
        %v850 = vpop.f32.mrf.mxu0
        %v851 = vadd.f32 %v838, %v850
        %v852 = vpop.f32.mrf.mxu0
        %853 = vdwg.mxu0
        %v854 = vld [vmem:[#allocation11] sm:$0xff]
        %v855 = vld [vmem:[#allocation11 + $0x8] sm:$0xff]
        %v856 = vld [vmem:[#allocation11 + $0x10] sm:$0xff]
        %v857 = vld [vmem:[#allocation11 + $0x18] sm:$0xff]
        %v858 = vld [vmem:[#allocation11 + $0x20] sm:$0xff]
        %v859 = vld [vmem:[#allocation11 + $0x28] sm:$0xff]
        %v860 = vld [vmem:[#allocation11 + $0x30] sm:$0xff]
        %v861 = vld [vmem:[#allocation11 + $0x38] sm:$0xff]
        %v862 = vld [vmem:[#allocation11 + $0x40] sm:$0xff]
        %v863 = vld [vmem:[#allocation11 + $0x48] sm:$0xff]
        %v864 = vld [vmem:[#allocation11 + $0x50] sm:$0xff]
        %v865 = vld [vmem:[#allocation11 + $0x58] sm:$0xff]
        %v866 = vld [vmem:[#allocation11 + $0x60] sm:$0xff]
        %v867 = vld [vmem:[#allocation11 + $0x68] sm:$0xff]
        %v868 = vld [vmem:[#allocation11 + $0x70] sm:$0xff]
        %v869 = vld [vmem:[#allocation11 + $0x78] sm:$0xff]
        %v870 = vld [vmem:[#allocation11 + $0x80] sm:$0xff]
        %v871 = vld [vmem:[#allocation11 + $0x88] sm:$0xff]
        %v872 = vld [vmem:[#allocation11 + $0x90] sm:$0xff]
        %v873 = vld [vmem:[#allocation11 + $0x98] sm:$0xff]
        %v874 = vld [vmem:[#allocation11 + $0xa0] sm:$0xff]
        %v875 = vld [vmem:[#allocation11 + $0xa8] sm:$0xff]
        %v876 = vld [vmem:[#allocation11 + $0xb0] sm:$0xff]
        %v877 = vld [vmem:[#allocation11 + $0xb8] sm:$0xff]
        %v878 = vld [vmem:[#allocation11 + $0xc0] sm:$0xff]
        %v879 = vld [vmem:[#allocation11 + $0xc8] sm:$0xff]
        %v880 = vld [vmem:[#allocation11 + $0xd0] sm:$0xff]
        %v881 = vld [vmem:[#allocation11 + $0xd8] sm:$0xff]
        %v882 = vld [vmem:[#allocation11 + $0xe0] sm:$0xff]
        %v883 = vld [vmem:[#allocation11 + $0xe8] sm:$0xff]
        %v884 = vld [vmem:[#allocation11 + $0xf0] sm:$0xff]
        %v885 = vld [vmem:[#allocation11 + $0xf8] sm:$0xff]
        %v886 = vperm.slane %v604, 1
        %v887 = vperm.slane %v605, 1
        %v920 = vunpack.c.l.b16 %v854
        %v921 = vunpack.c.h.b16 %v854
        %v922 = vunpack.c.l.b16 %v855
        %v923 = vunpack.c.h.b16 %v855
        %v924 = vunpack.c.l.b16 %v856
        %v925 = vunpack.c.h.b16 %v856
        %v926 = vunpack.c.l.b16 %v857
        %v927 = vunpack.c.h.b16 %v857
        %v928 = vunpack.c.l.b16 %v858
        %v929 = vunpack.c.h.b16 %v858
        %v930 = vunpack.c.l.b16 %v859
        %v931 = vunpack.c.h.b16 %v859
        %v932 = vunpack.c.l.b16 %v860
        %v933 = vunpack.c.h.b16 %v860
        %v934 = vunpack.c.l.b16 %v861
        %v935 = vunpack.c.h.b16 %v861
        %v936 = vunpack.c.l.b16 %v862
        %v937 = vunpack.c.h.b16 %v862
        %v938 = vunpack.c.l.b16 %v863
        %v939 = vunpack.c.h.b16 %v863
        %v940 = vunpack.c.l.b16 %v864
        %v941 = vunpack.c.h.b16 %v864
        %v942 = vunpack.c.l.b16 %v865
        %v943 = vunpack.c.h.b16 %v865
        %v944 = vunpack.c.l.b16 %v866
        %v945 = vunpack.c.h.b16 %v866
        %v946 = vunpack.c.l.b16 %v867
        %v947 = vunpack.c.h.b16 %v867
        %v948 = vunpack.c.l.b16 %v868
        %v949 = vunpack.c.h.b16 %v868
        %v950 = vunpack.c.l.b16 %v869
        %v951 = vunpack.c.h.b16 %v869
        %v952 = vunpack.c.l.b16 %v870
        %v953 = vunpack.c.h.b16 %v870
        %v954 = vunpack.c.l.b16 %v871
        %v955 = vunpack.c.h.b16 %v871
        %v956 = vunpack.c.l.b16 %v872
        %v957 = vunpack.c.h.b16 %v872
        %v958 = vunpack.c.l.b16 %v873
        %v959 = vunpack.c.h.b16 %v873
        %v960 = vunpack.c.l.b16 %v874
        %v961 = vunpack.c.h.b16 %v874
        %v962 = vunpack.c.l.b16 %v875
        %v963 = vunpack.c.h.b16 %v875
        %v964 = vunpack.c.l.b16 %v876
        %v965 = vunpack.c.h.b16 %v876
        %v966 = vunpack.c.l.b16 %v877
        %v967 = vunpack.c.h.b16 %v877
        %v968 = vunpack.c.l.b16 %v878
        %v969 = vunpack.c.h.b16 %v878
        %v970 = vunpack.c.l.b16 %v879
        %v971 = vunpack.c.h.b16 %v879
        %v972 = vunpack.c.l.b16 %v880
        %v973 = vunpack.c.h.b16 %v880
        %v974 = vunpack.c.l.b16 %v881
        %v975 = vunpack.c.h.b16 %v881
        %v976 = vunpack.c.l.b16 %v882
        %v977 = vunpack.c.h.b16 %v882
        %v978 = vunpack.c.l.b16 %v883
        %v979 = vunpack.c.h.b16 %v883
        %v980 = vunpack.c.l.b16 %v884
        %v981 = vunpack.c.h.b16 %v884
        %v982 = vunpack.c.l.b16 %v885
        %v983 = vunpack.c.h.b16 %v885
        %v984 = vpack.c.b16 %v922, %v920
        %v985 = vpack.c.b16 %v923, %v921
        %v986 = vpack.c.b16 %v926, %v924
        %v987 = vpack.c.b16 %v927, %v925
        %v988 = vpack.c.b16 %v930, %v928
        %v989 = vpack.c.b16 %v931, %v929
        %v990 = vpack.c.b16 %v934, %v932
        %v991 = vpack.c.b16 %v935, %v933
        %v992 = vpack.c.b16 %v938, %v936
        %v993 = vpack.c.b16 %v939, %v937
        %v994 = vpack.c.b16 %v942, %v940
        %v995 = vpack.c.b16 %v943, %v941
        %v996 = vpack.c.b16 %v946, %v944
        %v997 = vpack.c.b16 %v947, %v945
        %v998 = vpack.c.b16 %v950, %v948
        %v999 = vpack.c.b16 %v951, %v949
        %v1000 = vpack.c.b16 %v954, %v952
        %v1001 = vpack.c.b16 %v955, %v953
        %v1002 = vpack.c.b16 %v958, %v956
        %v1003 = vpack.c.b16 %v959, %v957
        %v1004 = vpack.c.b16 %v962, %v960
        %v1005 = vpack.c.b16 %v963, %v961
        %v1006 = vpack.c.b16 %v966, %v964
        %v1007 = vpack.c.b16 %v967, %v965
        %v1008 = vpack.c.b16 %v970, %v968
        %v1009 = vpack.c.b16 %v971, %v969
        %v1010 = vpack.c.b16 %v974, %v972
        %v1011 = vpack.c.b16 %v975, %v973
        %v1012 = vpack.c.b16 %v978, %v976
        %v1013 = vpack.c.b16 %v979, %v977
        %v1014 = vpack.c.b16 %v982, %v980
        %v1015 = vpack.c.b16 %v983, %v981
        %1048 = vmatpush.bf16.msra.mxu0 %v998
        %1049 = vmatpush.bf16.msra.mxu0 %v996
        %1050 = vmatpush.bf16.msra.mxu0 %v994
        %1051 = vmatpush.bf16.msra.mxu0 %v992
        %1052 = vmatpush.bf16.msra.mxu0 %v990
        %1053 = vmatpush.bf16.msra.mxu0 %v988
        %1054 = vmatpush.bf16.msra.mxu0 %v986
        %1055 = vmatpush.bf16.msra.mxu0 %v984
        %1056 = vmatmul.bf16.gmra.mxu0 %v600
        %v1057 = vpop.f32.mrf.mxu0
        %v1058 = vadd.f32 %v886, %v1057
        %v1059 = vpop.f32.mrf.mxu0
        %1060 = vdwg.mxu0
        %1061 = vmatpush.bf16.msra.mxu0 %v1014
        %1062 = vmatpush.bf16.msra.mxu0 %v1012
        %1063 = vmatpush.bf16.msra.mxu0 %v1010
        %1064 = vmatpush.bf16.msra.mxu0 %v1008
        %1065 = vmatpush.bf16.msra.mxu0 %v1006
        %1066 = vmatpush.bf16.msra.mxu0 %v1004
        %1067 = vmatpush.bf16.msra.mxu0 %v1002
        %1068 = vmatpush.bf16.msra.mxu0 %v1000
        %1069 = vmatmul.bf16.gmra.mxu0 %v601
        %v1070 = vpop.f32.mrf.mxu0
        %v1071 = vadd.f32 %v1058, %v1070
        %v1072 = vpop.f32.mrf.mxu0
        %1073 = vdwg.mxu0
        %1074 = vmatpush.bf16.msra.mxu0 %v999
        %1075 = vmatpush.bf16.msra.mxu0 %v997
        %1076 = vmatpush.bf16.msra.mxu0 %v995
        %1077 = vmatpush.bf16.msra.mxu0 %v993
        %1078 = vmatpush.bf16.msra.mxu0 %v991
        %1079 = vmatpush.bf16.msra.mxu0 %v989
        %1080 = vmatpush.bf16.msra.mxu0 %v987
        %1081 = vmatpush.bf16.msra.mxu0 %v985
        %1082 = vmatmul.bf16.gmra.mxu0 %v600
        %v1083 = vpop.f32.mrf.mxu0
        %v1084 = vadd.f32 %v887, %v1083
        %v1085 = vpop.f32.mrf.mxu0
        %1086 = vdwg.mxu0
        %1087 = vmatpush.bf16.msra.mxu0 %v1015
        %1088 = vmatpush.bf16.msra.mxu0 %v1013
        %1089 = vmatpush.bf16.msra.mxu0 %v1011
        %1090 = vmatpush.bf16.msra.mxu0 %v1009
        %1091 = vmatpush.bf16.msra.mxu0 %v1007
        %1092 = vmatpush.bf16.msra.mxu0 %v1005
        %1093 = vmatpush.bf16.msra.mxu0 %v1003
        %1094 = vmatpush.bf16.msra.mxu0 %v1001
        %1095 = vmatmul.bf16.gmra.mxu0 %v601
        %v1096 = vpop.f32.mrf.mxu0
        %v1097 = vadd.f32 %v1084, %v1096
        %v1098 = vpop.f32.mrf.mxu0
        %1099 = vdwg.mxu0
        %v1100 = vld [vmem:[#allocation12] sm:$0xff]
        %v1101 = vld [vmem:[#allocation12 + $0x8] sm:$0xff]
        %v1102 = vld [vmem:[#allocation12 + $0x10] sm:$0xff]
        %v1103 = vld [vmem:[#allocation12 + $0x18] sm:$0xff]
        %v1104 = vld [vmem:[#allocation12 + $0x20] sm:$0xff]
        %v1105 = vld [vmem:[#allocation12 + $0x28] sm:$0xff]
        %v1106 = vld [vmem:[#allocation12 + $0x30] sm:$0xff]
        %v1107 = vld [vmem:[#allocation12 + $0x38] sm:$0xff]
        %v1108 = vld [vmem:[#allocation12 + $0x40] sm:$0xff]
        %v1109 = vld [vmem:[#allocation12 + $0x48] sm:$0xff]
        %v1110 = vld [vmem:[#allocation12 + $0x50] sm:$0xff]
        %v1111 = vld [vmem:[#allocation12 + $0x58] sm:$0xff]
        %v1112 = vld [vmem:[#allocation12 + $0x60] sm:$0xff]
        %v1113 = vld [vmem:[#allocation12 + $0x68] sm:$0xff]
        %v1114 = vld [vmem:[#allocation12 + $0x70] sm:$0xff]
        %v1115 = vld [vmem:[#allocation12 + $0x78] sm:$0xff]
        %v1116 = vld [vmem:[#allocation12 + $0x80] sm:$0xff]
        %v1117 = vld [vmem:[#allocation12 + $0x88] sm:$0xff]
        %v1118 = vld [vmem:[#allocation12 + $0x90] sm:$0xff]
        %v1119 = vld [vmem:[#allocation12 + $0x98] sm:$0xff]
        %v1120 = vld [vmem:[#allocation12 + $0xa0] sm:$0xff]
        %v1121 = vld [vmem:[#allocation12 + $0xa8] sm:$0xff]
        %v1122 = vld [vmem:[#allocation12 + $0xb0] sm:$0xff]
        %v1123 = vld [vmem:[#allocation12 + $0xb8] sm:$0xff]
        %v1124 = vld [vmem:[#allocation12 + $0xc0] sm:$0xff]
        %v1125 = vld [vmem:[#allocation12 + $0xc8] sm:$0xff]
        %v1126 = vld [vmem:[#allocation12 + $0xd0] sm:$0xff]
        %v1127 = vld [vmem:[#allocation12 + $0xd8] sm:$0xff]
        %v1128 = vld [vmem:[#allocation12 + $0xe0] sm:$0xff]
        %v1129 = vld [vmem:[#allocation12 + $0xe8] sm:$0xff]
        %v1130 = vld [vmem:[#allocation12 + $0xf0] sm:$0xff]
        %v1131 = vld [vmem:[#allocation12 + $0xf8] sm:$0xff]
        %v1132 = vperm.slane %v604, 2
        %v1133 = vperm.slane %v605, 2
        %v1166 = vunpack.c.l.b16 %v1100
        %v1167 = vunpack.c.h.b16 %v1100
        %v1168 = vunpack.c.l.b16 %v1101
        %v1169 = vunpack.c.h.b16 %v1101
        %v1170 = vunpack.c.l.b16 %v1102
        %v1171 = vunpack.c.h.b16 %v1102
        %v1172 = vunpack.c.l.b16 %v1103
        %v1173 = vunpack.c.h.b16 %v1103
        %v1174 = vunpack.c.l.b16 %v1104
        %v1175 = vunpack.c.h.b16 %v1104
        %v1176 = vunpack.c.l.b16 %v1105
        %v1177 = vunpack.c.h.b16 %v1105
        %v1178 = vunpack.c.l.b16 %v1106
        %v1179 = vunpack.c.h.b16 %v1106
        %v1180 = vunpack.c.l.b16 %v1107
        %v1181 = vunpack.c.h.b16 %v1107
        %v1182 = vunpack.c.l.b16 %v1108
        %v1183 = vunpack.c.h.b16 %v1108
        %v1184 = vunpack.c.l.b16 %v1109
        %v1185 = vunpack.c.h.b16 %v1109
        %v1186 = vunpack.c.l.b16 %v1110
        %v1187 = vunpack.c.h.b16 %v1110
        %v1188 = vunpack.c.l.b16 %v1111
        %v1189 = vunpack.c.h.b16 %v1111
        %v1190 = vunpack.c.l.b16 %v1112
        %v1191 = vunpack.c.h.b16 %v1112
        %v1192 = vunpack.c.l.b16 %v1113
        %v1193 = vunpack.c.h.b16 %v1113
        %v1194 = vunpack.c.l.b16 %v1114
        %v1195 = vunpack.c.h.b16 %v1114
        %v1196 = vunpack.c.l.b16 %v1115
        %v1197 = vunpack.c.h.b16 %v1115
        %v1198 = vunpack.c.l.b16 %v1116
        %v1199 = vunpack.c.h.b16 %v1116
        %v1200 = vunpack.c.l.b16 %v1117
        %v1201 = vunpack.c.h.b16 %v1117
        %v1202 = vunpack.c.l.b16 %v1118
        %v1203 = vunpack.c.h.b16 %v1118
        %v1204 = vunpack.c.l.b16 %v1119
        %v1205 = vunpack.c.h.b16 %v1119
        %v1206 = vunpack.c.l.b16 %v1120
        %v1207 = vunpack.c.h.b16 %v1120
        %v1208 = vunpack.c.l.b16 %v1121
        %v1209 = vunpack.c.h.b16 %v1121
        %v1210 = vunpack.c.l.b16 %v1122
        %v1211 = vunpack.c.h.b16 %v1122
        %v1212 = vunpack.c.l.b16 %v1123
        %v1213 = vunpack.c.h.b16 %v1123
        %v1214 = vunpack.c.l.b16 %v1124
        %v1215 = vunpack.c.h.b16 %v1124
        %v1216 = vunpack.c.l.b16 %v1125
        %v1217 = vunpack.c.h.b16 %v1125
        %v1218 = vunpack.c.l.b16 %v1126
        %v1219 = vunpack.c.h.b16 %v1126
        %v1220 = vunpack.c.l.b16 %v1127
        %v1221 = vunpack.c.h.b16 %v1127
        %v1222 = vunpack.c.l.b16 %v1128
        %v1223 = vunpack.c.h.b16 %v1128
        %v1224 = vunpack.c.l.b16 %v1129
        %v1225 = vunpack.c.h.b16 %v1129
        %v1226 = vunpack.c.l.b16 %v1130
        %v1227 = vunpack.c.h.b16 %v1130
        %v1228 = vunpack.c.l.b16 %v1131
        %v1229 = vunpack.c.h.b16 %v1131
        %v1230 = vpack.c.b16 %v1168, %v1166
        %v1231 = vpack.c.b16 %v1169, %v1167
        %v1232 = vpack.c.b16 %v1172, %v1170
        %v1233 = vpack.c.b16 %v1173, %v1171
        %v1234 = vpack.c.b16 %v1176, %v1174
        %v1235 = vpack.c.b16 %v1177, %v1175
        %v1236 = vpack.c.b16 %v1180, %v1178
        %v1237 = vpack.c.b16 %v1181, %v1179
        %v1238 = vpack.c.b16 %v1184, %v1182
        %v1239 = vpack.c.b16 %v1185, %v1183
        %v1240 = vpack.c.b16 %v1188, %v1186
        %v1241 = vpack.c.b16 %v1189, %v1187
        %v1242 = vpack.c.b16 %v1192, %v1190
        %v1243 = vpack.c.b16 %v1193, %v1191
        %v1244 = vpack.c.b16 %v1196, %v1194
        %v1245 = vpack.c.b16 %v1197, %v1195
        %v1246 = vpack.c.b16 %v1200, %v1198
        %v1247 = vpack.c.b16 %v1201, %v1199
        %v1248 = vpack.c.b16 %v1204, %v1202
        %v1249 = vpack.c.b16 %v1205, %v1203
        %v1250 = vpack.c.b16 %v1208, %v1206
        %v1251 = vpack.c.b16 %v1209, %v1207
        %v1252 = vpack.c.b16 %v1212, %v1210
        %v1253 = vpack.c.b16 %v1213, %v1211
        %v1254 = vpack.c.b16 %v1216, %v1214
        %v1255 = vpack.c.b16 %v1217, %v1215
        %v1256 = vpack.c.b16 %v1220, %v1218
        %v1257 = vpack.c.b16 %v1221, %v1219
        %v1258 = vpack.c.b16 %v1224, %v1222
        %v1259 = vpack.c.b16 %v1225, %v1223
        %v1260 = vpack.c.b16 %v1228, %v1226
        %v1261 = vpack.c.b16 %v1229, %v1227
        %1294 = vmatpush.bf16.msra.mxu0 %v1244
        %1295 = vmatpush.bf16.msra.mxu0 %v1242
        %1296 = vmatpush.bf16.msra.mxu0 %v1240
        %1297 = vmatpush.bf16.msra.mxu0 %v1238
        %1298 = vmatpush.bf16.msra.mxu0 %v1236
        %1299 = vmatpush.bf16.msra.mxu0 %v1234
        %1300 = vmatpush.bf16.msra.mxu0 %v1232
        %1301 = vmatpush.bf16.msra.mxu0 %v1230
        %1302 = vmatmul.bf16.gmra.mxu0 %v600
        %v1303 = vpop.f32.mrf.mxu0
        %v1304 = vadd.f32 %v1132, %v1303
        %v1305 = vpop.f32.mrf.mxu0
        %1306 = vdwg.mxu0
        %1307 = vmatpush.bf16.msra.mxu0 %v1260
        %1308 = vmatpush.bf16.msra.mxu0 %v1258
        %1309 = vmatpush.bf16.msra.mxu0 %v1256
        %1310 = vmatpush.bf16.msra.mxu0 %v1254
        %1311 = vmatpush.bf16.msra.mxu0 %v1252
        %1312 = vmatpush.bf16.msra.mxu0 %v1250
        %1313 = vmatpush.bf16.msra.mxu0 %v1248
        %1314 = vmatpush.bf16.msra.mxu0 %v1246
        %1315 = vmatmul.bf16.gmra.mxu0 %v601
        %v1316 = vpop.f32.mrf.mxu0
        %v1317 = vadd.f32 %v1304, %v1316
        %v1318 = vpop.f32.mrf.mxu0
        %1319 = vdwg.mxu0
        %1320 = vmatpush.bf16.msra.mxu0 %v1245
        %1321 = vmatpush.bf16.msra.mxu0 %v1243
        %1322 = vmatpush.bf16.msra.mxu0 %v1241
        %1323 = vmatpush.bf16.msra.mxu0 %v1239
        %1324 = vmatpush.bf16.msra.mxu0 %v1237
        %1325 = vmatpush.bf16.msra.mxu0 %v1235
        %1326 = vmatpush.bf16.msra.mxu0 %v1233
        %1327 = vmatpush.bf16.msra.mxu0 %v1231
        %1328 = vmatmul.bf16.gmra.mxu0 %v600
        %v1329 = vpop.f32.mrf.mxu0
        %v1330 = vadd.f32 %v1133, %v1329
        %v1331 = vpop.f32.mrf.mxu0
        %1332 = vdwg.mxu0
        %1333 = vmatpush.bf16.msra.mxu0 %v1261
        %1334 = vmatpush.bf16.msra.mxu0 %v1259
        %1335 = vmatpush.bf16.msra.mxu0 %v1257
        %1336 = vmatpush.bf16.msra.mxu0 %v1255
        %1337 = vmatpush.bf16.msra.mxu0 %v1253
        %1338 = vmatpush.bf16.msra.mxu0 %v1251
        %1339 = vmatpush.bf16.msra.mxu0 %v1249
        %1340 = vmatpush.bf16.msra.mxu0 %v1247
        %1341 = vmatmul.bf16.gmra.mxu0 %v601
        %v1342 = vpop.f32.mrf.mxu0
        %v1343 = vadd.f32 %v1330, %v1342
        %v1344 = vpop.f32.mrf.mxu0
        %1345 = vdwg.mxu0
        %v1346 = vpack.c.bf16 %v825, %v825
        %v1347 = vpack.c.bf16 %v1071, %v1071
        %v1348 = vpack.c.bf16 %v1317, %v1317
        %v1350 = vperm.slane %v603, 0
        %1352 = vmatpush.bf16.xpose.msra.mxu0 0
        %1353 = vmatpush.bf16.xpose.msra.mxu0 0
        %1354 = vmatpush.bf16.xpose.msra.mxu0 0
        %1355 = vmatpush.bf16.xpose.msra.mxu0 0
        %1356 = vmatpush.bf16.xpose.msra.mxu0 0
        %1357 = vmatpush.bf16.xpose.msra.mxu0 0
        %1358 = vmatpush.bf16.xpose.msra.mxu0 0
        %1359 = vmatpush.bf16.xpose.msra.mxu0 %v1347
        %1360 = vmatmul.bf16.gmra.mxu0 %v1346
        %v1361 = vpop.f32.mrf.mxu0
        %v1362 = vadd.f32 %v1350, %v1361
        %v1363 = vpop.f32.mrf.mxu0
        %1364 = vdwg.mxu0
        %vm1365 = vcmask 64512
        %v1366 = vsel %vm1365, %v1362, -inf
        %1367 = vmax.xlane.f32.xlu0 %v1366
        %v1368 = vpop.xlane.xlu0 %1367
        %v1369 = vsub.f32 %v1362, %v1368
        %v1370 = vmul.f32 %v1369, 1.442695
        %v1371 = vpow.pop %v1370
        %v1372 = vsel %vm1365, %v1371, 0.0
        %1373 = vadd.xlane.f32.xlu0 %v1372
        %v1374 = vpop.xlane.xlu0 %1373
        %v1375 = vrcp.pop %v1374
        %v1376 = vmul.f32 %v1371, %v1375
        %v1377 = vpack.c.bf16 %v1376, %v1376
        %v1379 = vsel %vm1365, %v1377, 0
        %vm1381 = vcmask 1043456
        %v1383 = vsel %vm1381, %v1348, 0
        %1385 = vmatpush.bf16.msra.mxu0 0
        %1386 = vmatpush.bf16.msra.mxu0 0
        %1387 = vmatpush.bf16.msra.mxu0 0
        %1388 = vmatpush.bf16.msra.mxu0 0
        %1389 = vmatpush.bf16.msra.mxu0 0
        %1390 = vmatpush.bf16.msra.mxu0 0
        %1391 = vmatpush.bf16.msra.mxu0 0
        %1392 = vmatpush.bf16.msra.mxu0 %v1383
        %1393 = vmatmul.bf16.gmra.mxu0 %v1379
        %v1394 = vpop.f32.mrf.mxu0
        %v1395 = vadd.f32 0.0, %v1394
        %v1396 = vpop.f32.mrf.mxu0
        %1397 = vdwg.mxu0
        %1398 = vst [vmem:[#allocation2] sm:$0xff] %v1395
        %v1399 = vpack.c.bf16 %v851, %v851
        %v1400 = vpack.c.bf16 %v1097, %v1097
        %v1401 = vpack.c.bf16 %v1343, %v1343
        %1402 = vmatpush.bf16.xpose.msra.mxu0 0
        %1403 = vmatpush.bf16.xpose.msra.mxu0 0
        %1404 = vmatpush.bf16.xpose.msra.mxu0 0
        %1405 = vmatpush.bf16.xpose.msra.mxu0 0
        %1406 = vmatpush.bf16.xpose.msra.mxu0 0
        %1407 = vmatpush.bf16.xpose.msra.mxu0 0
        %1408 = vmatpush.bf16.xpose.msra.mxu0 0
        %1409 = vmatpush.bf16.xpose.msra.mxu0 %v1400
        %1410 = vmatmul.bf16.gmra.mxu0 %v1399
        %v1411 = vpop.f32.mrf.mxu0
        %v1412 = vadd.f32 %v1350, %v1411
        %v1413 = vpop.f32.mrf.mxu0
        %1414 = vdwg.mxu0
        %v1415 = vsel %vm1365, %v1412, -inf
        %1416 = vmax.xlane.f32.xlu0 %v1415
        %v1417 = vpop.xlane.xlu0 %1416
        %v1418 = vsub.f32 %v1412, %v1417
        %v1419 = vmul.f32 %v1418, 1.442695
        %v1420 = vpow.pop %v1419
        %v1421 = vsel %vm1365, %v1420, 0.0
        %1422 = vadd.xlane.f32.xlu0 %v1421
        %v1423 = vpop.xlane.xlu0 %1422
        %v1424 = vrcp.pop %v1423
        %v1425 = vmul.f32 %v1420, %v1424
        %v1426 = vpack.c.bf16 %v1425, %v1425
        %v1428 = vsel %vm1365, %v1426, 0
        %v1431 = vsel %vm1381, %v1401, 0
        %1433 = vmatpush.bf16.msra.mxu0 0
        %1434 = vmatpush.bf16.msra.mxu0 0
        %1435 = vmatpush.bf16.msra.mxu0 0
        %1436 = vmatpush.bf16.msra.mxu0 0
        %1437 = vmatpush.bf16.msra.mxu0 0
        %1438 = vmatpush.bf16.msra.mxu0 0
        %1439 = vmatpush.bf16.msra.mxu0 0
        %1440 = vmatpush.bf16.msra.mxu0 %v1431
        %1441 = vmatmul.bf16.gmra.mxu0 %v1428
        %v1442 = vpop.f32.mrf.mxu0
        %v1443 = vadd.f32 0.0, %v1442
        %v1444 = vpop.f32.mrf.mxu0
        %1445 = vdwg.mxu0
        %1446 = vst [vmem:[#allocation2 + $0x8] sm:$0xff] %v1443
        %v1447 = vld [vmem:[#allocation2] sm:$0xff]
        %v1448 = vld [vmem:[#allocation2 + $0x8] sm:$0xff]
        %v1449 = vpack.c.bf16 %v1447, %v1447
        %v1450 = vpack.c.bf16 %v1448, %v1448
        %v1451 = vld [vmem:[#allocation14] sm:$0xff]
        %v1452 = vld [vmem:[#allocation14 + $0x8] sm:$0xff]
        %v1453 = vld [vmem:[#allocation14 + $0x10] sm:$0xff]
        %v1454 = vld [vmem:[#allocation14 + $0x18] sm:$0xff]
        %v1455 = vld [vmem:[#allocation14 + $0x20] sm:$0xff]
        %v1456 = vld [vmem:[#allocation14 + $0x28] sm:$0xff]
        %v1457 = vld [vmem:[#allocation14 + $0x30] sm:$0xff]
        %v1458 = vld [vmem:[#allocation14 + $0x38] sm:$0xff]
        %v1459 = vld [vmem:[#allocation14 + $0x40] sm:$0xff]
        %v1460 = vld [vmem:[#allocation14 + $0x48] sm:$0xff]
        %v1461 = vld [vmem:[#allocation14 + $0x50] sm:$0xff]
        %v1462 = vld [vmem:[#allocation14 + $0x58] sm:$0xff]
        %v1463 = vld [vmem:[#allocation14 + $0x60] sm:$0xff]
        %v1464 = vld [vmem:[#allocation14 + $0x68] sm:$0xff]
        %v1465 = vld [vmem:[#allocation14 + $0x70] sm:$0xff]
        %v1466 = vld [vmem:[#allocation14 + $0x78] sm:$0xff]
        %v1467 = vld [vmem:[#allocation14 + $0x80] sm:$0xff]
        %v1468 = vld [vmem:[#allocation14 + $0x88] sm:$0xff]
        %v1469 = vld [vmem:[#allocation14 + $0x90] sm:$0xff]
        %v1470 = vld [vmem:[#allocation14 + $0x98] sm:$0xff]
        %v1471 = vld [vmem:[#allocation14 + $0xa0] sm:$0xff]
        %v1472 = vld [vmem:[#allocation14 + $0xa8] sm:$0xff]
        %v1473 = vld [vmem:[#allocation14 + $0xb0] sm:$0xff]
        %v1474 = vld [vmem:[#allocation14 + $0xb8] sm:$0xff]
        %v1475 = vld [vmem:[#allocation14 + $0xc0] sm:$0xff]
        %v1476 = vld [vmem:[#allocation14 + $0xc8] sm:$0xff]
        %v1477 = vld [vmem:[#allocation14 + $0xd0] sm:$0xff]
        %v1478 = vld [vmem:[#allocation14 + $0xd8] sm:$0xff]
        %v1479 = vld [vmem:[#allocation14 + $0xe0] sm:$0xff]
        %v1480 = vld [vmem:[#allocation14 + $0xe8] sm:$0xff]
        %v1481 = vld [vmem:[#allocation14 + $0xf0] sm:$0xff]
        %v1482 = vld [vmem:[#allocation14 + $0xf8] sm:$0xff]
        %v1483 = vperm.slane %v604, 3
        %v1484 = vperm.slane %v605, 3
        %v1517 = vunpack.c.l.b16 %v1451
        %v1518 = vunpack.c.h.b16 %v1451
        %v1519 = vunpack.c.l.b16 %v1452
        %v1520 = vunpack.c.h.b16 %v1452
        %v1521 = vunpack.c.l.b16 %v1453
        %v1522 = vunpack.c.h.b16 %v1453
        %v1523 = vunpack.c.l.b16 %v1454
        %v1524 = vunpack.c.h.b16 %v1454
        %v1525 = vunpack.c.l.b16 %v1455
        %v1526 = vunpack.c.h.b16 %v1455
        %v1527 = vunpack.c.l.b16 %v1456
        %v1528 = vunpack.c.h.b16 %v1456
        %v1529 = vunpack.c.l.b16 %v1457
        %v1530 = vunpack.c.h.b16 %v1457
        %v1531 = vunpack.c.l.b16 %v1458
        %v1532 = vunpack.c.h.b16 %v1458
        %v1533 = vunpack.c.l.b16 %v1459
        %v1534 = vunpack.c.h.b16 %v1459
        %v1535 = vunpack.c.l.b16 %v1460
        %v1536 = vunpack.c.h.b16 %v1460
        %v1537 = vunpack.c.l.b16 %v1461
        %v1538 = vunpack.c.h.b16 %v1461
        %v1539 = vunpack.c.l.b16 %v1462
        %v1540 = vunpack.c.h.b16 %v1462
        %v1541 = vunpack.c.l.b16 %v1463
        %v1542 = vunpack.c.h.b16 %v1463
        %v1543 = vunpack.c.l.b16 %v1464
        %v1544 = vunpack.c.h.b16 %v1464
        %v1545 = vunpack.c.l.b16 %v1465
        %v1546 = vunpack.c.h.b16 %v1465
        %v1547 = vunpack.c.l.b16 %v1466
        %v1548 = vunpack.c.h.b16 %v1466
        %v1549 = vunpack.c.l.b16 %v1467
        %v1550 = vunpack.c.h.b16 %v1467
        %v1551 = vunpack.c.l.b16 %v1468
        %v1552 = vunpack.c.h.b16 %v1468
        %v1553 = vunpack.c.l.b16 %v1469
        %v1554 = vunpack.c.h.b16 %v1469
        %v1555 = vunpack.c.l.b16 %v1470
        %v1556 = vunpack.c.h.b16 %v1470
        %v1557 = vunpack.c.l.b16 %v1471
        %v1558 = vunpack.c.h.b16 %v1471
        %v1559 = vunpack.c.l.b16 %v1472
        %v1560 = vunpack.c.h.b16 %v1472
        %v1561 = vunpack.c.l.b16 %v1473
        %v1562 = vunpack.c.h.b16 %v1473
        %v1563 = vunpack.c.l.b16 %v1474
        %v1564 = vunpack.c.h.b16 %v1474
        %v1565 = vunpack.c.l.b16 %v1475
        %v1566 = vunpack.c.h.b16 %v1475
        %v1567 = vunpack.c.l.b16 %v1476
        %v1568 = vunpack.c.h.b16 %v1476
        %v1569 = vunpack.c.l.b16 %v1477
        %v1570 = vunpack.c.h.b16 %v1477
        %v1571 = vunpack.c.l.b16 %v1478
        %v1572 = vunpack.c.h.b16 %v1478
        %v1573 = vunpack.c.l.b16 %v1479
        %v1574 = vunpack.c.h.b16 %v1479
        %v1575 = vunpack.c.l.b16 %v1480
        %v1576 = vunpack.c.h.b16 %v1480
        %v1577 = vunpack.c.l.b16 %v1481
        %v1578 = vunpack.c.h.b16 %v1481
        %v1579 = vunpack.c.l.b16 %v1482
        %v1580 = vunpack.c.h.b16 %v1482
        %v1581 = vpack.c.b16 %v1519, %v1517
        %v1582 = vpack.c.b16 %v1520, %v1518
        %v1583 = vpack.c.b16 %v1523, %v1521
        %v1584 = vpack.c.b16 %v1524, %v1522
        %v1585 = vpack.c.b16 %v1527, %v1525
        %v1586 = vpack.c.b16 %v1528, %v1526
        %v1587 = vpack.c.b16 %v1531, %v1529
        %v1588 = vpack.c.b16 %v1532, %v1530
        %v1589 = vpack.c.b16 %v1535, %v1533
        %v1590 = vpack.c.b16 %v1536, %v1534
        %v1591 = vpack.c.b16 %v1539, %v1537
        %v1592 = vpack.c.b16 %v1540, %v1538
        %v1593 = vpack.c.b16 %v1543, %v1541
        %v1594 = vpack.c.b16 %v1544, %v1542
        %v1595 = vpack.c.b16 %v1547, %v1545
        %v1596 = vpack.c.b16 %v1548, %v1546
        %v1597 = vpack.c.b16 %v1551, %v1549
        %v1598 = vpack.c.b16 %v1552, %v1550
        %v1599 = vpack.c.b16 %v1555, %v1553
        %v1600 = vpack.c.b16 %v1556, %v1554
        %v1601 = vpack.c.b16 %v1559, %v1557
        %v1602 = vpack.c.b16 %v1560, %v1558
        %v1603 = vpack.c.b16 %v1563, %v1561
        %v1604 = vpack.c.b16 %v1564, %v1562
        %v1605 = vpack.c.b16 %v1567, %v1565
        %v1606 = vpack.c.b16 %v1568, %v1566
        %v1607 = vpack.c.b16 %v1571, %v1569
        %v1608 = vpack.c.b16 %v1572, %v1570
        %v1609 = vpack.c.b16 %v1575, %v1573
        %v1610 = vpack.c.b16 %v1576, %v1574
        %v1611 = vpack.c.b16 %v1579, %v1577
        %v1612 = vpack.c.b16 %v1580, %v1578
        %1645 = vmatpush.bf16.msra.mxu0 %v1595
        %1646 = vmatpush.bf16.msra.mxu0 %v1593
        %1647 = vmatpush.bf16.msra.mxu0 %v1591
        %1648 = vmatpush.bf16.msra.mxu0 %v1589
        %1649 = vmatpush.bf16.msra.mxu0 %v1587
        %1650 = vmatpush.bf16.msra.mxu0 %v1585
        %1651 = vmatpush.bf16.msra.mxu0 %v1583
        %1652 = vmatpush.bf16.msra.mxu0 %v1581
        %1653 = vmatmul.bf16.gmra.mxu0 %v1449
        %v1654 = vpop.f32.mrf.mxu0
        %v1655 = vadd.f32 %v1483, %v1654
        %v1656 = vpop.f32.mrf.mxu0
        %1657 = vdwg.mxu0
        %1658 = vmatpush.bf16.msra.mxu0 %v1611
        %1659 = vmatpush.bf16.msra.mxu0 %v1609
        %1660 = vmatpush.bf16.msra.mxu0 %v1607
        %1661 = vmatpush.bf16.msra.mxu0 %v1605
        %1662 = vmatpush.bf16.msra.mxu0 %v1603
        %1663 = vmatpush.bf16.msra.mxu0 %v1601
        %1664 = vmatpush.bf16.msra.mxu0 %v1599
        %1665 = vmatpush.bf16.msra.mxu0 %v1597
        %1666 = vmatmul.bf16.gmra.mxu0 %v1450
        %v1667 = vpop.f32.mrf.mxu0
        %v1668 = vadd.f32 %v1655, %v1667
        %v1669 = vpop.f32.mrf.mxu0
        %1670 = vdwg.mxu0
        %1671 = vmatpush.bf16.msra.mxu0 %v1596
        %1672 = vmatpush.bf16.msra.mxu0 %v1594
        %1673 = vmatpush.bf16.msra.mxu0 %v1592
        %1674 = vmatpush.bf16.msra.mxu0 %v1590
        %1675 = vmatpush.bf16.msra.mxu0 %v1588
        %1676 = vmatpush.bf16.msra.mxu0 %v1586
        %1677 = vmatpush.bf16.msra.mxu0 %v1584
        %1678 = vmatpush.bf16.msra.mxu0 %v1582
        %1679 = vmatmul.bf16.gmra.mxu0 %v1449
        %v1680 = vpop.f32.mrf.mxu0
        %v1681 = vadd.f32 %v1484, %v1680
        %v1682 = vpop.f32.mrf.mxu0
        %1683 = vdwg.mxu0
        %1684 = vmatpush.bf16.msra.mxu0 %v1612
        %1685 = vmatpush.bf16.msra.mxu0 %v1610
        %1686 = vmatpush.bf16.msra.mxu0 %v1608
        %1687 = vmatpush.bf16.msra.mxu0 %v1606
        %1688 = vmatpush.bf16.msra.mxu0 %v1604
        %1689 = vmatpush.bf16.msra.mxu0 %v1602
        %1690 = vmatpush.bf16.msra.mxu0 %v1600
        %1691 = vmatpush.bf16.msra.mxu0 %v1598
        %1692 = vmatmul.bf16.gmra.mxu0 %v1450
        %v1693 = vpop.f32.mrf.mxu0
        %v1694 = vadd.f32 %v1681, %v1693
        %v1695 = vpop.f32.mrf.mxu0
        %1696 = vdwg.mxu0
        %v1697 = vadd.f32 %v594, %v1668
        %v1698 = vadd.f32 %v595, %v1694
        %v1699 = vadd.f32 %v1697, %v1698
        %1700 = vadd.xlane.f32.xlu0 %v1699
        %v1701 = vpop.xlane.xlu0 %1700
        %v1702 = vrcp.pop 256.0
        %v1703 = vmul.f32 256.0, %v1702
        %v1704 = vsub.f32 1.0, %v1703
        %v1705 = vmul.f32 %v1702, %v1704
        %v1706 = vadd.f32 %v1702, %v1705
        %vm1707 = vweird.f32 %v1702
        %v1708 = vsel %vm1707, %v1702, %v1706
        %v1709 = vmul.f32 %v1701, %v1708
        %v1710 = vsub.f32 %v1697, %v1709
        %v1711 = vsub.f32 %v1698, %v1709
        %v1712 = vmul.f32 %v1710, %v1710
        %v1713 = vmul.f32 %v1711, %v1711
        %v1714 = vadd.f32 %v1712, %v1713
        %1715 = vadd.xlane.f32.xlu0 %v1714
        %v1716 = vpop.xlane.xlu0 %1715
        %v1717 = vmul.f32 %v1716, %v1708
        %v1718 = vadd.f32 %v1717, 1e-05
        %v1719 = vrsqrt.pop %v1718
        %v1720 = vmul.f32 %v1719, %v1718
        %v1721 = vmul.f32 %v1720, %v1719
        %v1722 = vmul.f32 0.5, %v1721
        %v1723 = vsub.f32 1.5, %v1722
        %v1724 = vmul.f32 %v1719, %v1723
        %vm1725 = vweird.f32 %v1718
        %vm1726 = vweird.f32 %v1719
        %vm1727 = vmor %vm1725, %vm1726
        %v1728 = vsel %vm1727, %v1719, %v1724
        %v1729 = vmul.f32 %v1710, %v1728
        %v1730 = vmul.f32 %v1711, %v1728
        %v1731 = vperm.slane %v604, 4
        %v1732 = vperm.slane %v605, 4
        %v1733 = vmul.f32 %v1729, %v1731
        %v1734 = vmul.f32 %v1730, %v1732
        %v1735 = vperm.slane %v604, 5
        %v1736 = vperm.slane %v605, 5
        %v1737 = vadd.f32 %v1733, %v1735
        %v1738 = vadd.f32 %v1734, %v1736
        %v1739 = vpack.c.bf16 %v1737, %v1737
        %v1740 = vpack.c.bf16 %v1738, %v1738
        %v1741 = vld [vmem:[#allocation15] sm:$0xff]
        %v1742 = vld [vmem:[#allocation15 + $0x8] sm:$0xff]
        %v1743 = vld [vmem:[#allocation15 + $0x10] sm:$0xff]
        %v1744 = vld [vmem:[#allocation15 + $0x18] sm:$0xff]
        %v1745 = vld [vmem:[#allocation15 + $0x20] sm:$0xff]
        %v1746 = vld [vmem:[#allocation15 + $0x28] sm:$0xff]
        %v1747 = vld [vmem:[#allocation15 + $0x30] sm:$0xff]
        %v1748 = vld [vmem:[#allocation15 + $0x38] sm:$0xff]
        %v1749 = vld [vmem:[#allocation15 + $0x40] sm:$0xff]
        %v1750 = vld [vmem:[#allocation15 + $0x48] sm:$0xff]
        %v1751 = vld [vmem:[#allocation15 + $0x50] sm:$0xff]
        %v1752 = vld [vmem:[#allocation15 + $0x58] sm:$0xff]
        %v1753 = vld [vmem:[#allocation15 + $0x60] sm:$0xff]
        %v1754 = vld [vmem:[#allocation15 + $0x68] sm:$0xff]
        %v1755 = vld [vmem:[#allocation15 + $0x70] sm:$0xff]
        %v1756 = vld [vmem:[#allocation15 + $0x78] sm:$0xff]
        %v1757 = vld [vmem:[#allocation15 + $0x80] sm:$0xff]
        %v1758 = vld [vmem:[#allocation15 + $0x88] sm:$0xff]
        %v1759 = vld [vmem:[#allocation15 + $0x90] sm:$0xff]
        %v1760 = vld [vmem:[#allocation15 + $0x98] sm:$0xff]
        %v1761 = vld [vmem:[#allocation15 + $0xa0] sm:$0xff]
        %v1762 = vld [vmem:[#allocation15 + $0xa8] sm:$0xff]
        %v1763 = vld [vmem:[#allocation15 + $0xb0] sm:$0xff]
        %v1764 = vld [vmem:[#allocation15 + $0xb8] sm:$0xff]
        %v1765 = vld [vmem:[#allocation15 + $0xc0] sm:$0xff]
        %v1766 = vld [vmem:[#allocation15 + $0xc8] sm:$0xff]
        %v1767 = vld [vmem:[#allocation15 + $0xd0] sm:$0xff]
        %v1768 = vld [vmem:[#allocation15 + $0xd8] sm:$0xff]
        %v1769 = vld [vmem:[#allocation15 + $0xe0] sm:$0xff]
        %v1770 = vld [vmem:[#allocation15 + $0xe8] sm:$0xff]
        %v1771 = vld [vmem:[#allocation15 + $0xf0] sm:$0xff]
        %v1772 = vld [vmem:[#allocation15 + $0xf8] sm:$0xff]
        %v1773 = vld [vmem:[#allocation15 + $0x100] sm:$0xff]
        %v1774 = vld [vmem:[#allocation15 + $0x108] sm:$0xff]
        %v1775 = vld [vmem:[#allocation15 + $0x110] sm:$0xff]
        %v1776 = vld [vmem:[#allocation15 + $0x118] sm:$0xff]
        %v1777 = vld [vmem:[#allocation15 + $0x120] sm:$0xff]
        %v1778 = vld [vmem:[#allocation15 + $0x128] sm:$0xff]
        %v1779 = vld [vmem:[#allocation15 + $0x130] sm:$0xff]
        %v1780 = vld [vmem:[#allocation15 + $0x138] sm:$0xff]
        %v1781 = vld [vmem:[#allocation15 + $0x140] sm:$0xff]
        %v1782 = vld [vmem:[#allocation15 + $0x148] sm:$0xff]
        %v1783 = vld [vmem:[#allocation15 + $0x150] sm:$0xff]
        %v1784 = vld [vmem:[#allocation15 + $0x158] sm:$0xff]
        %v1785 = vld [vmem:[#allocation15 + $0x160] sm:$0xff]
        %v1786 = vld [vmem:[#allocation15 + $0x168] sm:$0xff]
        %v1787 = vld [vmem:[#allocation15 + $0x170] sm:$0xff]
        %v1788 = vld [vmem:[#allocation15 + $0x178] sm:$0xff]
        %v1789 = vld [vmem:[#allocation15 + $0x180] sm:$0xff]
        %v1790 = vld [vmem:[#allocation15 + $0x188] sm:$0xff]
        %v1791 = vld [vmem:[#allocation15 + $0x190] sm:$0xff]
        %v1792 = vld [vmem:[#allocation15 + $0x198] sm:$0xff]
        %v1793 = vld [vmem:[#allocation15 + $0x1a0] sm:$0xff]
        %v1794 = vld [vmem:[#allocation15 + $0x1a8] sm:$0xff]
        %v1795 = vld [vmem:[#allocation15 + $0x1b0] sm:$0xff]
        %v1796 = vld [vmem:[#allocation15 + $0x1b8] sm:$0xff]
        %v1797 = vld [vmem:[#allocation15 + $0x1c0] sm:$0xff]
        %v1798 = vld [vmem:[#allocation15 + $0x1c8] sm:$0xff]
        %v1799 = vld [vmem:[#allocation15 + $0x1d0] sm:$0xff]
        %v1800 = vld [vmem:[#allocation15 + $0x1d8] sm:$0xff]
        %v1801 = vld [vmem:[#allocation15 + $0x1e0] sm:$0xff]
        %v1802 = vld [vmem:[#allocation15 + $0x1e8] sm:$0xff]
        %v1803 = vld [vmem:[#allocation15 + $0x1f0] sm:$0xff]
        %v1804 = vld [vmem:[#allocation15 + $0x1f8] sm:$0xff]
        %v1805 = vld [vmem:[%s10] sm:$0xf]
        %v1807 = vperm.slane %v1805, 0
        %v1808 = vperm.slane %v1805, 1
        %v1809 = vperm.slane %v1805, 2
        %v1810 = vperm.slane %v1805, 3
        %v1879 = vunpack.c.l.b16 %v1741
        %v1880 = vunpack.c.h.b16 %v1741
        %v1881 = vunpack.c.l.b16 %v1742
        %v1882 = vunpack.c.h.b16 %v1742
        %v1883 = vunpack.c.l.b16 %v1743
        %v1884 = vunpack.c.h.b16 %v1743
        %v1885 = vunpack.c.l.b16 %v1744
        %v1886 = vunpack.c.h.b16 %v1744
        %v1887 = vunpack.c.l.b16 %v1745
        %v1888 = vunpack.c.h.b16 %v1745
        %v1889 = vunpack.c.l.b16 %v1746
        %v1890 = vunpack.c.h.b16 %v1746
        %v1891 = vunpack.c.l.b16 %v1747
        %v1892 = vunpack.c.h.b16 %v1747
        %v1893 = vunpack.c.l.b16 %v1748
        %v1894 = vunpack.c.h.b16 %v1748
        %v1895 = vunpack.c.l.b16 %v1749
        %v1896 = vunpack.c.h.b16 %v1749
        %v1897 = vunpack.c.l.b16 %v1750
        %v1898 = vunpack.c.h.b16 %v1750
        %v1899 = vunpack.c.l.b16 %v1751
        %v1900 = vunpack.c.h.b16 %v1751
        %v1901 = vunpack.c.l.b16 %v1752
        %v1902 = vunpack.c.h.b16 %v1752
        %v1903 = vunpack.c.l.b16 %v1753
        %v1904 = vunpack.c.h.b16 %v1753
        %v1905 = vunpack.c.l.b16 %v1754
        %v1906 = vunpack.c.h.b16 %v1754
        %v1907 = vunpack.c.l.b16 %v1755
        %v1908 = vunpack.c.h.b16 %v1755
        %v1909 = vunpack.c.l.b16 %v1756
        %v1910 = vunpack.c.h.b16 %v1756
        %v1911 = vunpack.c.l.b16 %v1757
        %v1912 = vunpack.c.h.b16 %v1757
        %v1913 = vunpack.c.l.b16 %v1758
        %v1914 = vunpack.c.h.b16 %v1758
        %v1915 = vunpack.c.l.b16 %v1759
        %v1916 = vunpack.c.h.b16 %v1759
        %v1917 = vunpack.c.l.b16 %v1760
        %v1918 = vunpack.c.h.b16 %v1760
        %v1919 = vunpack.c.l.b16 %v1761
        %v1920 = vunpack.c.h.b16 %v1761
        %v1921 = vunpack.c.l.b16 %v1762
        %v1922 = vunpack.c.h.b16 %v1762
        %v1923 = vunpack.c.l.b16 %v1763
        %v1924 = vunpack.c.h.b16 %v1763
        %v1925 = vunpack.c.l.b16 %v1764
        %v1926 = vunpack.c.h.b16 %v1764
        %v1927 = vunpack.c.l.b16 %v1765
        %v1928 = vunpack.c.h.b16 %v1765
        %v1929 = vunpack.c.l.b16 %v1766
        %v1930 = vunpack.c.h.b16 %v1766
        %v1931 = vunpack.c.l.b16 %v1767
        %v1932 = vunpack.c.h.b16 %v1767
        %v1933 = vunpack.c.l.b16 %v1768
        %v1934 = vunpack.c.h.b16 %v1768
        %v1935 = vunpack.c.l.b16 %v1769
        %v1936 = vunpack.c.h.b16 %v1769
        %v1937 = vunpack.c.l.b16 %v1770
        %v1938 = vunpack.c.h.b16 %v1770
        %v1939 = vunpack.c.l.b16 %v1771
        %v1940 = vunpack.c.h.b16 %v1771
        %v1941 = vunpack.c.l.b16 %v1772
        %v1942 = vunpack.c.h.b16 %v1772
        %v1943 = vunpack.c.l.b16 %v1773
        %v1944 = vunpack.c.h.b16 %v1773
        %v1945 = vunpack.c.l.b16 %v1774
        %v1946 = vunpack.c.h.b16 %v1774
        %v1947 = vunpack.c.l.b16 %v1775
        %v1948 = vunpack.c.h.b16 %v1775
        %v1949 = vunpack.c.l.b16 %v1776
        %v1950 = vunpack.c.h.b16 %v1776
        %v1951 = vunpack.c.l.b16 %v1777
        %v1952 = vunpack.c.h.b16 %v1777
        %v1953 = vunpack.c.l.b16 %v1778
        %v1954 = vunpack.c.h.b16 %v1778
        %v1955 = vunpack.c.l.b16 %v1779
        %v1956 = vunpack.c.h.b16 %v1779
        %v1957 = vunpack.c.l.b16 %v1780
        %v1958 = vunpack.c.h.b16 %v1780
        %v1959 = vunpack.c.l.b16 %v1781
        %v1960 = vunpack.c.h.b16 %v1781
        %v1961 = vunpack.c.l.b16 %v1782
        %v1962 = vunpack.c.h.b16 %v1782
        %v1963 = vunpack.c.l.b16 %v1783
        %v1964 = vunpack.c.h.b16 %v1783
        %v1965 = vunpack.c.l.b16 %v1784
        %v1966 = vunpack.c.h.b16 %v1784
        %v1967 = vunpack.c.l.b16 %v1785
        %v1968 = vunpack.c.h.b16 %v1785
        %v1969 = vunpack.c.l.b16 %v1786
        %v1970 = vunpack.c.h.b16 %v1786
        %v1971 = vunpack.c.l.b16 %v1787
        %v1972 = vunpack.c.h.b16 %v1787
        %v1973 = vunpack.c.l.b16 %v1788
        %v1974 = vunpack.c.h.b16 %v1788
        %v1975 = vunpack.c.l.b16 %v1789
        %v1976 = vunpack.c.h.b16 %v1789
        %v1977 = vunpack.c.l.b16 %v1790
        %v1978 = vunpack.c.h.b16 %v1790
        %v1979 = vunpack.c.l.b16 %v1791
        %v1980 = vunpack.c.h.b16 %v1791
        %v1981 = vunpack.c.l.b16 %v1792
        %v1982 = vunpack.c.h.b16 %v1792
        %v1983 = vunpack.c.l.b16 %v1793
        %v1984 = vunpack.c.h.b16 %v1793
        %v1985 = vunpack.c.l.b16 %v1794
        %v1986 = vunpack.c.h.b16 %v1794
        %v1987 = vunpack.c.l.b16 %v1795
        %v1988 = vunpack.c.h.b16 %v1795
        %v1989 = vunpack.c.l.b16 %v1796
        %v1990 = vunpack.c.h.b16 %v1796
        %v1991 = vunpack.c.l.b16 %v1797
        %v1992 = vunpack.c.h.b16 %v1797
        %v1993 = vunpack.c.l.b16 %v1798
        %v1994 = vunpack.c.h.b16 %v1798
        %v1995 = vunpack.c.l.b16 %v1799
        %v1996 = vunpack.c.h.b16 %v1799
        %v1997 = vunpack.c.l.b16 %v1800
        %v1998 = vunpack.c.h.b16 %v1800
        %v1999 = vunpack.c.l.b16 %v1801
        %v2000 = vunpack.c.h.b16 %v1801
        %v2001 = vunpack.c.l.b16 %v1802
        %v2002 = vunpack.c.h.b16 %v1802
        %v2003 = vunpack.c.l.b16 %v1803
        %v2004 = vunpack.c.h.b16 %v1803
        %v2005 = vunpack.c.l.b16 %v1804
        %v2006 = vunpack.c.h.b16 %v1804
        %v2007 = vpack.c.b16 %v1883, %v1879
        %v2008 = vpack.c.b16 %v1884, %v1880
        %v2009 = vpack.c.b16 %v1885, %v1881
        %v2010 = vpack.c.b16 %v1886, %v1882
        %v2011 = vpack.c.b16 %v1891, %v1887
        %v2012 = vpack.c.b16 %v1892, %v1888
        %v2013 = vpack.c.b16 %v1893, %v1889
        %v2014 = vpack.c.b16 %v1894, %v1890
        %v2015 = vpack.c.b16 %v1899, %v1895
        %v2016 = vpack.c.b16 %v1900, %v1896
        %v2017 = vpack.c.b16 %v1901, %v1897
        %v2018 = vpack.c.b16 %v1902, %v1898
        %v2019 = vpack.c.b16 %v1907, %v1903
        %v2020 = vpack.c.b16 %v1908, %v1904
        %v2021 = vpack.c.b16 %v1909, %v1905
        %v2022 = vpack.c.b16 %v1910, %v1906
        %v2023 = vpack.c.b16 %v1915, %v1911
        %v2024 = vpack.c.b16 %v1916, %v1912
        %v2025 = vpack.c.b16 %v1917, %v1913
        %v2026 = vpack.c.b16 %v1918, %v1914
        %v2027 = vpack.c.b16 %v1923, %v1919
        %v2028 = vpack.c.b16 %v1924, %v1920
        %v2029 = vpack.c.b16 %v1925, %v1921
        %v2030 = vpack.c.b16 %v1926, %v1922
        %v2031 = vpack.c.b16 %v1931, %v1927
        %v2032 = vpack.c.b16 %v1932, %v1928
        %v2033 = vpack.c.b16 %v1933, %v1929
        %v2034 = vpack.c.b16 %v1934, %v1930
        %v2035 = vpack.c.b16 %v1939, %v1935
        %v2036 = vpack.c.b16 %v1940, %v1936
        %v2037 = vpack.c.b16 %v1941, %v1937
        %v2038 = vpack.c.b16 %v1942, %v1938
        %v2039 = vpack.c.b16 %v1947, %v1943
        %v2040 = vpack.c.b16 %v1948, %v1944
        %v2041 = vpack.c.b16 %v1949, %v1945
        %v2042 = vpack.c.b16 %v1950, %v1946
        %v2043 = vpack.c.b16 %v1955, %v1951
        %v2044 = vpack.c.b16 %v1956, %v1952
        %v2045 = vpack.c.b16 %v1957, %v1953
        %v2046 = vpack.c.b16 %v1958, %v1954
        %v2047 = vpack.c.b16 %v1963, %v1959
        %v2048 = vpack.c.b16 %v1964, %v1960
        %v2049 = vpack.c.b16 %v1965, %v1961
        %v2050 = vpack.c.b16 %v1966, %v1962
        %v2051 = vpack.c.b16 %v1971, %v1967
        %v2052 = vpack.c.b16 %v1972, %v1968
        %v2053 = vpack.c.b16 %v1973, %v1969
        %v2054 = vpack.c.b16 %v1974, %v1970
        %v2055 = vpack.c.b16 %v1979, %v1975
        %v2056 = vpack.c.b16 %v1980, %v1976
        %v2057 = vpack.c.b16 %v1981, %v1977
        %v2058 = vpack.c.b16 %v1982, %v1978
        %v2059 = vpack.c.b16 %v1987, %v1983
        %v2060 = vpack.c.b16 %v1988, %v1984
        %v2061 = vpack.c.b16 %v1989, %v1985
        %v2062 = vpack.c.b16 %v1990, %v1986
        %v2063 = vpack.c.b16 %v1995, %v1991
        %v2064 = vpack.c.b16 %v1996, %v1992
        %v2065 = vpack.c.b16 %v1997, %v1993
        %v2066 = vpack.c.b16 %v1998, %v1994
        %v2067 = vpack.c.b16 %v2003, %v1999
        %v2068 = vpack.c.b16 %v2004, %v2000
        %v2069 = vpack.c.b16 %v2005, %v2001
        %v2070 = vpack.c.b16 %v2006, %v2002
        %2135 = vmatpush.bf16.msra.mxu0 %v2035
        %2136 = vmatpush.bf16.msra.mxu0 %v2031
        %2137 = vmatpush.bf16.msra.mxu0 %v2027
        %2138 = vmatpush.bf16.msra.mxu0 %v2023
        %2139 = vmatpush.bf16.msra.mxu0 %v2019
        %2140 = vmatpush.bf16.msra.mxu0 %v2015
        %2141 = vmatpush.bf16.msra.mxu0 %v2011
        %2142 = vmatpush.bf16.msra.mxu0 %v2007
        %2143 = vmatmul.bf16.gmra.mxu0 %v1739
        %v2144 = vpop.f32.mrf.mxu0
        %v2145 = vadd.f32 %v1807, %v2144
        %v2146 = vpop.f32.mrf.mxu0
        %2147 = vdwg.mxu0
        %2148 = vmatpush.bf16.msra.mxu0 %v2067
        %2149 = vmatpush.bf16.msra.mxu0 %v2063
        %2150 = vmatpush.bf16.msra.mxu0 %v2059
        %2151 = vmatpush.bf16.msra.mxu0 %v2055
        %2152 = vmatpush.bf16.msra.mxu0 %v2051
        %2153 = vmatpush.bf16.msra.mxu0 %v2047
        %2154 = vmatpush.bf16.msra.mxu0 %v2043
        %2155 = vmatpush.bf16.msra.mxu0 %v2039
        %2156 = vmatmul.bf16.gmra.mxu0 %v1740
        %v2157 = vpop.f32.mrf.mxu0
        %v2158 = vadd.f32 %v2145, %v2157
        %v2159 = vpop.f32.mrf.mxu0
        %2160 = vdwg.mxu0
        %2161 = vmatpush.bf16.msra.mxu0 %v2036
        %2162 = vmatpush.bf16.msra.mxu0 %v2032
        %2163 = vmatpush.bf16.msra.mxu0 %v2028
        %2164 = vmatpush.bf16.msra.mxu0 %v2024
        %2165 = vmatpush.bf16.msra.mxu0 %v2020
        %2166 = vmatpush.bf16.msra.mxu0 %v2016
        %2167 = vmatpush.bf16.msra.mxu0 %v2012
        %2168 = vmatpush.bf16.msra.mxu0 %v2008
        %2169 = vmatmul.bf16.gmra.mxu0 %v1739
        %v2170 = vpop.f32.mrf.mxu0
        %v2171 = vadd.f32 %v1808, %v2170
        %v2172 = vpop.f32.mrf.mxu0
        %2173 = vdwg.mxu0
        %2174 = vmatpush.bf16.msra.mxu0 %v2068
        %2175 = vmatpush.bf16.msra.mxu0 %v2064
        %2176 = vmatpush.bf16.msra.mxu0 %v2060
        %2177 = vmatpush.bf16.msra.mxu0 %v2056
        %2178 = vmatpush.bf16.msra.mxu0 %v2052
        %2179 = vmatpush.bf16.msra.mxu0 %v2048
        %2180 = vmatpush.bf16.msra.mxu0 %v2044
        %2181 = vmatpush.bf16.msra.mxu0 %v2040
        %2182 = vmatmul.bf16.gmra.mxu0 %v1740
        %v2183 = vpop.f32.mrf.mxu0
        %v2184 = vadd.f32 %v2171, %v2183
        %v2185 = vpop.f32.mrf.mxu0
        %2186 = vdwg.mxu0
        %2187 = vmatpush.bf16.msra.mxu0 %v2037
        %2188 = vmatpush.bf16.msra.mxu0 %v2033
        %2189 = vmatpush.bf16.msra.mxu0 %v2029
        %2190 = vmatpush.bf16.msra.mxu0 %v2025
        %2191 = vmatpush.bf16.msra.mxu0 %v2021
        %2192 = vmatpush.bf16.msra.mxu0 %v2017
        %2193 = vmatpush.bf16.msra.mxu0 %v2013
        %2194 = vmatpush.bf16.msra.mxu0 %v2009
        %2195 = vmatmul.bf16.gmra.mxu0 %v1739
        %v2196 = vpop.f32.mrf.mxu0
        %v2197 = vadd.f32 %v1809, %v2196
        %v2198 = vpop.f32.mrf.mxu0
        %2199 = vdwg.mxu0
        %2200 = vmatpush.bf16.msra.mxu0 %v2069
        %2201 = vmatpush.bf16.msra.mxu0 %v2065
        %2202 = vmatpush.bf16.msra.mxu0 %v2061
        %2203 = vmatpush.bf16.msra.mxu0 %v2057
        %2204 = vmatpush.bf16.msra.mxu0 %v2053
        %2205 = vmatpush.bf16.msra.mxu0 %v2049
        %2206 = vmatpush.bf16.msra.mxu0 %v2045
        %2207 = vmatpush.bf16.msra.mxu0 %v2041
        %2208 = vmatmul.bf16.gmra.mxu0 %v1740
        %v2209 = vpop.f32.mrf.mxu0
        %v2210 = vadd.f32 %v2197, %v2209
        %v2211 = vpop.f32.mrf.mxu0
        %2212 = vdwg.mxu0
        %2213 = vmatpush.bf16.msra.mxu0 %v2038
        %2214 = vmatpush.bf16.msra.mxu0 %v2034
        %2215 = vmatpush.bf16.msra.mxu0 %v2030
        %2216 = vmatpush.bf16.msra.mxu0 %v2026
        %2217 = vmatpush.bf16.msra.mxu0 %v2022
        %2218 = vmatpush.bf16.msra.mxu0 %v2018
        %2219 = vmatpush.bf16.msra.mxu0 %v2014
        %2220 = vmatpush.bf16.msra.mxu0 %v2010
        %2221 = vmatmul.bf16.gmra.mxu0 %v1739
        %v2222 = vpop.f32.mrf.mxu0
        %v2223 = vadd.f32 %v1810, %v2222
        %v2224 = vpop.f32.mrf.mxu0
        %2225 = vdwg.mxu0
        %2226 = vmatpush.bf16.msra.mxu0 %v2070
        %2227 = vmatpush.bf16.msra.mxu0 %v2066
        %2228 = vmatpush.bf16.msra.mxu0 %v2062
        %2229 = vmatpush.bf16.msra.mxu0 %v2058
        %2230 = vmatpush.bf16.msra.mxu0 %v2054
        %2231 = vmatpush.bf16.msra.mxu0 %v2050
        %2232 = vmatpush.bf16.msra.mxu0 %v2046
        %2233 = vmatpush.bf16.msra.mxu0 %v2042
        %2234 = vmatmul.bf16.gmra.mxu0 %v1740
        %v2235 = vpop.f32.mrf.mxu0
        %v2236 = vadd.f32 %v2223, %v2235
        %v2237 = vpop.f32.mrf.mxu0
        %2238 = vdwg.mxu0
        %v2239 = vmax.f32 %v2158, 0.0
        %v2240 = vmax.f32 %v2184, 0.0
        %v2241 = vmax.f32 %v2210, 0.0
        %v2242 = vmax.f32 %v2236, 0.0
        %v2243 = vpack.c.bf16 %v2239, %v2239
        %v2244 = vpack.c.bf16 %v2240, %v2240
        %v2245 = vpack.c.bf16 %v2241, %v2241
        %v2246 = vpack.c.bf16 %v2242, %v2242
        %v2247 = vld [vmem:[#allocation17] sm:$0xff]
        %v2248 = vld [vmem:[#allocation17 + $0x8] sm:$0xff]
        %v2249 = vld [vmem:[#allocation17 + $0x10] sm:$0xff]
        %v2250 = vld [vmem:[#allocation17 + $0x18] sm:$0xff]
        %v2251 = vld [vmem:[#allocation17 + $0x20] sm:$0xff]
        %v2252 = vld [vmem:[#allocation17 + $0x28] sm:$0xff]
        %v2253 = vld [vmem:[#allocation17 + $0x30] sm:$0xff]
        %v2254 = vld [vmem:[#allocation17 + $0x38] sm:$0xff]
        %v2255 = vld [vmem:[#allocation17 + $0x40] sm:$0xff]
        %v2256 = vld [vmem:[#allocation17 + $0x48] sm:$0xff]
        %v2257 = vld [vmem:[#allocation17 + $0x50] sm:$0xff]
        %v2258 = vld [vmem:[#allocation17 + $0x58] sm:$0xff]
        %v2259 = vld [vmem:[#allocation17 + $0x60] sm:$0xff]
        %v2260 = vld [vmem:[#allocation17 + $0x68] sm:$0xff]
        %v2261 = vld [vmem:[#allocation17 + $0x70] sm:$0xff]
        %v2262 = vld [vmem:[#allocation17 + $0x78] sm:$0xff]
        %v2263 = vld [vmem:[#allocation17 + $0x80] sm:$0xff]
        %v2264 = vld [vmem:[#allocation17 + $0x88] sm:$0xff]
        %v2265 = vld [vmem:[#allocation17 + $0x90] sm:$0xff]
        %v2266 = vld [vmem:[#allocation17 + $0x98] sm:$0xff]
        %v2267 = vld [vmem:[#allocation17 + $0xa0] sm:$0xff]
        %v2268 = vld [vmem:[#allocation17 + $0xa8] sm:$0xff]
        %v2269 = vld [vmem:[#allocation17 + $0xb0] sm:$0xff]
        %v2270 = vld [vmem:[#allocation17 + $0xb8] sm:$0xff]
        %v2271 = vld [vmem:[#allocation17 + $0xc0] sm:$0xff]
        %v2272 = vld [vmem:[#allocation17 + $0xc8] sm:$0xff]
        %v2273 = vld [vmem:[#allocation17 + $0xd0] sm:$0xff]
        %v2274 = vld [vmem:[#allocation17 + $0xd8] sm:$0xff]
        %v2275 = vld [vmem:[#allocation17 + $0xe0] sm:$0xff]
        %v2276 = vld [vmem:[#allocation17 + $0xe8] sm:$0xff]
        %v2277 = vld [vmem:[#allocation17 + $0xf0] sm:$0xff]
        %v2278 = vld [vmem:[#allocation17 + $0xf8] sm:$0xff]
        %v2279 = vld [vmem:[#allocation17 + $0x100] sm:$0xff]
        %v2280 = vld [vmem:[#allocation17 + $0x108] sm:$0xff]
        %v2281 = vld [vmem:[#allocation17 + $0x110] sm:$0xff]
        %v2282 = vld [vmem:[#allocation17 + $0x118] sm:$0xff]
        %v2283 = vld [vmem:[#allocation17 + $0x120] sm:$0xff]
        %v2284 = vld [vmem:[#allocation17 + $0x128] sm:$0xff]
        %v2285 = vld [vmem:[#allocation17 + $0x130] sm:$0xff]
        %v2286 = vld [vmem:[#allocation17 + $0x138] sm:$0xff]
        %v2287 = vld [vmem:[#allocation17 + $0x140] sm:$0xff]
        %v2288 = vld [vmem:[#allocation17 + $0x148] sm:$0xff]
        %v2289 = vld [vmem:[#allocation17 + $0x150] sm:$0xff]
        %v2290 = vld [vmem:[#allocation17 + $0x158] sm:$0xff]
        %v2291 = vld [vmem:[#allocation17 + $0x160] sm:$0xff]
        %v2292 = vld [vmem:[#allocation17 + $0x168] sm:$0xff]
        %v2293 = vld [vmem:[#allocation17 + $0x170] sm:$0xff]
        %v2294 = vld [vmem:[#allocation17 + $0x178] sm:$0xff]
        %v2295 = vld [vmem:[#allocation17 + $0x180] sm:$0xff]
        %v2296 = vld [vmem:[#allocation17 + $0x188] sm:$0xff]
        %v2297 = vld [vmem:[#allocation17 + $0x190] sm:$0xff]
        %v2298 = vld [vmem:[#allocation17 + $0x198] sm:$0xff]
        %v2299 = vld [vmem:[#allocation17 + $0x1a0] sm:$0xff]
        %v2300 = vld [vmem:[#allocation17 + $0x1a8] sm:$0xff]
        %v2301 = vld [vmem:[#allocation17 + $0x1b0] sm:$0xff]
        %v2302 = vld [vmem:[#allocation17 + $0x1b8] sm:$0xff]
        %v2303 = vld [vmem:[#allocation17 + $0x1c0] sm:$0xff]
        %v2304 = vld [vmem:[#allocation17 + $0x1c8] sm:$0xff]
        %v2305 = vld [vmem:[#allocation17 + $0x1d0] sm:$0xff]
        %v2306 = vld [vmem:[#allocation17 + $0x1d8] sm:$0xff]
        %v2307 = vld [vmem:[#allocation17 + $0x1e0] sm:$0xff]
        %v2308 = vld [vmem:[#allocation17 + $0x1e8] sm:$0xff]
        %v2309 = vld [vmem:[#allocation17 + $0x1f0] sm:$0xff]
        %v2310 = vld [vmem:[#allocation17 + $0x1f8] sm:$0xff]
        %v2311 = vperm.slane %v604, 6
        %v2312 = vperm.slane %v605, 6
        %v2377 = vunpack.c.l.b16 %v2247
        %v2378 = vunpack.c.h.b16 %v2247
        %v2379 = vunpack.c.l.b16 %v2248
        %v2380 = vunpack.c.h.b16 %v2248
        %v2381 = vunpack.c.l.b16 %v2249
        %v2382 = vunpack.c.h.b16 %v2249
        %v2383 = vunpack.c.l.b16 %v2250
        %v2384 = vunpack.c.h.b16 %v2250
        %v2385 = vunpack.c.l.b16 %v2251
        %v2386 = vunpack.c.h.b16 %v2251
        %v2387 = vunpack.c.l.b16 %v2252
        %v2388 = vunpack.c.h.b16 %v2252
        %v2389 = vunpack.c.l.b16 %v2253
        %v2390 = vunpack.c.h.b16 %v2253
        %v2391 = vunpack.c.l.b16 %v2254
        %v2392 = vunpack.c.h.b16 %v2254
        %v2393 = vunpack.c.l.b16 %v2255
        %v2394 = vunpack.c.h.b16 %v2255
        %v2395 = vunpack.c.l.b16 %v2256
        %v2396 = vunpack.c.h.b16 %v2256
        %v2397 = vunpack.c.l.b16 %v2257
        %v2398 = vunpack.c.h.b16 %v2257
        %v2399 = vunpack.c.l.b16 %v2258
        %v2400 = vunpack.c.h.b16 %v2258
        %v2401 = vunpack.c.l.b16 %v2259
        %v2402 = vunpack.c.h.b16 %v2259
        %v2403 = vunpack.c.l.b16 %v2260
        %v2404 = vunpack.c.h.b16 %v2260
        %v2405 = vunpack.c.l.b16 %v2261
        %v2406 = vunpack.c.h.b16 %v2261
        %v2407 = vunpack.c.l.b16 %v2262
        %v2408 = vunpack.c.h.b16 %v2262
        %v2409 = vunpack.c.l.b16 %v2263
        %v2410 = vunpack.c.h.b16 %v2263
        %v2411 = vunpack.c.l.b16 %v2264
        %v2412 = vunpack.c.h.b16 %v2264
        %v2413 = vunpack.c.l.b16 %v2265
        %v2414 = vunpack.c.h.b16 %v2265
        %v2415 = vunpack.c.l.b16 %v2266
        %v2416 = vunpack.c.h.b16 %v2266
        %v2417 = vunpack.c.l.b16 %v2267
        %v2418 = vunpack.c.h.b16 %v2267
        %v2419 = vunpack.c.l.b16 %v2268
        %v2420 = vunpack.c.h.b16 %v2268
        %v2421 = vunpack.c.l.b16 %v2269
        %v2422 = vunpack.c.h.b16 %v2269
        %v2423 = vunpack.c.l.b16 %v2270
        %v2424 = vunpack.c.h.b16 %v2270
        %v2425 = vunpack.c.l.b16 %v2271
        %v2426 = vunpack.c.h.b16 %v2271
        %v2427 = vunpack.c.l.b16 %v2272
        %v2428 = vunpack.c.h.b16 %v2272
        %v2429 = vunpack.c.l.b16 %v2273
        %v2430 = vunpack.c.h.b16 %v2273
        %v2431 = vunpack.c.l.b16 %v2274
        %v2432 = vunpack.c.h.b16 %v2274
        %v2433 = vunpack.c.l.b16 %v2275
        %v2434 = vunpack.c.h.b16 %v2275
        %v2435 = vunpack.c.l.b16 %v2276
        %v2436 = vunpack.c.h.b16 %v2276
        %v2437 = vunpack.c.l.b16 %v2277
        %v2438 = vunpack.c.h.b16 %v2277
        %v2439 = vunpack.c.l.b16 %v2278
        %v2440 = vunpack.c.h.b16 %v2278
        %v2441 = vunpack.c.l.b16 %v2279
        %v2442 = vunpack.c.h.b16 %v2279
        %v2443 = vunpack.c.l.b16 %v2280
        %v2444 = vunpack.c.h.b16 %v2280
        %v2445 = vunpack.c.l.b16 %v2281
        %v2446 = vunpack.c.h.b16 %v2281
        %v2447 = vunpack.c.l.b16 %v2282
        %v2448 = vunpack.c.h.b16 %v2282
        %v2449 = vunpack.c.l.b16 %v2283
        %v2450 = vunpack.c.h.b16 %v2283
        %v2451 = vunpack.c.l.b16 %v2284
        %v2452 = vunpack.c.h.b16 %v2284
        %v2453 = vunpack.c.l.b16 %v2285
        %v2454 = vunpack.c.h.b16 %v2285
        %v2455 = vunpack.c.l.b16 %v2286
        %v2456 = vunpack.c.h.b16 %v2286
        %v2457 = vunpack.c.l.b16 %v2287
        %v2458 = vunpack.c.h.b16 %v2287
        %v2459 = vunpack.c.l.b16 %v2288
        %v2460 = vunpack.c.h.b16 %v2288
        %v2461 = vunpack.c.l.b16 %v2289
        %v2462 = vunpack.c.h.b16 %v2289
        %v2463 = vunpack.c.l.b16 %v2290
        %v2464 = vunpack.c.h.b16 %v2290
        %v2465 = vunpack.c.l.b16 %v2291
        %v2466 = vunpack.c.h.b16 %v2291
        %v2467 = vunpack.c.l.b16 %v2292
        %v2468 = vunpack.c.h.b16 %v2292
        %v2469 = vunpack.c.l.b16 %v2293
        %v2470 = vunpack.c.h.b16 %v2293
        %v2471 = vunpack.c.l.b16 %v2294
        %v2472 = vunpack.c.h.b16 %v2294
        %v2473 = vunpack.c.l.b16 %v2295
        %v2474 = vunpack.c.h.b16 %v2295
        %v2475 = vunpack.c.l.b16 %v2296
        %v2476 = vunpack.c.h.b16 %v2296
        %v2477 = vunpack.c.l.b16 %v2297
        %v2478 = vunpack.c.h.b16 %v2297
        %v2479 = vunpack.c.l.b16 %v2298
        %v2480 = vunpack.c.h.b16 %v2298
        %v2481 = vunpack.c.l.b16 %v2299
        %v2482 = vunpack.c.h.b16 %v2299
        %v2483 = vunpack.c.l.b16 %v2300
        %v2484 = vunpack.c.h.b16 %v2300
        %v2485 = vunpack.c.l.b16 %v2301
        %v2486 = vunpack.c.h.b16 %v2301
        %v2487 = vunpack.c.l.b16 %v2302
        %v2488 = vunpack.c.h.b16 %v2302
        %v2489 = vunpack.c.l.b16 %v2303
        %v2490 = vunpack.c.h.b16 %v2303
        %v2491 = vunpack.c.l.b16 %v2304
        %v2492 = vunpack.c.h.b16 %v2304
        %v2493 = vunpack.c.l.b16 %v2305
        %v2494 = vunpack.c.h.b16 %v2305
        %v2495 = vunpack.c.l.b16 %v2306
        %v2496 = vunpack.c.h.b16 %v2306
        %v2497 = vunpack.c.l.b16 %v2307
        %v2498 = vunpack.c.h.b16 %v2307
        %v2499 = vunpack.c.l.b16 %v2308
        %v2500 = vunpack.c.h.b16 %v2308
        %v2501 = vunpack.c.l.b16 %v2309
        %v2502 = vunpack.c.h.b16 %v2309
        %v2503 = vunpack.c.l.b16 %v2310
        %v2504 = vunpack.c.h.b16 %v2310
        %v2505 = vpack.c.b16 %v2379, %v2377
        %v2506 = vpack.c.b16 %v2380, %v2378
        %v2507 = vpack.c.b16 %v2383, %v2381
        %v2508 = vpack.c.b16 %v2384, %v2382
        %v2509 = vpack.c.b16 %v2387, %v2385
        %v2510 = vpack.c.b16 %v2388, %v2386
        %v2511 = vpack.c.b16 %v2391, %v2389
        %v2512 = vpack.c.b16 %v2392, %v2390
        %v2513 = vpack.c.b16 %v2395, %v2393
        %v2514 = vpack.c.b16 %v2396, %v2394
        %v2515 = vpack.c.b16 %v2399, %v2397
        %v2516 = vpack.c.b16 %v2400, %v2398
        %v2517 = vpack.c.b16 %v2403, %v2401
        %v2518 = vpack.c.b16 %v2404, %v2402
        %v2519 = vpack.c.b16 %v2407, %v2405
        %v2520 = vpack.c.b16 %v2408, %v2406
        %v2521 = vpack.c.b16 %v2411, %v2409
        %v2522 = vpack.c.b16 %v2412, %v2410
        %v2523 = vpack.c.b16 %v2415, %v2413
        %v2524 = vpack.c.b16 %v2416, %v2414
        %v2525 = vpack.c.b16 %v2419, %v2417
        %v2526 = vpack.c.b16 %v2420, %v2418
        %v2527 = vpack.c.b16 %v2423, %v2421
        %v2528 = vpack.c.b16 %v2424, %v2422
        %v2529 = vpack.c.b16 %v2427, %v2425
        %v2530 = vpack.c.b16 %v2428, %v2426
        %v2531 = vpack.c.b16 %v2431, %v2429
        %v2532 = vpack.c.b16 %v2432, %v2430
        %v2533 = vpack.c.b16 %v2435, %v2433
        %v2534 = vpack.c.b16 %v2436, %v2434
        %v2535 = vpack.c.b16 %v2439, %v2437
        %v2536 = vpack.c.b16 %v2440, %v2438
        %v2537 = vpack.c.b16 %v2443, %v2441
        %v2538 = vpack.c.b16 %v2444, %v2442
        %v2539 = vpack.c.b16 %v2447, %v2445
        %v2540 = vpack.c.b16 %v2448, %v2446
        %v2541 = vpack.c.b16 %v2451, %v2449
        %v2542 = vpack.c.b16 %v2452, %v2450
        %v2543 = vpack.c.b16 %v2455, %v2453
        %v2544 = vpack.c.b16 %v2456, %v2454
        %v2545 = vpack.c.b16 %v2459, %v2457
        %v2546 = vpack.c.b16 %v2460, %v2458
        %v2547 = vpack.c.b16 %v2463, %v2461
        %v2548 = vpack.c.b16 %v2464, %v2462
        %v2549 = vpack.c.b16 %v2467, %v2465
        %v2550 = vpack.c.b16 %v2468, %v2466
        %v2551 = vpack.c.b16 %v2471, %v2469
        %v2552 = vpack.c.b16 %v2472, %v2470
        %v2553 = vpack.c.b16 %v2475, %v2473
        %v2554 = vpack.c.b16 %v2476, %v2474
        %v2555 = vpack.c.b16 %v2479, %v2477
        %v2556 = vpack.c.b16 %v2480, %v2478
        %v2557 = vpack.c.b16 %v2483, %v2481
        %v2558 = vpack.c.b16 %v2484, %v2482
        %v2559 = vpack.c.b16 %v2487, %v2485
        %v2560 = vpack.c.b16 %v2488, %v2486
        %v2561 = vpack.c.b16 %v2491, %v2489
        %v2562 = vpack.c.b16 %v2492, %v2490
        %v2563 = vpack.c.b16 %v2495, %v2493
        %v2564 = vpack.c.b16 %v2496, %v2494
        %v2565 = vpack.c.b16 %v2499, %v2497
        %v2566 = vpack.c.b16 %v2500, %v2498
        %v2567 = vpack.c.b16 %v2503, %v2501
        %v2568 = vpack.c.b16 %v2504, %v2502
        %2633 = vmatpush.bf16.msra.mxu0 %v2519
        %2634 = vmatpush.bf16.msra.mxu0 %v2517
        %2635 = vmatpush.bf16.msra.mxu0 %v2515
        %2636 = vmatpush.bf16.msra.mxu0 %v2513
        %2637 = vmatpush.bf16.msra.mxu0 %v2511
        %2638 = vmatpush.bf16.msra.mxu0 %v2509
        %2639 = vmatpush.bf16.msra.mxu0 %v2507
        %2640 = vmatpush.bf16.msra.mxu0 %v2505
        %2641 = vmatmul.bf16.gmra.mxu0 %v2243
        %v2642 = vpop.f32.mrf.mxu0
        %v2643 = vadd.f32 %v2311, %v2642
        %v2644 = vpop.f32.mrf.mxu0
        %2645 = vdwg.mxu0
        %2646 = vmatpush.bf16.msra.mxu0 %v2535
        %2647 = vmatpush.bf16.msra.mxu0 %v2533
        %2648 = vmatpush.bf16.msra.mxu0 %v2531
        %2649 = vmatpush.bf16.msra.mxu0 %v2529
        %2650 = vmatpush.bf16.msra.mxu0 %v2527
        %2651 = vmatpush.bf16.msra.mxu0 %v2525
        %2652 = vmatpush.bf16.msra.mxu0 %v2523
        %2653 = vmatpush.bf16.msra.mxu0 %v2521
        %2654 = vmatmul.bf16.gmra.mxu0 %v2244
        %v2655 = vpop.f32.mrf.mxu0
        %v2656 = vadd.f32 %v2643, %v2655
        %v2657 = vpop.f32.mrf.mxu0
        %2658 = vdwg.mxu0
        %2659 = vmatpush.bf16.msra.mxu0 %v2551
        %2660 = vmatpush.bf16.msra.mxu0 %v2549
        %2661 = vmatpush.bf16.msra.mxu0 %v2547
        %2662 = vmatpush.bf16.msra.mxu0 %v2545
        %2663 = vmatpush.bf16.msra.mxu0 %v2543
        %2664 = vmatpush.bf16.msra.mxu0 %v2541
        %2665 = vmatpush.bf16.msra.mxu0 %v2539
        %2666 = vmatpush.bf16.msra.mxu0 %v2537
        %2667 = vmatmul.bf16.gmra.mxu0 %v2245
        %v2668 = vpop.f32.mrf.mxu0
        %v2669 = vadd.f32 %v2656, %v2668
        %v2670 = vpop.f32.mrf.mxu0
        %2671 = vdwg.mxu0
        %2672 = vmatpush.bf16.msra.mxu0 %v2567
        %2673 = vmatpush.bf16.msra.mxu0 %v2565
        %2674 = vmatpush.bf16.msra.mxu0 %v2563
        %2675 = vmatpush.bf16.msra.mxu0 %v2561
        %2676 = vmatpush.bf16.msra.mxu0 %v2559
        %2677 = vmatpush.bf16.msra.mxu0 %v2557
        %2678 = vmatpush.bf16.msra.mxu0 %v2555
        %2679 = vmatpush.bf16.msra.mxu0 %v2553
        %2680 = vmatmul.bf16.gmra.mxu0 %v2246
        %v2681 = vpop.f32.mrf.mxu0
        %v2682 = vadd.f32 %v2669, %v2681
        %v2683 = vpop.f32.mrf.mxu0
        %2684 = vdwg.mxu0
        %2685 = vmatpush.bf16.msra.mxu0 %v2520
        %2686 = vmatpush.bf16.msra.mxu0 %v2518
        %2687 = vmatpush.bf16.msra.mxu0 %v2516
        %2688 = vmatpush.bf16.msra.mxu0 %v2514
        %2689 = vmatpush.bf16.msra.mxu0 %v2512
        %2690 = vmatpush.bf16.msra.mxu0 %v2510
        %2691 = vmatpush.bf16.msra.mxu0 %v2508
        %2692 = vmatpush.bf16.msra.mxu0 %v2506
        %2693 = vmatmul.bf16.gmra.mxu0 %v2243
        %v2694 = vpop.f32.mrf.mxu0
        %v2695 = vadd.f32 %v2312, %v2694
        %v2696 = vpop.f32.mrf.mxu0
        %2697 = vdwg.mxu0
        %2698 = vmatpush.bf16.msra.mxu0 %v2536
        %2699 = vmatpush.bf16.msra.mxu0 %v2534
        %2700 = vmatpush.bf16.msra.mxu0 %v2532
        %2701 = vmatpush.bf16.msra.mxu0 %v2530
        %2702 = vmatpush.bf16.msra.mxu0 %v2528
        %2703 = vmatpush.bf16.msra.mxu0 %v2526
        %2704 = vmatpush.bf16.msra.mxu0 %v2524
        %2705 = vmatpush.bf16.msra.mxu0 %v2522
        %2706 = vmatmul.bf16.gmra.mxu0 %v2244
        %v2707 = vpop.f32.mrf.mxu0
        %v2708 = vadd.f32 %v2695, %v2707
        %v2709 = vpop.f32.mrf.mxu0
        %2710 = vdwg.mxu0
        %2711 = vmatpush.bf16.msra.mxu0 %v2552
        %2712 = vmatpush.bf16.msra.mxu0 %v2550
        %2713 = vmatpush.bf16.msra.mxu0 %v2548
        %2714 = vmatpush.bf16.msra.mxu0 %v2546
        %2715 = vmatpush.bf16.msra.mxu0 %v2544
        %2716 = vmatpush.bf16.msra.mxu0 %v2542
        %2717 = vmatpush.bf16.msra.mxu0 %v2540
        %2718 = vmatpush.bf16.msra.mxu0 %v2538
        %2719 = vmatmul.bf16.gmra.mxu0 %v2245
        %v2720 = vpop.f32.mrf.mxu0
        %v2721 = vadd.f32 %v2708, %v2720
        %v2722 = vpop.f32.mrf.mxu0
        %2723 = vdwg.mxu0
        %2724 = vmatpush.bf16.msra.mxu0 %v2568
        %2725 = vmatpush.bf16.msra.mxu0 %v2566
        %2726 = vmatpush.bf16.msra.mxu0 %v2564
        %2727 = vmatpush.bf16.msra.mxu0 %v2562
        %2728 = vmatpush.bf16.msra.mxu0 %v2560
        %2729 = vmatpush.bf16.msra.mxu0 %v2558
        %2730 = vmatpush.bf16.msra.mxu0 %v2556
        %2731 = vmatpush.bf16.msra.mxu0 %v2554
        %2732 = vmatmul.bf16.gmra.mxu0 %v2246
        %v2733 = vpop.f32.mrf.mxu0
        %v2734 = vadd.f32 %v2721, %v2733
        %v2735 = vpop.f32.mrf.mxu0
        %2736 = vdwg.mxu0
        %v2737 = vadd.f32 %v1737, %v2682
        %v2738 = vadd.f32 %v1738, %v2734
        %v2739 = vadd.f32 %v2737, %v2738
        %2740 = vadd.xlane.f32.xlu0 %v2739
        %v2741 = vpop.xlane.xlu0 %2740
        %v2742 = vmul.f32 %v2741, %v1708
        %v2743 = vsub.f32 %v2737, %v2742
        %v2744 = vsub.f32 %v2738, %v2742
        %v2745 = vmul.f32 %v2743, %v2743
        %v2746 = vmul.f32 %v2744, %v2744
        %v2747 = vadd.f32 %v2745, %v2746
        %2748 = vadd.xlane.f32.xlu0 %v2747
        %v2749 = vpop.xlane.xlu0 %2748
        %v2750 = vmul.f32 %v2749, %v1708
        %v2751 = vadd.f32 %v2750, 1e-05
        %v2752 = vrsqrt.pop %v2751
        %v2753 = vmul.f32 %v2752, %v2751
        %v2754 = vmul.f32 %v2753, %v2752
        %v2755 = vmul.f32 0.5, %v2754
        %v2756 = vsub.f32 1.5, %v2755
        %v2757 = vmul.f32 %v2752, %v2756
        %vm2758 = vweird.f32 %v2751
        %vm2759 = vweird.f32 %v2752
        %vm2760 = vmor %vm2758, %vm2759
        %v2761 = vsel %vm2760, %v2752, %v2757
        %v2762 = vmul.f32 %v2743, %v2761
        %v2763 = vmul.f32 %v2744, %v2761
        %v2764 = vperm.slane %v604, 7
        %v2765 = vperm.slane %v605, 7
        %v2766 = vmul.f32 %v2762, %v2764
        %v2767 = vmul.f32 %v2763, %v2765
        %v2768 = vperm.slane %v606, 0
        %v2769 = vperm.slane %v607, 0
        %v2770 = vadd.f32 %v2766, %v2768
        %v2771 = vadd.f32 %v2767, %v2769
        %v2772 = vpack.c.bf16 %v2771, %v2770
        %2773 = vst [vmem:[%s592] sm:$0xff] %v2772
        %s2774 = sand.u32 %s289, 1
        %s2775 = scalar_lea.sflag [#allocation5], %s2774
        %s2776 = sand.u32 %s289, 1
        %s2777 = smul.addr %s2776, 8
        %s2778 = scalar_lea.vmem [#allocation20], %s2777
        // Predicated region
        $region105: #{tpu_custom_call.1} parent=63 // pred_check
          %p2779 = pneg %p299
        $region106: #{tpu_custom_call.1} parent=63 // pred_check_branch
          %2781 = sbr.rel (%p2779) target = $region108
        $region107: #{tpu_custom_call.1} parent=63 // pred_region
          %2783 = vsyncadd %s2775, 0
          %s2784 = smul.addr %s35, 2
          %s2785 = smul.addr %s2784, 4
          %s2786 = scalar_lea.hbm %s11, %s2785
          %s2788 = sshll.u32 %s2778, 4
          %s2789 = int_to_ptr.vmem [resolvable:$true] %s2788
          %s2790 = sshll.u32 %s2786, 4
          %s2791 = int_to_ptr.hbm [resolvable:$true] %s2790
          %2793 = dma.vmem_to_hbm [thread:$0]  %s2789, 128, %s2791, %s2775
        $region108: #{tpu_custom_call.1} parent=63 // pred_fallthru
          _
      $region64: #{tpu_custom_call.1} parent=5 // pred_fallthru
        _
      %p2794 = scmp.le.s32.totalorder 2, %s30
      // Predicated region
      $region109: #{tpu_custom_call.1} parent=5 // pred_check
        %p2795 = pneg %p2794
      $region110: #{tpu_custom_call.1} parent=5 // pred_check_branch
        %2797 = sbr.rel (%p2795) target = $region112
      $region111: #{tpu_custom_call.1} parent=5 // pred_region
        %s2798 = ssub.s32 %s30, 2
        // Predicated region
        $region113: #{tpu_custom_call.1} parent=111 // pred_check
          %p2799 = pneg %p305
        $region114: #{tpu_custom_call.1} parent=111 // pred_check_branch
          %2801 = sbr.rel (%p2799) target = $region116
        $region115: #{tpu_custom_call.1} parent=111 // pred_region
          %s2802 = sand.u32 %s290, 1
          %s2803 = scalar_lea.sflag [#allocation5], %s2802
          %s2804 = sand.u32 %s290, 1
          %s2805 = smul.addr %s2804, 8
          %s2806 = scalar_lea.vmem [#allocation20], %s2805
          %2808 = dma.done %s2803, 128
        $region116: #{tpu_custom_call.1} parent=111 // pred_fallthru
          _
      $region112: #{tpu_custom_call.1} parent=5 // pred_fallthru
        _
    $region6: #{tpu_custom_call.1} parent=1 // loop_footer
      %s34 = sadd.s32 1, %s30
    $region7: #{tpu_custom_call.1} parent=1 // loop_footer_branch
      %29 = sbr.rel target = $region3
    $region8: #{tpu_custom_call.1} parent=1 // loop_exit
      _
    %2809 = vsyncpa [#allocation4], 1
    %s2810 = scalar_lea.sflag [#allocation4], 1
    %2811 = vsyncpa %s2810, 1
    %2812 = vsyncpa [#allocation7], 1
    %s2813 = scalar_lea.sflag [#allocation7], 1
    %2814 = vsyncpa %s2813, 1
    %2815 = vsyncpa [#allocation10], 1
    %2816 = vsyncpa [#allocation13], 1
    %2817 = vsyncpa [#allocation16], 1
    %2818 = vsyncpa [#allocation19], 1
    %2819 = vsyncpa [#allocation5], 1
    %s2820 = scalar_lea.sflag [#allocation5], 1
    %2821 = vsyncpa %s2820, 1

</llo_original>
